<compile_context>
chip_gen: v7x
topology: tpu7x:2x2x1
jax: 0.10.0
libtpu: 0.0.40
codegen_flags: <defaults>
</compile_context>

<pallas_src>
import jax
import jax.numpy as jnp
from jax.experimental import pallas as pl
from jax.experimental.pallas import tpu as pltpu

N_FEATURES = 64
PROJECTION_DIM = 32
N_PER_VIEW = 2          # samples per augmented view
CONV1_K = 7 * 7 * 1     # 49
CONV1_K_PAD = 64        # zero-padded contracting dim (aligned)


# ----------------------------- fused Pallas kernel -----------------------------

def simclr_kernel(a1_ref, w1_ref, b1_ref, wb1_ref, bb1_ref, wb2_ref, bb2_ref,
                  pw1_ref, pw2_ref, h_ref, z_ref, mp_ref, bp1_ref, bp2_ref):
    """One grid step = one augmented view (N_PER_VIEW samples): encoder + projector."""
    n = N_PER_VIEW
    f32 = jnp.float32
    bf16 = jnp.bfloat16

    # Zero the padded scratch buffers.  Zero borders == PyTorch Conv2d zero
    # padding; for the maxpool, zero padding is equivalent to -inf padding
    # because its input is post-ReLU (>= 0).
    mp_ref[...] = jnp.zeros_like(mp_ref)
    bp1_ref[...] = jnp.zeros_like(bp1_ref)
    bp2_ref[...] = jnp.zeros_like(bp2_ref)

    # ---- conv1 7x7/s2 (BN scale folded into weights) + bias + ReLU ------------
    # a1: [8*8*n, 64] bf16 im2col (rows ordered (oh, ow, n)), w1: [64, 64] bf16.
    y = jnp.dot(a1_ref[...], w1_ref[...], preferred_element_type=f32)
    y = jnp.maximum(y + b1_ref[...], 0.0)                         # (128, 64) f32
    mp_ref[1:9, 1:9, :, :] = y.reshape(8, 8, n, 64)               # into (10,10,n,64), zero border

    # ---- maxpool 3x3 / stride 2 / pad 1: (8,8) -> (4,4), written straight into
    # the zero-padded input buffer of the first block conv ------------------------
    mp = mp_ref[...]                                              # (10, 10, n, 64)
    for oh in range(4):
        rmax = jnp.maximum(jnp.maximum(mp[2 * oh], mp[2 * oh + 1]),
                           mp[2 * oh + 2])                        # (10, n, 64)
        for ow in range(4):
            wmax = jnp.maximum(jnp.maximum(rmax[2 * ow], rmax[2 * ow + 1]),
                               rmax[2 * ow + 2])                  # (n, 64)
            bp1_ref[oh + 1, ow + 1, :, :] = wmax

    # ---- BasicBlock(64): relu(bn2(conv2(relu(bn1(conv1(x))))) + x) --------------
    def conv3x3(src, w_ref):
        # src: (6, 6, n, 64) f32 value (zero-padded); one (16n,64)@(64,64) MXU
        # matmul per kernel tap, accumulated in f32.  Rows ordered (oh, ow, n).
        acc = jnp.zeros((4 * 4 * n, 64), f32)
        for di in range(3):
            for dj in range(3):
                patch = src[di:di + 4, dj:dj + 4, :, :]           # (4, 4, n, 64)
                a = patch.reshape(4 * 4 * n, 64).astype(bf16)
                acc = acc + jnp.dot(a, w_ref[di * 3 + dj],
                                    preferred_element_type=f32)
        return acc

    bp1 = bp1_ref[...]                                            # (6, 6, n, 64)
    y1 = jnp.maximum(conv3x3(bp1, wb1_ref) + bb1_ref[...], 0.0)   # (16n, 64)
    bp2_ref[1:5, 1:5, :, :] = y1.reshape(4, 4, n, 64)

    bp2 = bp2_ref[...]
    res = bp1[1:5, 1:5, :, :].reshape(4 * 4 * n, 64)              # maxpool output (identity path)
    y2 = jnp.maximum(conv3x3(bp2, wb2_ref) + bb2_ref[...] + res, 0.0)

    # ---- global average pool over 4x4 spatial -> h in R^{n_features} ------------
    h = jnp.sum(y2.reshape(16, n, 64), axis=0) * (1.0 / 16.0)     # (n, 64) f32
    h_ref[...] = h

    # ---- projector: relu(h @ W1) @ W2 (both Linear layers bias-free) ------------
    p = jnp.maximum(jnp.dot(h.astype(bf16), pw1_ref[...],
                            preferred_element_type=f32), 0.0)
    z_ref[...] = jnp.dot(p.astype(bf16), pw2_ref[...],
                         preferred_element_type=f32)


# ----------------------------- host-side glue -----------------------------

def conv1_im2col(x_nchw):
    """NCHW [2*n, 1, 16, 16] -> [2 views, 8*8*n, 64] bf16 im2col for conv1 (7x7/s2/p3).

    Rows within a view are ordered (oh, ow, n_local); K = 49 is zero-padded to 64.
    Done in XLA: with C=1 this tensor is ~32 KB and would be lane-sparse in-kernel.
    """
    n = N_PER_VIEW
    x = jnp.transpose(x_nchw, (0, 2, 3, 1)).astype(jnp.float32)   # (2n, 16, 16, 1)
    xp = jnp.pad(x, ((0, 0), (3, 3), (3, 3), (0, 0)))             # (2n, 22, 22, 1)
    cols = [xp[:, i:i + 16:2, j:j + 16:2, 0]                      # (2n, 8, 8) each
            for i in range(7) for j in range(7)]
    a = jnp.stack(cols, axis=-1)                                  # (2n, 8, 8, 49), K=(kh,kw)
    a = a.reshape(2, n, 8, 8, CONV1_K)                            # (view, n, oh, ow, K)
    a = jnp.transpose(a, (0, 2, 3, 1, 4))                         # (view, oh, ow, n, K)
    a = a.reshape(2, 8 * 8 * n, CONV1_K)
    a = jnp.pad(a, ((0, 0), (0, 0), (0, CONV1_K_PAD - CONV1_K)))
    return a.astype(jnp.bfloat16)


def simclr_forward(params, x_i, x_j):
    n = N_PER_VIEW
    x = jnp.concatenate([x_i, x_j], axis=0)                       # (2n, 1, 16, 16)
    a1 = conv1_im2col(x)                                          # (2, 128, 64) bf16

    h, z = pl.pallas_call(
        simclr_kernel,
        out_shape=(
            jax.ShapeDtypeStruct((2, n, N_FEATURES), jnp.float32),
            jax.ShapeDtypeStruct((2, n, PROJECTION_DIM), jnp.float32),
        ),
        grid=(2,),                                                # one grid step per view
        in_specs=[
            pl.BlockSpec((None, 8 * 8 * n, CONV1_K_PAD), lambda v: (v, 0, 0)),  # a1
            pl.BlockSpec((CONV1_K_PAD, 64), lambda v: (0, 0)),                  # w1 (BN folded)
            pl.BlockSpec((1, 64), lambda v: (0, 0)),                            # b1
            pl.BlockSpec((9, 64, 64), lambda v: (0, 0, 0)),                     # wb1 (BN folded)
            pl.BlockSpec((1, 64), lambda v: (0, 0)),                            # bb1
            pl.BlockSpec((9, 64, 64), lambda v: (0, 0, 0)),                     # wb2 (BN folded)
            pl.BlockSpec((1, 64), lambda v: (0, 0)),                            # bb2
            pl.BlockSpec((64, 64), lambda v: (0, 0)),                           # projector W1^T
            pl.BlockSpec((64, PROJECTION_DIM), lambda v: (0, 0)),               # projector W2^T
        ],
        out_specs=(
            pl.BlockSpec((None, n, N_FEATURES), lambda v: (v, 0, 0)),
            pl.BlockSpec((None, n, PROJECTION_DIM), lambda v: (v, 0, 0)),
        ),
        scratch_shapes=[
            pltpu.VMEM((10, 10, n, 64), jnp.float32),   # zero-padded maxpool input (H,W,N,C)
            pltpu.VMEM((6, 6, n, 64), jnp.float32),     # zero-padded block-conv1 input
            pltpu.VMEM((6, 6, n, 64), jnp.float32),     # zero-padded block-conv2 input
        ],
        compiler_params=pltpu.CompilerParams(
            dimension_semantics=("parallel",)),          # v7x: one view per TensorCore
    )(a1, params["w1"], params["b1"], params["wb1"], params["bb1"],
      params["wb2"], params["bb2"], params["pw1"], params["pw2"])

    h_i, h_j = h[0], h[1]
    z_i, z_j = z[0], z[1]
    return h_i, h_j, z_i, z_j


# ----------------------------- parameters -----------------------------

def init_params(key):
    keys = jax.random.split(key, 11)
    eps = 1e-5

    def bn_fold(kg, kb, c):
        gamma = 1.0 + 0.1 * jax.random.normal(kg, (c,), jnp.float32)
        beta = 0.1 * jax.random.normal(kb, (c,), jnp.float32)
        # eval-mode BN with running_mean=0, running_var=1 -> y = x*scale + beta
        scale = gamma / jnp.sqrt(1.0 + eps)
        return scale, beta

    w_conv1 = 0.05 * jax.random.normal(keys[0], (64, 1, 7, 7), jnp.float32)    # [Co,Ci,KH,KW]
    w_b1 = 0.05 * jax.random.normal(keys[1], (64, 64, 3, 3), jnp.float32)
    w_b2 = 0.05 * jax.random.normal(keys[2], (64, 64, 3, 3), jnp.float32)

    s1, b1 = bn_fold(keys[3], keys[4], 64)
    sb1, bb1 = bn_fold(keys[5], keys[6], 64)
    sb2, bb2 = bn_fold(keys[7], keys[8], 64)

    # conv1 -> [K=49, Co], K ordered (kh, kw, cin); fold BN scale; pad K to 64.
    w1 = jnp.transpose(w_conv1, (2, 3, 1, 0)).reshape(CONV1_K, 64) * s1[None, :]
    w1 = jnp.pad(w1, ((0, CONV1_K_PAD - CONV1_K), (0, 0)))

    # block convs -> [9 taps, Cin, Co], tap index = kh*3+kw; fold BN scale.
    wb1 = jnp.transpose(w_b1, (2, 3, 1, 0)).reshape(9, 64, 64) * sb1[None, None, :]
    wb2 = jnp.transpose(w_b2, (2, 3, 1, 0)).reshape(9, 64, 64) * sb2[None, None, :]

    # nn.Linear weights are [out, in]; y = x @ W.T
    proj_w1 = 0.05 * jax.random.normal(keys[9], (N_FEATURES, N_FEATURES), jnp.float32)
    proj_w2 = 0.05 * jax.random.normal(keys[10], (PROJECTION_DIM, N_FEATURES), jnp.float32)

    return {
        "w1": w1.astype(jnp.bfloat16),
        "b1": b1.reshape(1, 64).astype(jnp.float32),
        "wb1": wb1.astype(jnp.bfloat16),
        "bb1": bb1.reshape(1, 64).astype(jnp.float32),
        "wb2": wb2.astype(jnp.bfloat16),
        "bb2": bb2.reshape(1, 64).astype(jnp.float32),
        "pw1": proj_w1.T.astype(jnp.bfloat16),   # [F, F]
        "pw2": proj_w2.T.astype(jnp.bfloat16),   # [F, P]
    }


# ----------------------------- main -----------------------------

if __name__ == "__main__":
    key = jax.random.PRNGKey(0)
    k_params, k_xi, k_xj = jax.random.split(key, 3)

    params = init_params(k_params)
    # two augmented views, NCHW, single channel (conv1 replaced to accept 1 channel)
    x_i = jax.random.normal(k_xi, (N_PER_VIEW, 1, 16, 16), jnp.float32)
    x_j = jax.random.normal(k_xj, (N_PER_VIEW, 1, 16, 16), jnp.float32)

    h_i, h_j, z_i, z_j = jax.jit(simclr_forward)(params, x_i, x_j)
    jax.block_until_ready((h_i, h_j, z_i, z_j))

    assert h_i.shape == (N_PER_VIEW, N_FEATURES) and h_j.shape == (N_PER_VIEW, N_FEATURES)
    assert z_i.shape == (N_PER_VIEW, PROJECTION_DIM) and z_j.shape == (N_PER_VIEW, PROJECTION_DIM)
    assert jnp.all(jnp.isfinite(h_i)) and jnp.all(jnp.isfinite(h_j))
    assert jnp.all(jnp.isfinite(z_i)) and jnp.all(jnp.isfinite(z_j))

    print("KERNEL_OK")
</pallas_src>

<mosaic_0001>
module attributes {stable_mosaic.version = 11 : i64} {
  func.func @simclr_kernel(%arg0: i32, %arg1: memref<1x128x64xbf16, #tpu.memory_space<vmem>>, %arg2: memref<64x64xbf16, #tpu.memory_space<vmem>>, %arg3: memref<1x64xf32, #tpu.memory_space<vmem>>, %arg4: memref<9x64x64xbf16, #tpu.memory_space<vmem>>, %arg5: memref<1x64xf32, #tpu.memory_space<vmem>>, %arg6: memref<9x64x64xbf16, #tpu.memory_space<vmem>>, %arg7: memref<1x64xf32, #tpu.memory_space<vmem>>, %arg8: memref<64x64xbf16, #tpu.memory_space<vmem>>, %arg9: memref<64x32xbf16, #tpu.memory_space<vmem>>, %arg10: memref<1x2x64xf32, #tpu.memory_space<vmem>>, %arg11: memref<1x2x32xf32, #tpu.memory_space<vmem>>, %arg12: memref<10x10x2x64xf32, #tpu.memory_space<vmem>>, %arg13: memref<6x6x2x64xf32, #tpu.memory_space<vmem>>, %arg14: memref<6x6x2x64xf32, #tpu.memory_space<vmem>>) attributes {dimension_semantics = [#tpu.dimension_semantics<parallel>], iteration_bounds = array<i64: 2>, scalar_prefetch = 0 : i64, scratch_operands = 3 : i64, tpu.core_type = #tpu.core_type<tc>, window_params = [{transform_indices = @transform_0, window_bounds = array<i64: 1, 128, 64>}, {pipeline_mode = #tpu.pipeline_mode<synchronous>, transform_indices = @transform_1, window_bounds = array<i64: 64, 64>}, {pipeline_mode = #tpu.pipeline_mode<synchronous>, transform_indices = @transform_2, window_bounds = array<i64: 1, 64>}, {pipeline_mode = #tpu.pipeline_mode<synchronous>, transform_indices = @transform_3, window_bounds = array<i64: 9, 64, 64>}, {pipeline_mode = #tpu.pipeline_mode<synchronous>, transform_indices = @transform_4, window_bounds = array<i64: 1, 64>}, {pipeline_mode = #tpu.pipeline_mode<synchronous>, transform_indices = @transform_5, window_bounds = array<i64: 9, 64, 64>}, {pipeline_mode = #tpu.pipeline_mode<synchronous>, transform_indices = @transform_6, window_bounds = array<i64: 1, 64>}, {pipeline_mode = #tpu.pipeline_mode<synchronous>, transform_indices = @transform_7, window_bounds = array<i64: 64, 64>}, {pipeline_mode = #tpu.pipeline_mode<synchronous>, transform_indices = @transform_8, window_bounds = array<i64: 64, 32>}, {transform_indices = @transform_9, window_bounds = array<i64: 1, 2, 64>}, {transform_indices = @transform_10, window_bounds = array<i64: 1, 2, 32>}]} {
    %cst = arith.constant 0.000000e+00 : f32
    %0 = vector.broadcast %cst : f32 to vector<10x10x2x64xf32>
    %c0 = arith.constant 0 : index
    %c0_0 = arith.constant 0 : index
    %c0_1 = arith.constant 0 : index
    %c0_2 = arith.constant 0 : index
    %1 = vector.load %arg12[%c0, %c0_0, %c0_1, %c0_2] : memref<10x10x2x64xf32, #tpu.memory_space<vmem>>, vector<10x10x2x64xf32>
    tpu.vector_store %arg12[%c0, %c0_0, %c0_1, %c0_2], %0 {strides = array<i32>} : memref<10x10x2x64xf32, #tpu.memory_space<vmem>>, vector<10x10x2x64xf32>,
    %cst_3 = arith.constant 0.000000e+00 : f32
    %2 = vector.broadcast %cst_3 : f32 to vector<6x6x2x64xf32>
    %c0_4 = arith.constant 0 : index
    %c0_5 = arith.constant 0 : index
    %c0_6 = arith.constant 0 : index
    %c0_7 = arith.constant 0 : index
    %3 = vector.load %arg13[%c0_4, %c0_5, %c0_6, %c0_7] : memref<6x6x2x64xf32, #tpu.memory_space<vmem>>, vector<6x6x2x64xf32>
    tpu.vector_store %arg13[%c0_4, %c0_5, %c0_6, %c0_7], %2 {strides = array<i32>} : memref<6x6x2x64xf32, #tpu.memory_space<vmem>>, vector<6x6x2x64xf32>,
    %cst_8 = arith.constant 0.000000e+00 : f32
    %4 = vector.broadcast %cst_8 : f32 to vector<6x6x2x64xf32>
    %c0_9 = arith.constant 0 : index
    %c0_10 = arith.constant 0 : index
    %c0_11 = arith.constant 0 : index
    %c0_12 = arith.constant 0 : index
    %5 = vector.load %arg14[%c0_9, %c0_10, %c0_11, %c0_12] : memref<6x6x2x64xf32, #tpu.memory_space<vmem>>, vector<6x6x2x64xf32>
    tpu.vector_store %arg14[%c0_9, %c0_10, %c0_11, %c0_12], %4 {strides = array<i32>} : memref<6x6x2x64xf32, #tpu.memory_space<vmem>>, vector<6x6x2x64xf32>,
    %c0_13 = arith.constant 0 : index
    %c0_14 = arith.constant 0 : index
    %c0_15 = arith.constant 0 : index
    %6 = vector.load %arg1[%c0_13, %c0_14, %c0_15] : memref<1x128x64xbf16, #tpu.memory_space<vmem>>, vector<1x128x64xbf16>
    %7 = vector.shape_cast %6 : vector<1x128x64xbf16> to vector<128x64xbf16>
    %c0_16 = arith.constant 0 : index
    %c0_17 = arith.constant 0 : index
    %8 = vector.load %arg2[%c0_16, %c0_17] : memref<64x64xbf16, #tpu.memory_space<vmem>>, vector<64x64xbf16>
    %cst_18 = arith.constant dense<0.000000e+00> : vector<128x64xf32>
    %9 = tpu.matmul %7, %8, %cst_18 {dimension_numbers = #tpu.dot_dimension_numbers<[1], [0], [0], [1], [0, 0, 1, 1], [], []>} : vector<128x64xbf16>, vector<64x64xbf16>, vector<128x64xf32> -> vector<128x64xf32>
    %c0_19 = arith.constant 0 : index
    %c0_20 = arith.constant 0 : index
    %10 = vector.load %arg3[%c0_19, %c0_20] : memref<1x64xf32, #tpu.memory_space<vmem>>, vector<1x64xf32>
    %11 = vector.broadcast %10 : vector<1x64xf32> to vector<128x64xf32>
    %12 = arith.addf %9, %11 : vector<128x64xf32>
    %cst_21 = arith.constant 0.000000e+00 : f32
    %13 = vector.broadcast %cst_21 : f32 to vector<128x64xf32>
    %14 = arith.maximumf %12, %13 : vector<128x64xf32>
    %15 = vector.shape_cast %14 : vector<128x64xf32> to vector<8x8x2x64xf32>
    %c1 = arith.constant 1 : index
    %c1_22 = arith.constant 1 : index
    %c0_23 = arith.constant 0 : index
    %c0_24 = arith.constant 0 : index
    %16 = vector.load %arg12[%c1, %c1_22, %c0_23, %c0_24] : memref<10x10x2x64xf32, #tpu.memory_space<vmem>>, vector<8x8x2x64xf32>
    tpu.vector_store %arg12[%c1, %c1_22, %c0_23, %c0_24], %15 {strides = array<i32>} : memref<10x10x2x64xf32, #tpu.memory_space<vmem>>, vector<8x8x2x64xf32>,
    %c0_25 = arith.constant 0 : index
    %c0_26 = arith.constant 0 : index
    %c0_27 = arith.constant 0 : index
    %c0_28 = arith.constant 0 : index
    %17 = vector.load %arg12[%c0_25, %c0_26, %c0_27, %c0_28] : memref<10x10x2x64xf32, #tpu.memory_space<vmem>>, vector<10x10x2x64xf32>
    %18 = vector.extract_strided_slice %17 {offsets = [0, 0, 0, 0], sizes = [1, 10, 2, 64], strides = [1, 1, 1, 1]} : vector<10x10x2x64xf32> to vector<1x10x2x64xf32>
    %19 = vector.shape_cast %18 : vector<1x10x2x64xf32> to vector<10x2x64xf32>
    %20 = vector.extract_strided_slice %17 {offsets = [1, 0, 0, 0], sizes = [1, 10, 2, 64], strides = [1, 1, 1, 1]} : vector<10x10x2x64xf32> to vector<1x10x2x64xf32>
    %21 = vector.shape_cast %20 : vector<1x10x2x64xf32> to vector<10x2x64xf32>
    %22 = arith.maximumf %19, %21 : vector<10x2x64xf32>
    %23 = vector.extract_strided_slice %17 {offsets = [2, 0, 0, 0], sizes = [1, 10, 2, 64], strides = [1, 1, 1, 1]} : vector<10x10x2x64xf32> to vector<1x10x2x64xf32>
    %24 = vector.shape_cast %23 : vector<1x10x2x64xf32> to vector<10x2x64xf32>
    %25 = arith.maximumf %22, %24 : vector<10x2x64xf32>
    %26 = vector.extract_strided_slice %25 {offsets = [0, 0, 0], sizes = [1, 2, 64], strides = [1, 1, 1]} : vector<10x2x64xf32> to vector<1x2x64xf32>
    %27 = vector.shape_cast %26 : vector<1x2x64xf32> to vector<2x64xf32>
    %28 = vector.extract_strided_slice %25 {offsets = [1, 0, 0], sizes = [1, 2, 64], strides = [1, 1, 1]} : vector<10x2x64xf32> to vector<1x2x64xf32>
    %29 = vector.shape_cast %28 : vector<1x2x64xf32> to vector<2x64xf32>
    %30 = arith.maximumf %27, %29 : vector<2x64xf32>
    %31 = vector.extract_strided_slice %25 {offsets = [2, 0, 0], sizes = [1, 2, 64], strides = [1, 1, 1]} : vector<10x2x64xf32> to vector<1x2x64xf32>
    %32 = vector.shape_cast %31 : vector<1x2x64xf32> to vector<2x64xf32>
    %33 = arith.maximumf %30, %32 : vector<2x64xf32>
    %c1_29 = arith.constant 1 : index
    %c1_30 = arith.constant 1 : index
    %c0_31 = arith.constant 0 : index
    %c0_32 = arith.constant 0 : index
    %34 = vector.load %arg13[%c1_29, %c1_30, %c0_31, %c0_32] : memref<6x6x2x64xf32, #tpu.memory_space<vmem>>, vector<1x1x2x64xf32>
    %35 = vector.shape_cast %34 : vector<1x1x2x64xf32> to vector<2x64xf32>
    %36 = vector.shape_cast %33 : vector<2x64xf32> to vector<1x1x2x64xf32>
    tpu.vector_store %arg13[%c1_29, %c1_30, %c0_31, %c0_32], %36 {strides = array<i32>} : memref<6x6x2x64xf32, #tpu.memory_space<vmem>>, vector<1x1x2x64xf32>,
    %37 = vector.extract_strided_slice %25 {offsets = [2, 0, 0], sizes = [1, 2, 64], strides = [1, 1, 1]} : vector<10x2x64xf32> to vector<1x2x64xf32>
    %38 = vector.shape_cast %37 : vector<1x2x64xf32> to vector<2x64xf32>
    %39 = vector.extract_strided_slice %25 {offsets = [3, 0, 0], sizes = [1, 2, 64], strides = [1, 1, 1]} : vector<10x2x64xf32> to vector<1x2x64xf32>
    %40 = vector.shape_cast %39 : vector<1x2x64xf32> to vector<2x64xf32>
    %41 = arith.maximumf %38, %40 : vector<2x64xf32>
    %42 = vector.extract_strided_slice %25 {offsets = [4, 0, 0], sizes = [1, 2, 64], strides = [1, 1, 1]} : vector<10x2x64xf32> to vector<1x2x64xf32>
    %43 = vector.shape_cast %42 : vector<1x2x64xf32> to vector<2x64xf32>
    %44 = arith.maximumf %41, %43 : vector<2x64xf32>
    %c1_33 = arith.constant 1 : index
    %c2 = arith.constant 2 : index
    %c0_34 = arith.constant 0 : index
    %c0_35 = arith.constant 0 : index
    %45 = vector.load %arg13[%c1_33, %c2, %c0_34, %c0_35] : memref<6x6x2x64xf32, #tpu.memory_space<vmem>>, vector<1x1x2x64xf32>
    %46 = vector.shape_cast %45 : vector<1x1x2x64xf32> to vector<2x64xf32>
    %47 = vector.shape_cast %44 : vector<2x64xf32> to vector<1x1x2x64xf32>
    tpu.vector_store %arg13[%c1_33, %c2, %c0_34, %c0_35], %47 {strides = array<i32>} : memref<6x6x2x64xf32, #tpu.memory_space<vmem>>, vector<1x1x2x64xf32>,
    %48 = vector.extract_strided_slice %25 {offsets = [4, 0, 0], sizes = [1, 2, 64], strides = [1, 1, 1]} : vector<10x2x64xf32> to vector<1x2x64xf32>
    %49 = vector.shape_cast %48 : vector<1x2x64xf32> to vector<2x64xf32>
    %50 = vector.extract_strided_slice %25 {offsets = [5, 0, 0], sizes = [1, 2, 64], strides = [1, 1, 1]} : vector<10x2x64xf32> to vector<1x2x64xf32>
    %51 = vector.shape_cast %50 : vector<1x2x64xf32> to vector<2x64xf32>
    %52 = arith.maximumf %49, %51 : vector<2x64xf32>
    %53 = vector.extract_strided_slice %25 {offsets = [6, 0, 0], sizes = [1, 2, 64], strides = [1, 1, 1]} : vector<10x2x64xf32> to vector<1x2x64xf32>
    %54 = vector.shape_cast %53 : vector<1x2x64xf32> to vector<2x64xf32>
    %55 = arith.maximumf %52, %54 : vector<2x64xf32>
    %c1_36 = arith.constant 1 : index
    %c3 = arith.constant 3 : index
    %c0_37 = arith.constant 0 : index
    %c0_38 = arith.constant 0 : index
    %56 = vector.load %arg13[%c1_36, %c3, %c0_37, %c0_38] : memref<6x6x2x64xf32, #tpu.memory_space<vmem>>, vector<1x1x2x64xf32>
    %57 = vector.shape_cast %56 : vector<1x1x2x64xf32> to vector<2x64xf32>
    %58 = vector.shape_cast %55 : vector<2x64xf32> to vector<1x1x2x64xf32>
    tpu.vector_store %arg13[%c1_36, %c3, %c0_37, %c0_38], %58 {strides = array<i32>} : memref<6x6x2x64xf32, #tpu.memory_space<vmem>>, vector<1x1x2x64xf32>,
    %59 = vector.extract_strided_slice %25 {offsets = [6, 0, 0], sizes = [1, 2, 64], strides = [1, 1, 1]} : vector<10x2x64xf32> to vector<1x2x64xf32>
    %60 = vector.shape_cast %59 : vector<1x2x64xf32> to vector<2x64xf32>
    %61 = vector.extract_strided_slice %25 {offsets = [7, 0, 0], sizes = [1, 2, 64], strides = [1, 1, 1]} : vector<10x2x64xf32> to vector<1x2x64xf32>
    %62 = vector.shape_cast %61 : vector<1x2x64xf32> to vector<2x64xf32>
    %63 = arith.maximumf %60, %62 : vector<2x64xf32>
    %64 = vector.extract_strided_slice %25 {offsets = [8, 0, 0], sizes = [1, 2, 64], strides = [1, 1, 1]} : vector<10x2x64xf32> to vector<1x2x64xf32>
    %65 = vector.shape_cast %64 : vector<1x2x64xf32> to vector<2x64xf32>
    %66 = arith.maximumf %63, %65 : vector<2x64xf32>
    %c1_39 = arith.constant 1 : index
    %c4 = arith.constant 4 : index
    %c0_40 = arith.constant 0 : index
    %c0_41 = arith.constant 0 : index
    %67 = vector.load %arg13[%c1_39, %c4, %c0_40, %c0_41] : memref<6x6x2x64xf32, #tpu.memory_space<vmem>>, vector<1x1x2x64xf32>
    %68 = vector.shape_cast %67 : vector<1x1x2x64xf32> to vector<2x64xf32>
    %69 = vector.shape_cast %66 : vector<2x64xf32> to vector<1x1x2x64xf32>
    tpu.vector_store %arg13[%c1_39, %c4, %c0_40, %c0_41], %69 {strides = array<i32>} : memref<6x6x2x64xf32, #tpu.memory_space<vmem>>, vector<1x1x2x64xf32>,
    %70 = vector.extract_strided_slice %17 {offsets = [2, 0, 0, 0], sizes = [1, 10, 2, 64], strides = [1, 1, 1, 1]} : vector<10x10x2x64xf32> to vector<1x10x2x64xf32>
    %71 = vector.shape_cast %70 : vector<1x10x2x64xf32> to vector<10x2x64xf32>
    %72 = vector.extract_strided_slice %17 {offsets = [3, 0, 0, 0], sizes = [1, 10, 2, 64], strides = [1, 1, 1, 1]} : vector<10x10x2x64xf32> to vector<1x10x2x64xf32>
    %73 = vector.shape_cast %72 : vector<1x10x2x64xf32> to vector<10x2x64xf32>
    %74 = arith.maximumf %71, %73 : vector<10x2x64xf32>
    %75 = vector.extract_strided_slice %17 {offsets = [4, 0, 0, 0], sizes = [1, 10, 2, 64], strides = [1, 1, 1, 1]} : vector<10x10x2x64xf32> to vector<1x10x2x64xf32>
    %76 = vector.shape_cast %75 : vector<1x10x2x64xf32> to vector<10x2x64xf32>
    %77 = arith.maximumf %74, %76 : vector<10x2x64xf32>
    %78 = vector.extract_strided_slice %77 {offsets = [0, 0, 0], sizes = [1, 2, 64], strides = [1, 1, 1]} : vector<10x2x64xf32> to vector<1x2x64xf32>
    %79 = vector.shape_cast %78 : vector<1x2x64xf32> to vector<2x64xf32>
    %80 = vector.extract_strided_slice %77 {offsets = [1, 0, 0], sizes = [1, 2, 64], strides = [1, 1, 1]} : vector<10x2x64xf32> to vector<1x2x64xf32>
    %81 = vector.shape_cast %80 : vector<1x2x64xf32> to vector<2x64xf32>
    %82 = arith.maximumf %79, %81 : vector<2x64xf32>
    %83 = vector.extract_strided_slice %77 {offsets = [2, 0, 0], sizes = [1, 2, 64], strides = [1, 1, 1]} : vector<10x2x64xf32> to vector<1x2x64xf32>
    %84 = vector.shape_cast %83 : vector<1x2x64xf32> to vector<2x64xf32>
    %85 = arith.maximumf %82, %84 : vector<2x64xf32>
    %c2_42 = arith.constant 2 : index
    %c1_43 = arith.constant 1 : index
    %c0_44 = arith.constant 0 : index
    %c0_45 = arith.constant 0 : index
    %86 = vector.load %arg13[%c2_42, %c1_43, %c0_44, %c0_45] : memref<6x6x2x64xf32, #tpu.memory_space<vmem>>, vector<1x1x2x64xf32>
    %87 = vector.shape_cast %86 : vector<1x1x2x64xf32> to vector<2x64xf32>
    %88 = vector.shape_cast %85 : vector<2x64xf32> to vector<1x1x2x64xf32>
    tpu.vector_store %arg13[%c2_42, %c1_43, %c0_44, %c0_45], %88 {strides = array<i32>} : memref<6x6x2x64xf32, #tpu.memory_space<vmem>>, vector<1x1x2x64xf32>,
    %89 = vector.extract_strided_slice %77 {offsets = [2, 0, 0], sizes = [1, 2, 64], strides = [1, 1, 1]} : vector<10x2x64xf32> to vector<1x2x64xf32>
    %90 = vector.shape_cast %89 : vector<1x2x64xf32> to vector<2x64xf32>
    %91 = vector.extract_strided_slice %77 {offsets = [3, 0, 0], sizes = [1, 2, 64], strides = [1, 1, 1]} : vector<10x2x64xf32> to vector<1x2x64xf32>
    %92 = vector.shape_cast %91 : vector<1x2x64xf32> to vector<2x64xf32>
    %93 = arith.maximumf %90, %92 : vector<2x64xf32>
    %94 = vector.extract_strided_slice %77 {offsets = [4, 0, 0], sizes = [1, 2, 64], strides = [1, 1, 1]} : vector<10x2x64xf32> to vector<1x2x64xf32>
    %95 = vector.shape_cast %94 : vector<1x2x64xf32> to vector<2x64xf32>
    %96 = arith.maximumf %93, %95 : vector<2x64xf32>
    %c2_46 = arith.constant 2 : index
    %c2_47 = arith.constant 2 : index
    %c0_48 = arith.constant 0 : index
    %c0_49 = arith.constant 0 : index
    %97 = vector.load %arg13[%c2_46, %c2_47, %c0_48, %c0_49] : memref<6x6x2x64xf32, #tpu.memory_space<vmem>>, vector<1x1x2x64xf32>
    %98 = vector.shape_cast %97 : vector<1x1x2x64xf32> to vector<2x64xf32>
    %99 = vector.shape_cast %96 : vector<2x64xf32> to vector<1x1x2x64xf32>
    tpu.vector_store %arg13[%c2_46, %c2_47, %c0_48, %c0_49], %99 {strides = array<i32>} : memref<6x6x2x64xf32, #tpu.memory_space<vmem>>, vector<1x1x2x64xf32>,
    %100 = vector.extract_strided_slice %77 {offsets = [4, 0, 0], sizes = [1, 2, 64], strides = [1, 1, 1]} : vector<10x2x64xf32> to vector<1x2x64xf32>
    %101 = vector.shape_cast %100 : vector<1x2x64xf32> to vector<2x64xf32>
    %102 = vector.extract_strided_slice %77 {offsets = [5, 0, 0], sizes = [1, 2, 64], strides = [1, 1, 1]} : vector<10x2x64xf32> to vector<1x2x64xf32>
    %103 = vector.shape_cast %102 : vector<1x2x64xf32> to vector<2x64xf32>
    %104 = arith.maximumf %101, %103 : vector<2x64xf32>
    %105 = vector.extract_strided_slice %77 {offsets = [6, 0, 0], sizes = [1, 2, 64], strides = [1, 1, 1]} : vector<10x2x64xf32> to vector<1x2x64xf32>
    %106 = vector.shape_cast %105 : vector<1x2x64xf32> to vector<2x64xf32>
    %107 = arith.maximumf %104, %106 : vector<2x64xf32>
    %c2_50 = arith.constant 2 : index
    %c3_51 = arith.constant 3 : index
    %c0_52 = arith.constant 0 : index
    %c0_53 = arith.constant 0 : index
    %108 = vector.load %arg13[%c2_50, %c3_51, %c0_52, %c0_53] : memref<6x6x2x64xf32, #tpu.memory_space<vmem>>, vector<1x1x2x64xf32>
    %109 = vector.shape_cast %108 : vector<1x1x2x64xf32> to vector<2x64xf32>
    %110 = vector.shape_cast %107 : vector<2x64xf32> to vector<1x1x2x64xf32>
    tpu.vector_store %arg13[%c2_50, %c3_51, %c0_52, %c0_53], %110 {strides = array<i32>} : memref<6x6x2x64xf32, #tpu.memory_space<vmem>>, vector<1x1x2x64xf32>,
    %111 = vector.extract_strided_slice %77 {offsets = [6, 0, 0], sizes = [1, 2, 64], strides = [1, 1, 1]} : vector<10x2x64xf32> to vector<1x2x64xf32>
    %112 = vector.shape_cast %111 : vector<1x2x64xf32> to vector<2x64xf32>
    %113 = vector.extract_strided_slice %77 {offsets = [7, 0, 0], sizes = [1, 2, 64], strides = [1, 1, 1]} : vector<10x2x64xf32> to vector<1x2x64xf32>
    %114 = vector.shape_cast %113 : vector<1x2x64xf32> to vector<2x64xf32>
    %115 = arith.maximumf %112, %114 : vector<2x64xf32>
    %116 = vector.extract_strided_slice %77 {offsets = [8, 0, 0], sizes = [1, 2, 64], strides = [1, 1, 1]} : vector<10x2x64xf32> to vector<1x2x64xf32>
    %117 = vector.shape_cast %116 : vector<1x2x64xf32> to vector<2x64xf32>
    %118 = arith.maximumf %115, %117 : vector<2x64xf32>
    %c2_54 = arith.constant 2 : index
    %c4_55 = arith.constant 4 : index
    %c0_56 = arith.constant 0 : index
    %c0_57 = arith.constant 0 : index
    %119 = vector.load %arg13[%c2_54, %c4_55, %c0_56, %c0_57] : memref<6x6x2x64xf32, #tpu.memory_space<vmem>>, vector<1x1x2x64xf32>
    %120 = vector.shape_cast %119 : vector<1x1x2x64xf32> to vector<2x64xf32>
    %121 = vector.shape_cast %118 : vector<2x64xf32> to vector<1x1x2x64xf32>
    tpu.vector_store %arg13[%c2_54, %c4_55, %c0_56, %c0_57], %121 {strides = array<i32>} : memref<6x6x2x64xf32, #tpu.memory_space<vmem>>, vector<1x1x2x64xf32>,
    %122 = vector.extract_strided_slice %17 {offsets = [4, 0, 0, 0], sizes = [1, 10, 2, 64], strides = [1, 1, 1, 1]} : vector<10x10x2x64xf32> to vector<1x10x2x64xf32>
    %123 = vector.shape_cast %122 : vector<1x10x2x64xf32> to vector<10x2x64xf32>
    %124 = vector.extract_strided_slice %17 {offsets = [5, 0, 0, 0], sizes = [1, 10, 2, 64], strides = [1, 1, 1, 1]} : vector<10x10x2x64xf32> to vector<1x10x2x64xf32>
    %125 = vector.shape_cast %124 : vector<1x10x2x64xf32> to vector<10x2x64xf32>
    %126 = arith.maximumf %123, %125 : vector<10x2x64xf32>
    %127 = vector.extract_strided_slice %17 {offsets = [6, 0, 0, 0], sizes = [1, 10, 2, 64], strides = [1, 1, 1, 1]} : vector<10x10x2x64xf32> to vector<1x10x2x64xf32>
    %128 = vector.shape_cast %127 : vector<1x10x2x64xf32> to vector<10x2x64xf32>
    %129 = arith.maximumf %126, %128 : vector<10x2x64xf32>
    %130 = vector.extract_strided_slice %129 {offsets = [0, 0, 0], sizes = [1, 2, 64], strides = [1, 1, 1]} : vector<10x2x64xf32> to vector<1x2x64xf32>
    %131 = vector.shape_cast %130 : vector<1x2x64xf32> to vector<2x64xf32>
    %132 = vector.extract_strided_slice %129 {offsets = [1, 0, 0], sizes = [1, 2, 64], strides = [1, 1, 1]} : vector<10x2x64xf32> to vector<1x2x64xf32>
    %133 = vector.shape_cast %132 : vector<1x2x64xf32> to vector<2x64xf32>
    %134 = arith.maximumf %131, %133 : vector<2x64xf32>
    %135 = vector.extract_strided_slice %129 {offsets = [2, 0, 0], sizes = [1, 2, 64], strides = [1, 1, 1]} : vector<10x2x64xf32> to vector<1x2x64xf32>
    %136 = vector.shape_cast %135 : vector<1x2x64xf32> to vector<2x64xf32>
    %137 = arith.maximumf %134, %136 : vector<2x64xf32>
    %c3_58 = arith.constant 3 : index
    %c1_59 = arith.constant 1 : index
    %c0_60 = arith.constant 0 : index
    %c0_61 = arith.constant 0 : index
    %138 = vector.load %arg13[%c3_58, %c1_59, %c0_60, %c0_61] : memref<6x6x2x64xf32, #tpu.memory_space<vmem>>, vector<1x1x2x64xf32>
    %139 = vector.shape_cast %138 : vector<1x1x2x64xf32> to vector<2x64xf32>
    %140 = vector.shape_cast %137 : vector<2x64xf32> to vector<1x1x2x64xf32>
    tpu.vector_store %arg13[%c3_58, %c1_59, %c0_60, %c0_61], %140 {strides = array<i32>} : memref<6x6x2x64xf32, #tpu.memory_space<vmem>>, vector<1x1x2x64xf32>,
    %141 = vector.extract_strided_slice %129 {offsets = [2, 0, 0], sizes = [1, 2, 64], strides = [1, 1, 1]} : vector<10x2x64xf32> to vector<1x2x64xf32>
    %142 = vector.shape_cast %141 : vector<1x2x64xf32> to vector<2x64xf32>
    %143 = vector.extract_strided_slice %129 {offsets = [3, 0, 0], sizes = [1, 2, 64], strides = [1, 1, 1]} : vector<10x2x64xf32> to vector<1x2x64xf32>
    %144 = vector.shape_cast %143 : vector<1x2x64xf32> to vector<2x64xf32>
    %145 = arith.maximumf %142, %144 : vector<2x64xf32>
    %146 = vector.extract_strided_slice %129 {offsets = [4, 0, 0], sizes = [1, 2, 64], strides = [1, 1, 1]} : vector<10x2x64xf32> to vector<1x2x64xf32>
    %147 = vector.shape_cast %146 : vector<1x2x64xf32> to vector<2x64xf32>
    %148 = arith.maximumf %145, %147 : vector<2x64xf32>
    %c3_62 = arith.constant 3 : index
    %c2_63 = arith.constant 2 : index
    %c0_64 = arith.constant 0 : index
    %c0_65 = arith.constant 0 : index
    %149 = vector.load %arg13[%c3_62, %c2_63, %c0_64, %c0_65] : memref<6x6x2x64xf32, #tpu.memory_space<vmem>>, vector<1x1x2x64xf32>
    %150 = vector.shape_cast %149 : vector<1x1x2x64xf32> to vector<2x64xf32>
    %151 = vector.shape_cast %148 : vector<2x64xf32> to vector<1x1x2x64xf32>
    tpu.vector_store %arg13[%c3_62, %c2_63, %c0_64, %c0_65], %151 {strides = array<i32>} : memref<6x6x2x64xf32, #tpu.memory_space<vmem>>, vector<1x1x2x64xf32>,
    %152 = vector.extract_strided_slice %129 {offsets = [4, 0, 0], sizes = [1, 2, 64], strides = [1, 1, 1]} : vector<10x2x64xf32> to vector<1x2x64xf32>
    %153 = vector.shape_cast %152 : vector<1x2x64xf32> to vector<2x64xf32>
    %154 = vector.extract_strided_slice %129 {offsets = [5, 0, 0], sizes = [1, 2, 64], strides = [1, 1, 1]} : vector<10x2x64xf32> to vector<1x2x64xf32>
    %155 = vector.shape_cast %154 : vector<1x2x64xf32> to vector<2x64xf32>
    %156 = arith.maximumf %153, %155 : vector<2x64xf32>
    %157 = vector.extract_strided_slice %129 {offsets = [6, 0, 0], sizes = [1, 2, 64], strides = [1, 1, 1]} : vector<10x2x64xf32> to vector<1x2x64xf32>
    %158 = vector.shape_cast %157 : vector<1x2x64xf32> to vector<2x64xf32>
    %159 = arith.maximumf %156, %158 : vector<2x64xf32>
    %c3_66 = arith.constant 3 : index
    %c3_67 = arith.constant 3 : index
    %c0_68 = arith.constant 0 : index
    %c0_69 = arith.constant 0 : index
    %160 = vector.load %arg13[%c3_66, %c3_67, %c0_68, %c0_69] : memref<6x6x2x64xf32, #tpu.memory_space<vmem>>, vector<1x1x2x64xf32>
    %161 = vector.shape_cast %160 : vector<1x1x2x64xf32> to vector<2x64xf32>
    %162 = vector.shape_cast %159 : vector<2x64xf32> to vector<1x1x2x64xf32>
    tpu.vector_store %arg13[%c3_66, %c3_67, %c0_68, %c0_69], %162 {strides = array<i32>} : memref<6x6x2x64xf32, #tpu.memory_space<vmem>>, vector<1x1x2x64xf32>,
    %163 = vector.extract_strided_slice %129 {offsets = [6, 0, 0], sizes = [1, 2, 64], strides = [1, 1, 1]} : vector<10x2x64xf32> to vector<1x2x64xf32>
    %164 = vector.shape_cast %163 : vector<1x2x64xf32> to vector<2x64xf32>
    %165 = vector.extract_strided_slice %129 {offsets = [7, 0, 0], sizes = [1, 2, 64], strides = [1, 1, 1]} : vector<10x2x64xf32> to vector<1x2x64xf32>
    %166 = vector.shape_cast %165 : vector<1x2x64xf32> to vector<2x64xf32>
    %167 = arith.maximumf %164, %166 : vector<2x64xf32>
    %168 = vector.extract_strided_slice %129 {offsets = [8, 0, 0], sizes = [1, 2, 64], strides = [1, 1, 1]} : vector<10x2x64xf32> to vector<1x2x64xf32>
    %169 = vector.shape_cast %168 : vector<1x2x64xf32> to vector<2x64xf32>
    %170 = arith.maximumf %167, %169 : vector<2x64xf32>
    %c3_70 = arith.constant 3 : index
    %c4_71 = arith.constant 4 : index
    %c0_72 = arith.constant 0 : index
    %c0_73 = arith.constant 0 : index
    %171 = vector.load %arg13[%c3_70, %c4_71, %c0_72, %c0_73] : memref<6x6x2x64xf32, #tpu.memory_space<vmem>>, vector<1x1x2x64xf32>
    %172 = vector.shape_cast %171 : vector<1x1x2x64xf32> to vector<2x64xf32>
    %173 = vector.shape_cast %170 : vector<2x64xf32> to vector<1x1x2x64xf32>
    tpu.vector_store %arg13[%c3_70, %c4_71, %c0_72, %c0_73], %173 {strides = array<i32>} : memref<6x6x2x64xf32, #tpu.memory_space<vmem>>, vector<1x1x2x64xf32>,
    %174 = vector.extract_strided_slice %17 {offsets = [6, 0, 0, 0], sizes = [1, 10, 2, 64], strides = [1, 1, 1, 1]} : vector<10x10x2x64xf32> to vector<1x10x2x64xf32>
    %175 = vector.shape_cast %174 : vector<1x10x2x64xf32> to vector<10x2x64xf32>
    %176 = vector.extract_strided_slice %17 {offsets = [7, 0, 0, 0], sizes = [1, 10, 2, 64], strides = [1, 1, 1, 1]} : vector<10x10x2x64xf32> to vector<1x10x2x64xf32>
    %177 = vector.shape_cast %176 : vector<1x10x2x64xf32> to vector<10x2x64xf32>
    %178 = arith.maximumf %175, %177 : vector<10x2x64xf32>
    %179 = vector.extract_strided_slice %17 {offsets = [8, 0, 0, 0], sizes = [1, 10, 2, 64], strides = [1, 1, 1, 1]} : vector<10x10x2x64xf32> to vector<1x10x2x64xf32>
    %180 = vector.shape_cast %179 : vector<1x10x2x64xf32> to vector<10x2x64xf32>
    %181 = arith.maximumf %178, %180 : vector<10x2x64xf32>
    %182 = vector.extract_strided_slice %181 {offsets = [0, 0, 0], sizes = [1, 2, 64], strides = [1, 1, 1]} : vector<10x2x64xf32> to vector<1x2x64xf32>
    %183 = vector.shape_cast %182 : vector<1x2x64xf32> to vector<2x64xf32>
    %184 = vector.extract_strided_slice %181 {offsets = [1, 0, 0], sizes = [1, 2, 64], strides = [1, 1, 1]} : vector<10x2x64xf32> to vector<1x2x64xf32>
    %185 = vector.shape_cast %184 : vector<1x2x64xf32> to vector<2x64xf32>
    %186 = arith.maximumf %183, %185 : vector<2x64xf32>
    %187 = vector.extract_strided_slice %181 {offsets = [2, 0, 0], sizes = [1, 2, 64], strides = [1, 1, 1]} : vector<10x2x64xf32> to vector<1x2x64xf32>
    %188 = vector.shape_cast %187 : vector<1x2x64xf32> to vector<2x64xf32>
    %189 = arith.maximumf %186, %188 : vector<2x64xf32>
    %c4_74 = arith.constant 4 : index
    %c1_75 = arith.constant 1 : index
    %c0_76 = arith.constant 0 : index
    %c0_77 = arith.constant 0 : index
    %190 = vector.load %arg13[%c4_74, %c1_75, %c0_76, %c0_77] : memref<6x6x2x64xf32, #tpu.memory_space<vmem>>, vector<1x1x2x64xf32>
    %191 = vector.shape_cast %190 : vector<1x1x2x64xf32> to vector<2x64xf32>
    %192 = vector.shape_cast %189 : vector<2x64xf32> to vector<1x1x2x64xf32>
    tpu.vector_store %arg13[%c4_74, %c1_75, %c0_76, %c0_77], %192 {strides = array<i32>} : memref<6x6x2x64xf32, #tpu.memory_space<vmem>>, vector<1x1x2x64xf32>,
    %193 = vector.extract_strided_slice %181 {offsets = [2, 0, 0], sizes = [1, 2, 64], strides = [1, 1, 1]} : vector<10x2x64xf32> to vector<1x2x64xf32>
    %194 = vector.shape_cast %193 : vector<1x2x64xf32> to vector<2x64xf32>
    %195 = vector.extract_strided_slice %181 {offsets = [3, 0, 0], sizes = [1, 2, 64], strides = [1, 1, 1]} : vector<10x2x64xf32> to vector<1x2x64xf32>
    %196 = vector.shape_cast %195 : vector<1x2x64xf32> to vector<2x64xf32>
    %197 = arith.maximumf %194, %196 : vector<2x64xf32>
    %198 = vector.extract_strided_slice %181 {offsets = [4, 0, 0], sizes = [1, 2, 64], strides = [1, 1, 1]} : vector<10x2x64xf32> to vector<1x2x64xf32>
    %199 = vector.shape_cast %198 : vector<1x2x64xf32> to vector<2x64xf32>
    %200 = arith.maximumf %197, %199 : vector<2x64xf32>
    %c4_78 = arith.constant 4 : index
    %c2_79 = arith.constant 2 : index
    %c0_80 = arith.constant 0 : index
    %c0_81 = arith.constant 0 : index
    %201 = vector.load %arg13[%c4_78, %c2_79, %c0_80, %c0_81] : memref<6x6x2x64xf32, #tpu.memory_space<vmem>>, vector<1x1x2x64xf32>
    %202 = vector.shape_cast %201 : vector<1x1x2x64xf32> to vector<2x64xf32>
    %203 = vector.shape_cast %200 : vector<2x64xf32> to vector<1x1x2x64xf32>
    tpu.vector_store %arg13[%c4_78, %c2_79, %c0_80, %c0_81], %203 {strides = array<i32>} : memref<6x6x2x64xf32, #tpu.memory_space<vmem>>, vector<1x1x2x64xf32>,
    %204 = vector.extract_strided_slice %181 {offsets = [4, 0, 0], sizes = [1, 2, 64], strides = [1, 1, 1]} : vector<10x2x64xf32> to vector<1x2x64xf32>
    %205 = vector.shape_cast %204 : vector<1x2x64xf32> to vector<2x64xf32>
    %206 = vector.extract_strided_slice %181 {offsets = [5, 0, 0], sizes = [1, 2, 64], strides = [1, 1, 1]} : vector<10x2x64xf32> to vector<1x2x64xf32>
    %207 = vector.shape_cast %206 : vector<1x2x64xf32> to vector<2x64xf32>
    %208 = arith.maximumf %205, %207 : vector<2x64xf32>
    %209 = vector.extract_strided_slice %181 {offsets = [6, 0, 0], sizes = [1, 2, 64], strides = [1, 1, 1]} : vector<10x2x64xf32> to vector<1x2x64xf32>
    %210 = vector.shape_cast %209 : vector<1x2x64xf32> to vector<2x64xf32>
    %211 = arith.maximumf %208, %210 : vector<2x64xf32>
    %c4_82 = arith.constant 4 : index
    %c3_83 = arith.constant 3 : index
    %c0_84 = arith.constant 0 : index
    %c0_85 = arith.constant 0 : index
    %212 = vector.load %arg13[%c4_82, %c3_83, %c0_84, %c0_85] : memref<6x6x2x64xf32, #tpu.memory_space<vmem>>, vector<1x1x2x64xf32>
    %213 = vector.shape_cast %212 : vector<1x1x2x64xf32> to vector<2x64xf32>
    %214 = vector.shape_cast %211 : vector<2x64xf32> to vector<1x1x2x64xf32>
    tpu.vector_store %arg13[%c4_82, %c3_83, %c0_84, %c0_85], %214 {strides = array<i32>} : memref<6x6x2x64xf32, #tpu.memory_space<vmem>>, vector<1x1x2x64xf32>,
    %215 = vector.extract_strided_slice %181 {offsets = [6, 0, 0], sizes = [1, 2, 64], strides = [1, 1, 1]} : vector<10x2x64xf32> to vector<1x2x64xf32>
    %216 = vector.shape_cast %215 : vector<1x2x64xf32> to vector<2x64xf32>
    %217 = vector.extract_strided_slice %181 {offsets = [7, 0, 0], sizes = [1, 2, 64], strides = [1, 1, 1]} : vector<10x2x64xf32> to vector<1x2x64xf32>
    %218 = vector.shape_cast %217 : vector<1x2x64xf32> to vector<2x64xf32>
    %219 = arith.maximumf %216, %218 : vector<2x64xf32>
    %220 = vector.extract_strided_slice %181 {offsets = [8, 0, 0], sizes = [1, 2, 64], strides = [1, 1, 1]} : vector<10x2x64xf32> to vector<1x2x64xf32>
    %221 = vector.shape_cast %220 : vector<1x2x64xf32> to vector<2x64xf32>
    %222 = arith.maximumf %219, %221 : vector<2x64xf32>
    %c4_86 = arith.constant 4 : index
    %c4_87 = arith.constant 4 : index
    %c0_88 = arith.constant 0 : index
    %c0_89 = arith.constant 0 : index
    %223 = vector.load %arg13[%c4_86, %c4_87, %c0_88, %c0_89] : memref<6x6x2x64xf32, #tpu.memory_space<vmem>>, vector<1x1x2x64xf32>
    %224 = vector.shape_cast %223 : vector<1x1x2x64xf32> to vector<2x64xf32>
    %225 = vector.shape_cast %222 : vector<2x64xf32> to vector<1x1x2x64xf32>
    tpu.vector_store %arg13[%c4_86, %c4_87, %c0_88, %c0_89], %225 {strides = array<i32>} : memref<6x6x2x64xf32, #tpu.memory_space<vmem>>, vector<1x1x2x64xf32>,
    %c0_90 = arith.constant 0 : index
    %c0_91 = arith.constant 0 : index
    %c0_92 = arith.constant 0 : index
    %c0_93 = arith.constant 0 : index
    %226 = vector.load %arg13[%c0_90, %c0_91, %c0_92, %c0_93] : memref<6x6x2x64xf32, #tpu.memory_space<vmem>>, vector<6x6x2x64xf32>
    %cst_94 = arith.constant 0.000000e+00 : f32
    %227 = vector.broadcast %cst_94 : f32 to vector<32x64xf32>
    %228 = vector.extract_strided_slice %226 {offsets = [0, 0, 0, 0], sizes = [4, 4, 2, 64], strides = [1, 1, 1, 1]} : vector<6x6x2x64xf32> to vector<4x4x2x64xf32>
    %229 = vector.shape_cast %228 : vector<4x4x2x64xf32> to vector<32x64xf32>
    %230 = arith.truncf %229 : vector<32x64xf32> to vector<32x64xbf16>
    %c0_95 = arith.constant 0 : index
    %c0_96 = arith.constant 0 : index
    %c0_97 = arith.constant 0 : index
    %231 = vector.load %arg4[%c0_95, %c0_96, %c0_97] : memref<9x64x64xbf16, #tpu.memory_space<vmem>>, vector<1x64x64xbf16>
    %232 = vector.shape_cast %231 : vector<1x64x64xbf16> to vector<64x64xbf16>
    %cst_98 = arith.constant dense<0.000000e+00> : vector<32x64xf32>
    %233 = tpu.matmul %230, %232, %cst_98 {dimension_numbers = #tpu.dot_dimension_numbers<[1], [0], [0], [1], [0, 0, 1, 1], [], []>} : vector<32x64xbf16>, vector<64x64xbf16>, vector<32x64xf32> -> vector<32x64xf32>
    %234 = arith.addf %227, %233 : vector<32x64xf32>
    %235 = vector.extract_strided_slice %226 {offsets = [0, 1, 0, 0], sizes = [4, 4, 2, 64], strides = [1, 1, 1, 1]} : vector<6x6x2x64xf32> to vector<4x4x2x64xf32>
    %236 = vector.shape_cast %235 : vector<4x4x2x64xf32> to vector<32x64xf32>
    %237 = arith.truncf %236 : vector<32x64xf32> to vector<32x64xbf16>
    %c1_99 = arith.constant 1 : index
    %c0_100 = arith.constant 0 : index
    %c0_101 = arith.constant 0 : index
    %238 = vector.load %arg4[%c1_99, %c0_100, %c0_101] : memref<9x64x64xbf16, #tpu.memory_space<vmem>>, vector<1x64x64xbf16>
    %239 = vector.shape_cast %238 : vector<1x64x64xbf16> to vector<64x64xbf16>
    %cst_102 = arith.constant dense<0.000000e+00> : vector<32x64xf32>
    %240 = tpu.matmul %237, %239, %cst_102 {dimension_numbers = #tpu.dot_dimension_numbers<[1], [0], [0], [1], [0, 0, 1, 1], [], []>} : vector<32x64xbf16>, vector<64x64xbf16>, vector<32x64xf32> -> vector<32x64xf32>
    %241 = arith.addf %234, %240 : vector<32x64xf32>
    %242 = vector.extract_strided_slice %226 {offsets = [0, 2, 0, 0], sizes = [4, 4, 2, 64], strides = [1, 1, 1, 1]} : vector<6x6x2x64xf32> to vector<4x4x2x64xf32>
    %243 = vector.shape_cast %242 : vector<4x4x2x64xf32> to vector<32x64xf32>
    %244 = arith.truncf %243 : vector<32x64xf32> to vector<32x64xbf16>
    %c2_103 = arith.constant 2 : index
    %c0_104 = arith.constant 0 : index
    %c0_105 = arith.constant 0 : index
    %245 = vector.load %arg4[%c2_103, %c0_104, %c0_105] : memref<9x64x64xbf16, #tpu.memory_space<vmem>>, vector<1x64x64xbf16>
    %246 = vector.shape_cast %245 : vector<1x64x64xbf16> to vector<64x64xbf16>
    %cst_106 = arith.constant dense<0.000000e+00> : vector<32x64xf32>
    %247 = tpu.matmul %244, %246, %cst_106 {dimension_numbers = #tpu.dot_dimension_numbers<[1], [0], [0], [1], [0, 0, 1, 1], [], []>} : vector<32x64xbf16>, vector<64x64xbf16>, vector<32x64xf32> -> vector<32x64xf32>
    %248 = arith.addf %241, %247 : vector<32x64xf32>
    %249 = vector.extract_strided_slice %226 {offsets = [1, 0, 0, 0], sizes = [4, 4, 2, 64], strides = [1, 1, 1, 1]} : vector<6x6x2x64xf32> to vector<4x4x2x64xf32>
    %250 = vector.shape_cast %249 : vector<4x4x2x64xf32> to vector<32x64xf32>
    %251 = arith.truncf %250 : vector<32x64xf32> to vector<32x64xbf16>
    %c3_107 = arith.constant 3 : index
    %c0_108 = arith.constant 0 : index
    %c0_109 = arith.constant 0 : index
    %252 = vector.load %arg4[%c3_107, %c0_108, %c0_109] : memref<9x64x64xbf16, #tpu.memory_space<vmem>>, vector<1x64x64xbf16>
    %253 = vector.shape_cast %252 : vector<1x64x64xbf16> to vector<64x64xbf16>
    %cst_110 = arith.constant dense<0.000000e+00> : vector<32x64xf32>
    %254 = tpu.matmul %251, %253, %cst_110 {dimension_numbers = #tpu.dot_dimension_numbers<[1], [0], [0], [1], [0, 0, 1, 1], [], []>} : vector<32x64xbf16>, vector<64x64xbf16>, vector<32x64xf32> -> vector<32x64xf32>
    %255 = arith.addf %248, %254 : vector<32x64xf32>
    %256 = vector.extract_strided_slice %226 {offsets = [1, 1, 0, 0], sizes = [4, 4, 2, 64], strides = [1, 1, 1, 1]} : vector<6x6x2x64xf32> to vector<4x4x2x64xf32>
    %257 = vector.shape_cast %256 : vector<4x4x2x64xf32> to vector<32x64xf32>
    %258 = arith.truncf %257 : vector<32x64xf32> to vector<32x64xbf16>
    %c4_111 = arith.constant 4 : index
    %c0_112 = arith.constant 0 : index
    %c0_113 = arith.constant 0 : index
    %259 = vector.load %arg4[%c4_111, %c0_112, %c0_113] : memref<9x64x64xbf16, #tpu.memory_space<vmem>>, vector<1x64x64xbf16>
    %260 = vector.shape_cast %259 : vector<1x64x64xbf16> to vector<64x64xbf16>
    %cst_114 = arith.constant dense<0.000000e+00> : vector<32x64xf32>
    %261 = tpu.matmul %258, %260, %cst_114 {dimension_numbers = #tpu.dot_dimension_numbers<[1], [0], [0], [1], [0, 0, 1, 1], [], []>} : vector<32x64xbf16>, vector<64x64xbf16>, vector<32x64xf32> -> vector<32x64xf32>
    %262 = arith.addf %255, %261 : vector<32x64xf32>
    %263 = vector.extract_strided_slice %226 {offsets = [1, 2, 0, 0], sizes = [4, 4, 2, 64], strides = [1, 1, 1, 1]} : vector<6x6x2x64xf32> to vector<4x4x2x64xf32>
    %264 = vector.shape_cast %263 : vector<4x4x2x64xf32> to vector<32x64xf32>
    %265 = arith.truncf %264 : vector<32x64xf32> to vector<32x64xbf16>
    %c5 = arith.constant 5 : index
    %c0_115 = arith.constant 0 : index
    %c0_116 = arith.constant 0 : index
    %266 = vector.load %arg4[%c5, %c0_115, %c0_116] : memref<9x64x64xbf16, #tpu.memory_space<vmem>>, vector<1x64x64xbf16>
    %267 = vector.shape_cast %266 : vector<1x64x64xbf16> to vector<64x64xbf16>
    %cst_117 = arith.constant dense<0.000000e+00> : vector<32x64xf32>
    %268 = tpu.matmul %265, %267, %cst_117 {dimension_numbers = #tpu.dot_dimension_numbers<[1], [0], [0], [1], [0, 0, 1, 1], [], []>} : vector<32x64xbf16>, vector<64x64xbf16>, vector<32x64xf32> -> vector<32x64xf32>
    %269 = arith.addf %262, %268 : vector<32x64xf32>
    %270 = vector.extract_strided_slice %226 {offsets = [2, 0, 0, 0], sizes = [4, 4, 2, 64], strides = [1, 1, 1, 1]} : vector<6x6x2x64xf32> to vector<4x4x2x64xf32>
    %271 = vector.shape_cast %270 : vector<4x4x2x64xf32> to vector<32x64xf32>
    %272 = arith.truncf %271 : vector<32x64xf32> to vector<32x64xbf16>
    %c6 = arith.constant 6 : index
    %c0_118 = arith.constant 0 : index
    %c0_119 = arith.constant 0 : index
    %273 = vector.load %arg4[%c6, %c0_118, %c0_119] : memref<9x64x64xbf16, #tpu.memory_space<vmem>>, vector<1x64x64xbf16>
    %274 = vector.shape_cast %273 : vector<1x64x64xbf16> to vector<64x64xbf16>
    %cst_120 = arith.constant dense<0.000000e+00> : vector<32x64xf32>
    %275 = tpu.matmul %272, %274, %cst_120 {dimension_numbers = #tpu.dot_dimension_numbers<[1], [0], [0], [1], [0, 0, 1, 1], [], []>} : vector<32x64xbf16>, vector<64x64xbf16>, vector<32x64xf32> -> vector<32x64xf32>
    %276 = arith.addf %269, %275 : vector<32x64xf32>
    %277 = vector.extract_strided_slice %226 {offsets = [2, 1, 0, 0], sizes = [4, 4, 2, 64], strides = [1, 1, 1, 1]} : vector<6x6x2x64xf32> to vector<4x4x2x64xf32>
    %278 = vector.shape_cast %277 : vector<4x4x2x64xf32> to vector<32x64xf32>
    %279 = arith.truncf %278 : vector<32x64xf32> to vector<32x64xbf16>
    %c7 = arith.constant 7 : index
    %c0_121 = arith.constant 0 : index
    %c0_122 = arith.constant 0 : index
    %280 = vector.load %arg4[%c7, %c0_121, %c0_122] : memref<9x64x64xbf16, #tpu.memory_space<vmem>>, vector<1x64x64xbf16>
    %281 = vector.shape_cast %280 : vector<1x64x64xbf16> to vector<64x64xbf16>
    %cst_123 = arith.constant dense<0.000000e+00> : vector<32x64xf32>
    %282 = tpu.matmul %279, %281, %cst_123 {dimension_numbers = #tpu.dot_dimension_numbers<[1], [0], [0], [1], [0, 0, 1, 1], [], []>} : vector<32x64xbf16>, vector<64x64xbf16>, vector<32x64xf32> -> vector<32x64xf32>
    %283 = arith.addf %276, %282 : vector<32x64xf32>
    %284 = vector.extract_strided_slice %226 {offsets = [2, 2, 0, 0], sizes = [4, 4, 2, 64], strides = [1, 1, 1, 1]} : vector<6x6x2x64xf32> to vector<4x4x2x64xf32>
    %285 = vector.shape_cast %284 : vector<4x4x2x64xf32> to vector<32x64xf32>
    %286 = arith.truncf %285 : vector<32x64xf32> to vector<32x64xbf16>
    %c8 = arith.constant 8 : index
    %c0_124 = arith.constant 0 : index
    %c0_125 = arith.constant 0 : index
    %287 = vector.load %arg4[%c8, %c0_124, %c0_125] : memref<9x64x64xbf16, #tpu.memory_space<vmem>>, vector<1x64x64xbf16>
    %288 = vector.shape_cast %287 : vector<1x64x64xbf16> to vector<64x64xbf16>
    %cst_126 = arith.constant dense<0.000000e+00> : vector<32x64xf32>
    %289 = tpu.matmul %286, %288, %cst_126 {dimension_numbers = #tpu.dot_dimension_numbers<[1], [0], [0], [1], [0, 0, 1, 1], [], []>} : vector<32x64xbf16>, vector<64x64xbf16>, vector<32x64xf32> -> vector<32x64xf32>
    %290 = arith.addf %283, %289 : vector<32x64xf32>
    %c0_127 = arith.constant 0 : index
    %c0_128 = arith.constant 0 : index
    %291 = vector.load %arg5[%c0_127, %c0_128] : memref<1x64xf32, #tpu.memory_space<vmem>>, vector<1x64xf32>
    %292 = vector.broadcast %291 : vector<1x64xf32> to vector<32x64xf32>
    %293 = arith.addf %290, %292 : vector<32x64xf32>
    %cst_129 = arith.constant 0.000000e+00 : f32
    %294 = vector.broadcast %cst_129 : f32 to vector<32x64xf32>
    %295 = arith.maximumf %293, %294 : vector<32x64xf32>
    %296 = vector.shape_cast %295 : vector<32x64xf32> to vector<4x4x2x64xf32>
    %c1_130 = arith.constant 1 : index
    %c1_131 = arith.constant 1 : index
    %c0_132 = arith.constant 0 : index
    %c0_133 = arith.constant 0 : index
    %297 = vector.load %arg14[%c1_130, %c1_131, %c0_132, %c0_133] : memref<6x6x2x64xf32, #tpu.memory_space<vmem>>, vector<4x4x2x64xf32>
    tpu.vector_store %arg14[%c1_130, %c1_131, %c0_132, %c0_133], %296 {strides = array<i32>} : memref<6x6x2x64xf32, #tpu.memory_space<vmem>>, vector<4x4x2x64xf32>,
    %c0_134 = arith.constant 0 : index
    %c0_135 = arith.constant 0 : index
    %c0_136 = arith.constant 0 : index
    %c0_137 = arith.constant 0 : index
    %298 = vector.load %arg14[%c0_134, %c0_135, %c0_136, %c0_137] : memref<6x6x2x64xf32, #tpu.memory_space<vmem>>, vector<6x6x2x64xf32>
    %299 = vector.extract_strided_slice %226 {offsets = [1, 1, 0, 0], sizes = [4, 4, 2, 64], strides = [1, 1, 1, 1]} : vector<6x6x2x64xf32> to vector<4x4x2x64xf32>
    %300 = vector.shape_cast %299 : vector<4x4x2x64xf32> to vector<32x64xf32>
    %cst_138 = arith.constant 0.000000e+00 : f32
    %301 = vector.broadcast %cst_138 : f32 to vector<32x64xf32>
    %302 = vector.extract_strided_slice %298 {offsets = [0, 0, 0, 0], sizes = [4, 4, 2, 64], strides = [1, 1, 1, 1]} : vector<6x6x2x64xf32> to vector<4x4x2x64xf32>
    %303 = vector.shape_cast %302 : vector<4x4x2x64xf32> to vector<32x64xf32>
    %304 = arith.truncf %303 : vector<32x64xf32> to vector<32x64xbf16>
    %c0_139 = arith.constant 0 : index
    %c0_140 = arith.constant 0 : index
    %c0_141 = arith.constant 0 : index
    %305 = vector.load %arg6[%c0_139, %c0_140, %c0_141] : memref<9x64x64xbf16, #tpu.memory_space<vmem>>, vector<1x64x64xbf16>
    %306 = vector.shape_cast %305 : vector<1x64x64xbf16> to vector<64x64xbf16>
    %cst_142 = arith.constant dense<0.000000e+00> : vector<32x64xf32>
    %307 = tpu.matmul %304, %306, %cst_142 {dimension_numbers = #tpu.dot_dimension_numbers<[1], [0], [0], [1], [0, 0, 1, 1], [], []>} : vector<32x64xbf16>, vector<64x64xbf16>, vector<32x64xf32> -> vector<32x64xf32>
    %308 = arith.addf %301, %307 : vector<32x64xf32>
    %309 = vector.extract_strided_slice %298 {offsets = [0, 1, 0, 0], sizes = [4, 4, 2, 64], strides = [1, 1, 1, 1]} : vector<6x6x2x64xf32> to vector<4x4x2x64xf32>
    %310 = vector.shape_cast %309 : vector<4x4x2x64xf32> to vector<32x64xf32>
    %311 = arith.truncf %310 : vector<32x64xf32> to vector<32x64xbf16>
    %c1_143 = arith.constant 1 : index
    %c0_144 = arith.constant 0 : index
    %c0_145 = arith.constant 0 : index
    %312 = vector.load %arg6[%c1_143, %c0_144, %c0_145] : memref<9x64x64xbf16, #tpu.memory_space<vmem>>, vector<1x64x64xbf16>
    %313 = vector.shape_cast %312 : vector<1x64x64xbf16> to vector<64x64xbf16>
    %cst_146 = arith.constant dense<0.000000e+00> : vector<32x64xf32>
    %314 = tpu.matmul %311, %313, %cst_146 {dimension_numbers = #tpu.dot_dimension_numbers<[1], [0], [0], [1], [0, 0, 1, 1], [], []>} : vector<32x64xbf16>, vector<64x64xbf16>, vector<32x64xf32> -> vector<32x64xf32>
    %315 = arith.addf %308, %314 : vector<32x64xf32>
    %316 = vector.extract_strided_slice %298 {offsets = [0, 2, 0, 0], sizes = [4, 4, 2, 64], strides = [1, 1, 1, 1]} : vector<6x6x2x64xf32> to vector<4x4x2x64xf32>
    %317 = vector.shape_cast %316 : vector<4x4x2x64xf32> to vector<32x64xf32>
    %318 = arith.truncf %317 : vector<32x64xf32> to vector<32x64xbf16>
    %c2_147 = arith.constant 2 : index
    %c0_148 = arith.constant 0 : index
    %c0_149 = arith.constant 0 : index
    %319 = vector.load %arg6[%c2_147, %c0_148, %c0_149] : memref<9x64x64xbf16, #tpu.memory_space<vmem>>, vector<1x64x64xbf16>
    %320 = vector.shape_cast %319 : vector<1x64x64xbf16> to vector<64x64xbf16>
    %cst_150 = arith.constant dense<0.000000e+00> : vector<32x64xf32>
    %321 = tpu.matmul %318, %320, %cst_150 {dimension_numbers = #tpu.dot_dimension_numbers<[1], [0], [0], [1], [0, 0, 1, 1], [], []>} : vector<32x64xbf16>, vector<64x64xbf16>, vector<32x64xf32> -> vector<32x64xf32>
    %322 = arith.addf %315, %321 : vector<32x64xf32>
    %323 = vector.extract_strided_slice %298 {offsets = [1, 0, 0, 0], sizes = [4, 4, 2, 64], strides = [1, 1, 1, 1]} : vector<6x6x2x64xf32> to vector<4x4x2x64xf32>
    %324 = vector.shape_cast %323 : vector<4x4x2x64xf32> to vector<32x64xf32>
    %325 = arith.truncf %324 : vector<32x64xf32> to vector<32x64xbf16>
    %c3_151 = arith.constant 3 : index
    %c0_152 = arith.constant 0 : index
    %c0_153 = arith.constant 0 : index
    %326 = vector.load %arg6[%c3_151, %c0_152, %c0_153] : memref<9x64x64xbf16, #tpu.memory_space<vmem>>, vector<1x64x64xbf16>
    %327 = vector.shape_cast %326 : vector<1x64x64xbf16> to vector<64x64xbf16>
    %cst_154 = arith.constant dense<0.000000e+00> : vector<32x64xf32>
    %328 = tpu.matmul %325, %327, %cst_154 {dimension_numbers = #tpu.dot_dimension_numbers<[1], [0], [0], [1], [0, 0, 1, 1], [], []>} : vector<32x64xbf16>, vector<64x64xbf16>, vector<32x64xf32> -> vector<32x64xf32>
    %329 = arith.addf %322, %328 : vector<32x64xf32>
    %330 = vector.extract_strided_slice %298 {offsets = [1, 1, 0, 0], sizes = [4, 4, 2, 64], strides = [1, 1, 1, 1]} : vector<6x6x2x64xf32> to vector<4x4x2x64xf32>
    %331 = vector.shape_cast %330 : vector<4x4x2x64xf32> to vector<32x64xf32>
    %332 = arith.truncf %331 : vector<32x64xf32> to vector<32x64xbf16>
    %c4_155 = arith.constant 4 : index
    %c0_156 = arith.constant 0 : index
    %c0_157 = arith.constant 0 : index
    %333 = vector.load %arg6[%c4_155, %c0_156, %c0_157] : memref<9x64x64xbf16, #tpu.memory_space<vmem>>, vector<1x64x64xbf16>
    %334 = vector.shape_cast %333 : vector<1x64x64xbf16> to vector<64x64xbf16>
    %cst_158 = arith.constant dense<0.000000e+00> : vector<32x64xf32>
    %335 = tpu.matmul %332, %334, %cst_158 {dimension_numbers = #tpu.dot_dimension_numbers<[1], [0], [0], [1], [0, 0, 1, 1], [], []>} : vector<32x64xbf16>, vector<64x64xbf16>, vector<32x64xf32> -> vector<32x64xf32>
    %336 = arith.addf %329, %335 : vector<32x64xf32>
    %337 = vector.extract_strided_slice %298 {offsets = [1, 2, 0, 0], sizes = [4, 4, 2, 64], strides = [1, 1, 1, 1]} : vector<6x6x2x64xf32> to vector<4x4x2x64xf32>
    %338 = vector.shape_cast %337 : vector<4x4x2x64xf32> to vector<32x64xf32>
    %339 = arith.truncf %338 : vector<32x64xf32> to vector<32x64xbf16>
    %c5_159 = arith.constant 5 : index
    %c0_160 = arith.constant 0 : index
    %c0_161 = arith.constant 0 : index
    %340 = vector.load %arg6[%c5_159, %c0_160, %c0_161] : memref<9x64x64xbf16, #tpu.memory_space<vmem>>, vector<1x64x64xbf16>
    %341 = vector.shape_cast %340 : vector<1x64x64xbf16> to vector<64x64xbf16>
    %cst_162 = arith.constant dense<0.000000e+00> : vector<32x64xf32>
    %342 = tpu.matmul %339, %341, %cst_162 {dimension_numbers = #tpu.dot_dimension_numbers<[1], [0], [0], [1], [0, 0, 1, 1], [], []>} : vector<32x64xbf16>, vector<64x64xbf16>, vector<32x64xf32> -> vector<32x64xf32>
    %343 = arith.addf %336, %342 : vector<32x64xf32>
    %344 = vector.extract_strided_slice %298 {offsets = [2, 0, 0, 0], sizes = [4, 4, 2, 64], strides = [1, 1, 1, 1]} : vector<6x6x2x64xf32> to vector<4x4x2x64xf32>
    %345 = vector.shape_cast %344 : vector<4x4x2x64xf32> to vector<32x64xf32>
    %346 = arith.truncf %345 : vector<32x64xf32> to vector<32x64xbf16>
    %c6_163 = arith.constant 6 : index
    %c0_164 = arith.constant 0 : index
    %c0_165 = arith.constant 0 : index
    %347 = vector.load %arg6[%c6_163, %c0_164, %c0_165] : memref<9x64x64xbf16, #tpu.memory_space<vmem>>, vector<1x64x64xbf16>
    %348 = vector.shape_cast %347 : vector<1x64x64xbf16> to vector<64x64xbf16>
    %cst_166 = arith.constant dense<0.000000e+00> : vector<32x64xf32>
    %349 = tpu.matmul %346, %348, %cst_166 {dimension_numbers = #tpu.dot_dimension_numbers<[1], [0], [0], [1], [0, 0, 1, 1], [], []>} : vector<32x64xbf16>, vector<64x64xbf16>, vector<32x64xf32> -> vector<32x64xf32>
    %350 = arith.addf %343, %349 : vector<32x64xf32>
    %351 = vector.extract_strided_slice %298 {offsets = [2, 1, 0, 0], sizes = [4, 4, 2, 64], strides = [1, 1, 1, 1]} : vector<6x6x2x64xf32> to vector<4x4x2x64xf32>
    %352 = vector.shape_cast %351 : vector<4x4x2x64xf32> to vector<32x64xf32>
    %353 = arith.truncf %352 : vector<32x64xf32> to vector<32x64xbf16>
    %c7_167 = arith.constant 7 : index
    %c0_168 = arith.constant 0 : index
    %c0_169 = arith.constant 0 : index
    %354 = vector.load %arg6[%c7_167, %c0_168, %c0_169] : memref<9x64x64xbf16, #tpu.memory_space<vmem>>, vector<1x64x64xbf16>
    %355 = vector.shape_cast %354 : vector<1x64x64xbf16> to vector<64x64xbf16>
    %cst_170 = arith.constant dense<0.000000e+00> : vector<32x64xf32>
    %356 = tpu.matmul %353, %355, %cst_170 {dimension_numbers = #tpu.dot_dimension_numbers<[1], [0], [0], [1], [0, 0, 1, 1], [], []>} : vector<32x64xbf16>, vector<64x64xbf16>, vector<32x64xf32> -> vector<32x64xf32>
    %357 = arith.addf %350, %356 : vector<32x64xf32>
    %358 = vector.extract_strided_slice %298 {offsets = [2, 2, 0, 0], sizes = [4, 4, 2, 64], strides = [1, 1, 1, 1]} : vector<6x6x2x64xf32> to vector<4x4x2x64xf32>
    %359 = vector.shape_cast %358 : vector<4x4x2x64xf32> to vector<32x64xf32>
    %360 = arith.truncf %359 : vector<32x64xf32> to vector<32x64xbf16>
    %c8_171 = arith.constant 8 : index
    %c0_172 = arith.constant 0 : index
    %c0_173 = arith.constant 0 : index
    %361 = vector.load %arg6[%c8_171, %c0_172, %c0_173] : memref<9x64x64xbf16, #tpu.memory_space<vmem>>, vector<1x64x64xbf16>
    %362 = vector.shape_cast %361 : vector<1x64x64xbf16> to vector<64x64xbf16>
    %cst_174 = arith.constant dense<0.000000e+00> : vector<32x64xf32>
    %363 = tpu.matmul %360, %362, %cst_174 {dimension_numbers = #tpu.dot_dimension_numbers<[1], [0], [0], [1], [0, 0, 1, 1], [], []>} : vector<32x64xbf16>, vector<64x64xbf16>, vector<32x64xf32> -> vector<32x64xf32>
    %364 = arith.addf %357, %363 : vector<32x64xf32>
    %c0_175 = arith.constant 0 : index
    %c0_176 = arith.constant 0 : index
    %365 = vector.load %arg7[%c0_175, %c0_176] : memref<1x64xf32, #tpu.memory_space<vmem>>, vector<1x64xf32>
    %366 = vector.broadcast %365 : vector<1x64xf32> to vector<32x64xf32>
    %367 = arith.addf %364, %366 : vector<32x64xf32>
    %368 = arith.addf %367, %300 : vector<32x64xf32>
    %cst_177 = arith.constant 0.000000e+00 : f32
    %369 = vector.broadcast %cst_177 : f32 to vector<32x64xf32>
    %370 = arith.maximumf %368, %369 : vector<32x64xf32>
    %371 = vector.shape_cast %370 : vector<32x64xf32> to vector<16x2x64xf32>
    %cst_178 = arith.constant dense<0.000000e+00> : vector<2x64xf32>
    %372 = vector.multi_reduction <add>, %371, %cst_178 [0] : vector<16x2x64xf32> to vector<2x64xf32>
    %cst_179 = arith.constant 6.250000e-02 : f32
    %373 = vector.broadcast %cst_179 : f32 to vector<2x64xf32>
    %374 = arith.mulf %372, %373 : vector<2x64xf32>
    %c0_180 = arith.constant 0 : index
    %c0_181 = arith.constant 0 : index
    %c0_182 = arith.constant 0 : index
    %375 = vector.load %arg10[%c0_180, %c0_181, %c0_182] : memref<1x2x64xf32, #tpu.memory_space<vmem>>, vector<1x2x64xf32>
    %376 = vector.shape_cast %375 : vector<1x2x64xf32> to vector<2x64xf32>
    %377 = vector.shape_cast %374 : vector<2x64xf32> to vector<1x2x64xf32>
    tpu.vector_store %arg10[%c0_180, %c0_181, %c0_182], %377 {strides = array<i32>} : memref<1x2x64xf32, #tpu.memory_space<vmem>>, vector<1x2x64xf32>,
    %378 = arith.truncf %374 : vector<2x64xf32> to vector<2x64xbf16>
    %c0_183 = arith.constant 0 : index
    %c0_184 = arith.constant 0 : index
    %379 = vector.load %arg8[%c0_183, %c0_184] : memref<64x64xbf16, #tpu.memory_space<vmem>>, vector<64x64xbf16>
    %cst_185 = arith.constant dense<0.000000e+00> : vector<2x64xf32>
    %380 = tpu.matmul %378, %379, %cst_185 {dimension_numbers = #tpu.dot_dimension_numbers<[1], [0], [0], [1], [0, 0, 1, 1], [], []>} : vector<2x64xbf16>, vector<64x64xbf16>, vector<2x64xf32> -> vector<2x64xf32>
    %cst_186 = arith.constant 0.000000e+00 : f32
    %381 = vector.broadcast %cst_186 : f32 to vector<2x64xf32>
    %382 = arith.maximumf %380, %381 : vector<2x64xf32>
    %383 = arith.truncf %382 : vector<2x64xf32> to vector<2x64xbf16>
    %c0_187 = arith.constant 0 : index
    %c0_188 = arith.constant 0 : index
    %384 = vector.load %arg9[%c0_187, %c0_188] : memref<64x32xbf16, #tpu.memory_space<vmem>>, vector<64x32xbf16>
    %cst_189 = arith.constant dense<0.000000e+00> : vector<2x32xf32>
    %385 = tpu.matmul %383, %384, %cst_189 {dimension_numbers = #tpu.dot_dimension_numbers<[1], [0], [0], [1], [0, 0, 1, 1], [], []>} : vector<2x64xbf16>, vector<64x32xbf16>, vector<2x32xf32> -> vector<2x32xf32>
    %c0_190 = arith.constant 0 : index
    %c0_191 = arith.constant 0 : index
    %c0_192 = arith.constant 0 : index
    %386 = vector.load %arg11[%c0_190, %c0_191, %c0_192] : memref<1x2x32xf32, #tpu.memory_space<vmem>>, vector<1x2x32xf32>
    %387 = vector.shape_cast %386 : vector<1x2x32xf32> to vector<2x32xf32>
    %388 = vector.shape_cast %385 : vector<2x32xf32> to vector<1x2x32xf32>
    tpu.vector_store %arg11[%c0_190, %c0_191, %c0_192], %388 {strides = array<i32>} : memref<1x2x32xf32, #tpu.memory_space<vmem>>, vector<1x2x32xf32>,
    return
  }
  func.func @transform_0(%arg0: i32) -> (i32, i32, i32) {
    %c0_i32 = arith.constant 0 : i32
    %c0_i32_0 = arith.constant 0 : i32
    %c0_i32_1 = arith.constant 0 : i32
    return %arg0, %c0_i32, %c0_i32_0 : i32, i32, i32
  }
  func.func @transform_1(%arg0: i32) -> (i32, i32) {
    %c0_i32 = arith.constant 0 : i32
    %c0_i32_0 = arith.constant 0 : i32
    %c0_i32_1 = arith.constant 0 : i32
    return %c0_i32, %c0_i32_0 : i32, i32
  }
  func.func @transform_2(%arg0: i32) -> (i32, i32) {
    %c0_i32 = arith.constant 0 : i32
    %c0_i32_0 = arith.constant 0 : i32
    %c0_i32_1 = arith.constant 0 : i32
    return %c0_i32, %c0_i32_0 : i32, i32
  }
  func.func @transform_3(%arg0: i32) -> (i32, i32, i32) {
    %c0_i32 = arith.constant 0 : i32
    %c0_i32_0 = arith.constant 0 : i32
    %c0_i32_1 = arith.constant 0 : i32
    %c0_i32_2 = arith.constant 0 : i32
    return %c0_i32, %c0_i32_0, %c0_i32_1 : i32, i32, i32
  }
  func.func @transform_4(%arg0: i32) -> (i32, i32) {
    %c0_i32 = arith.constant 0 : i32
    %c0_i32_0 = arith.constant 0 : i32
    %c0_i32_1 = arith.constant 0 : i32
    return %c0_i32, %c0_i32_0 : i32, i32
  }
  func.func @transform_5(%arg0: i32) -> (i32, i32, i32) {
    %c0_i32 = arith.constant 0 : i32
    %c0_i32_0 = arith.constant 0 : i32
    %c0_i32_1 = arith.constant 0 : i32
    %c0_i32_2 = arith.constant 0 : i32
    return %c0_i32, %c0_i32_0, %c0_i32_1 : i32, i32, i32
  }
  func.func @transform_6(%arg0: i32) -> (i32, i32) {
    %c0_i32 = arith.constant 0 : i32
    %c0_i32_0 = arith.constant 0 : i32
    %c0_i32_1 = arith.constant 0 : i32
    return %c0_i32, %c0_i32_0 : i32, i32
  }
  func.func @transform_7(%arg0: i32) -> (i32, i32) {
    %c0_i32 = arith.constant 0 : i32
    %c0_i32_0 = arith.constant 0 : i32
    %c0_i32_1 = arith.constant 0 : i32
    return %c0_i32, %c0_i32_0 : i32, i32
  }
  func.func @transform_8(%arg0: i32) -> (i32, i32) {
    %c0_i32 = arith.constant 0 : i32
    %c0_i32_0 = arith.constant 0 : i32
    %c0_i32_1 = arith.constant 0 : i32
    return %c0_i32, %c0_i32_0 : i32, i32
  }
  func.func @transform_9(%arg0: i32) -> (i32, i32, i32) {
    %c0_i32 = arith.constant 0 : i32
    %c0_i32_0 = arith.constant 0 : i32
    %c0_i32_1 = arith.constant 0 : i32
    return %arg0, %c0_i32, %c0_i32_0 : i32, i32, i32
  }
  func.func @transform_10(%arg0: i32) -> (i32, i32, i32) {
    %c0_i32 = arith.constant 0 : i32
    %c0_i32_0 = arith.constant 0 : i32
    %c0_i32_1 = arith.constant 0 : i32
    return %arg0, %c0_i32, %c0_i32_0 : i32, i32, i32
  }
}

</mosaic_0001>

<llo_original>
// kernel: simclr_forward.1
$region0: #{simclr_forward.1}
  #allocation0 [shape = 'u32[]', space=smem, size = 0x4, offset = 0x4, fixed_abs, tag = 'smem constant byte address 0x4 - core index']
  #allocation1 [shape = 'u32[144,128]{1,0:T(1,128)}', space=vmem, size = 0x12000, scoped, tag = 'internal scratch']
  #allocation2 [shape = 'f32[10,10,2,64]{3,2,1,0:T(2,128)}', space=vmem, size = 0x19000, scoped, tag = 'scratch operand']
  #allocation3 [shape = 'f32[6,6,2,64]{3,2,1,0:T(2,128)}', space=vmem, size = 0x9000, scoped, tag = 'scratch operand']
  #allocation4 [shape = 'f32[6,6,2,64]{3,2,1,0:T(2,128)}', space=vmem, size = 0x9000, scoped, tag = 'scratch operand']
  %s0 = inlined_call_operand.vmem [shape: bf16[2,128,64], index: 0, kind: input, shape index: {}]
  %s1 = inlined_call_operand.vmem [shape: bf16[64,64], index: 1, kind: input, shape index: {}]
  %s2 = inlined_call_operand.vmem [shape: f32[1,64], index: 2, kind: input, shape index: {}]
  %s3 = inlined_call_operand.vmem [shape: bf16[9,64,64], index: 3, kind: input, shape index: {}]
  %s4 = inlined_call_operand.vmem [shape: f32[1,64], index: 4, kind: input, shape index: {}]
  %s5 = inlined_call_operand.vmem [shape: bf16[9,64,64], index: 5, kind: input, shape index: {}]
  %s6 = inlined_call_operand.vmem [shape: f32[1,64], index: 6, kind: input, shape index: {}]
  %s7 = inlined_call_operand.vmem [shape: bf16[64,64], index: 7, kind: input, shape index: {}]
  %s8 = inlined_call_operand.vmem [shape: bf16[64,32], index: 8, kind: input, shape index: {}]
  %s9 = inlined_call_operand.vmem [shape: f32[2,2,64], index: 9, kind: output, shape index: {0}]
  %s10 = inlined_call_operand.vmem [shape: f32[2,2,32], index: 10, kind: output, shape index: {1}]
  %11 = xla_tuple %s9, %s10
  %s12 = sld [smem:[#allocation0]]
  $region77: #{simclr_forward.1} parent=0
    _
  %s14 = ssub.s32 1, %s12
  %s15 = scalar_select 0, %s14, %s12
  loop: start=0, step=1, limit=4
  $region2: #{simclr_forward.1} parent=0 // loop_pre_header
    _
  $region3: #{simclr_forward.1} parent=0 // loop_header
    %s17 = sphi 0, %s21
    %p18 = scmp.ge.s32.totalorder %s17, 4
    %s27 = sphi 0, %s29
    %s30 = sphi 0, %s27
    %s31 = sphi 0, %s30
    %s47 = sphi 0, %s31
    %s51 = sphi 0, %s51
    %s53 = sphi 0, %s51
    %s54 = sphi 0, %s53
    %s68 = sphi 0, %s54
    %s72 = sphi 0, %s72
    %s74 = sphi 0, %s72
    %s75 = sphi 0, %s74
    %s89 = sphi 0, %s75
    %s93 = sphi 0, %s93
    %s95 = sphi 0, %s93
    %s96 = sphi 0, %s95
    %s110 = sphi 0, %s96
    %s114 = sphi 0, %s114
    %s116 = sphi 0, %s114
    %s117 = sphi 0, %s116
    %s131 = sphi 0, %s117
    %s135 = sphi 0, %s135
    %s137 = sphi 0, %s135
    %s138 = sphi 0, %s137
    %s152 = sphi 0, %s138
    %s156 = sphi 0, %s156
    %s158 = sphi 0, %s156
    %s159 = sphi 0, %s158
    %s173 = sphi 0, %s159
    %s177 = sphi 0, %s177
    %s179 = sphi 0, %s177
    %s180 = sphi 0, %s179
    %s194 = sphi 0, %s180
    %s198 = sphi 0, %s198
    %s200 = sphi 0, %s198
    %s201 = sphi 0, %s200
    %s215 = sphi 0, %s201
    %s221 = sphi 0, %s223
    %s224 = sphi 0, %s221
    %s225 = sphi 0, %s224
    %s241 = sphi 0, %s225
    %s247 = sphi 0, %s249
    %s250 = sphi 0, %s247
    %s251 = sphi 0, %s250
    %s267 = sphi 0, %s251
  $region4: #{simclr_forward.1} parent=0 // loop_header_branch
    %20 = sbr.rel (%p18) target = $region8
  $region5: #{simclr_forward.1} parent=0 // loop_body
    %s22 = ssub.s32 %s17, 1
    %s23 = ssub.s32 %s17, 2
    %s24 = sadd.s32 %s17, 1
    %s25 = ssub.s32 %s17, %s24
    %p26 = scmp.eq.s32.totalorder %s25, 0
    %s28 = sadd.s32 %s27, 1
    %s29 = scalar_select %p26, %s27, %s28
    %p32 = pneg %p26
    %p33 = scmp.eq.s32.totalorder %s17, 1
    %p34 = por %p32, %p33
    %p35 = scmp.ne.s32.totalorder %s27, %s30
    %p36 = scmp.eq.s32.totalorder %s17, 0
    %p37 = por %p35, %p36
    %p38 = scmp.ne.s32.totalorder %s27, %s30
    %p39 = scmp.eq.s32.totalorder %s22, 1
    %p40 = por %p38, %p39
    %p41 = scmp.ne.s32.totalorder %s30, %s31
    %p42 = scmp.eq.s32.totalorder %s22, 0
    %p43 = por %p41, %p42
    %p44 = scmp.ne.s32.totalorder %s30, %s31
    %p45 = scmp.eq.s32.totalorder %s23, 1
    %p46 = por %p44, %p45
    %p48 = scmp.ne.s32.totalorder %s31, %s47
    %p49 = scmp.eq.s32.totalorder %s23, 0
    %p50 = por %p48, %p49
    %s52 = sadd.s32 %s51, 1
    %p55 = scmp.eq.s32.totalorder %s17, 1
    %p56 = scmp.ne.s32.totalorder %s51, %s53
    %p57 = scmp.eq.s32.totalorder %s17, 0
    %p58 = por %p56, %p57
    %p59 = scmp.ne.s32.totalorder %s51, %s53
    %p60 = scmp.eq.s32.totalorder %s22, 1
    %p61 = por %p59, %p60
    %p62 = scmp.ne.s32.totalorder %s53, %s54
    %p63 = scmp.eq.s32.totalorder %s22, 0
    %p64 = por %p62, %p63
    %p65 = scmp.ne.s32.totalorder %s53, %s54
    %p66 = scmp.eq.s32.totalorder %s23, 1
    %p67 = por %p65, %p66
    %p69 = scmp.ne.s32.totalorder %s54, %s68
    %p70 = scmp.eq.s32.totalorder %s23, 0
    %p71 = por %p69, %p70
    %s73 = sadd.s32 %s72, 1
    %p76 = scmp.eq.s32.totalorder %s17, 1
    %p77 = scmp.ne.s32.totalorder %s72, %s74
    %p78 = scmp.eq.s32.totalorder %s17, 0
    %p79 = por %p77, %p78
    %p80 = scmp.ne.s32.totalorder %s72, %s74
    %p81 = scmp.eq.s32.totalorder %s22, 1
    %p82 = por %p80, %p81
    %p83 = scmp.ne.s32.totalorder %s74, %s75
    %p84 = scmp.eq.s32.totalorder %s22, 0
    %p85 = por %p83, %p84
    %p86 = scmp.ne.s32.totalorder %s74, %s75
    %p87 = scmp.eq.s32.totalorder %s23, 1
    %p88 = por %p86, %p87
    %p90 = scmp.ne.s32.totalorder %s75, %s89
    %p91 = scmp.eq.s32.totalorder %s23, 0
    %p92 = por %p90, %p91
    %s94 = sadd.s32 %s93, 1
    %p97 = scmp.eq.s32.totalorder %s17, 1
    %p98 = scmp.ne.s32.totalorder %s93, %s95
    %p99 = scmp.eq.s32.totalorder %s17, 0
    %p100 = por %p98, %p99
    %p101 = scmp.ne.s32.totalorder %s93, %s95
    %p102 = scmp.eq.s32.totalorder %s22, 1
    %p103 = por %p101, %p102
    %p104 = scmp.ne.s32.totalorder %s95, %s96
    %p105 = scmp.eq.s32.totalorder %s22, 0
    %p106 = por %p104, %p105
    %p107 = scmp.ne.s32.totalorder %s95, %s96
    %p108 = scmp.eq.s32.totalorder %s23, 1
    %p109 = por %p107, %p108
    %p111 = scmp.ne.s32.totalorder %s96, %s110
    %p112 = scmp.eq.s32.totalorder %s23, 0
    %p113 = por %p111, %p112
    %s115 = sadd.s32 %s114, 1
    %p118 = scmp.eq.s32.totalorder %s17, 1
    %p119 = scmp.ne.s32.totalorder %s114, %s116
    %p120 = scmp.eq.s32.totalorder %s17, 0
    %p121 = por %p119, %p120
    %p122 = scmp.ne.s32.totalorder %s114, %s116
    %p123 = scmp.eq.s32.totalorder %s22, 1
    %p124 = por %p122, %p123
    %p125 = scmp.ne.s32.totalorder %s116, %s117
    %p126 = scmp.eq.s32.totalorder %s22, 0
    %p127 = por %p125, %p126
    %p128 = scmp.ne.s32.totalorder %s116, %s117
    %p129 = scmp.eq.s32.totalorder %s23, 1
    %p130 = por %p128, %p129
    %p132 = scmp.ne.s32.totalorder %s117, %s131
    %p133 = scmp.eq.s32.totalorder %s23, 0
    %p134 = por %p132, %p133
    %s136 = sadd.s32 %s135, 1
    %p139 = scmp.eq.s32.totalorder %s17, 1
    %p140 = scmp.ne.s32.totalorder %s135, %s137
    %p141 = scmp.eq.s32.totalorder %s17, 0
    %p142 = por %p140, %p141
    %p143 = scmp.ne.s32.totalorder %s135, %s137
    %p144 = scmp.eq.s32.totalorder %s22, 1
    %p145 = por %p143, %p144
    %p146 = scmp.ne.s32.totalorder %s137, %s138
    %p147 = scmp.eq.s32.totalorder %s22, 0
    %p148 = por %p146, %p147
    %p149 = scmp.ne.s32.totalorder %s137, %s138
    %p150 = scmp.eq.s32.totalorder %s23, 1
    %p151 = por %p149, %p150
    %p153 = scmp.ne.s32.totalorder %s138, %s152
    %p154 = scmp.eq.s32.totalorder %s23, 0
    %p155 = por %p153, %p154
    %s157 = sadd.s32 %s156, 1
    %p160 = scmp.eq.s32.totalorder %s17, 1
    %p161 = scmp.ne.s32.totalorder %s156, %s158
    %p162 = scmp.eq.s32.totalorder %s17, 0
    %p163 = por %p161, %p162
    %p164 = scmp.ne.s32.totalorder %s156, %s158
    %p165 = scmp.eq.s32.totalorder %s22, 1
    %p166 = por %p164, %p165
    %p167 = scmp.ne.s32.totalorder %s158, %s159
    %p168 = scmp.eq.s32.totalorder %s22, 0
    %p169 = por %p167, %p168
    %p170 = scmp.ne.s32.totalorder %s158, %s159
    %p171 = scmp.eq.s32.totalorder %s23, 1
    %p172 = por %p170, %p171
    %p174 = scmp.ne.s32.totalorder %s159, %s173
    %p175 = scmp.eq.s32.totalorder %s23, 0
    %p176 = por %p174, %p175
    %s178 = sadd.s32 %s177, 1
    %p181 = scmp.eq.s32.totalorder %s17, 1
    %p182 = scmp.ne.s32.totalorder %s177, %s179
    %p183 = scmp.eq.s32.totalorder %s17, 0
    %p184 = por %p182, %p183
    %p185 = scmp.ne.s32.totalorder %s177, %s179
    %p186 = scmp.eq.s32.totalorder %s22, 1
    %p187 = por %p185, %p186
    %p188 = scmp.ne.s32.totalorder %s179, %s180
    %p189 = scmp.eq.s32.totalorder %s22, 0
    %p190 = por %p188, %p189
    %p191 = scmp.ne.s32.totalorder %s179, %s180
    %p192 = scmp.eq.s32.totalorder %s23, 1
    %p193 = por %p191, %p192
    %p195 = scmp.ne.s32.totalorder %s180, %s194
    %p196 = scmp.eq.s32.totalorder %s23, 0
    %p197 = por %p195, %p196
    %s199 = sadd.s32 %s198, 1
    %p202 = scmp.eq.s32.totalorder %s17, 1
    %p203 = scmp.ne.s32.totalorder %s198, %s200
    %p204 = scmp.eq.s32.totalorder %s17, 0
    %p205 = por %p203, %p204
    %p206 = scmp.ne.s32.totalorder %s198, %s200
    %p207 = scmp.eq.s32.totalorder %s22, 1
    %p208 = por %p206, %p207
    %p209 = scmp.ne.s32.totalorder %s200, %s201
    %p210 = scmp.eq.s32.totalorder %s22, 0
    %p211 = por %p209, %p210
    %p212 = scmp.ne.s32.totalorder %s200, %s201
    %p213 = scmp.eq.s32.totalorder %s23, 1
    %p214 = por %p212, %p213
    %p216 = scmp.ne.s32.totalorder %s201, %s215
    %p217 = scmp.eq.s32.totalorder %s23, 0
    %p218 = por %p216, %p217
    %s219 = ssub.s32 %s17, %s24
    %p220 = scmp.eq.s32.totalorder %s219, 0
    %s222 = sadd.s32 %s221, 1
    %s223 = scalar_select %p220, %s221, %s222
    %p226 = pneg %p220
    %p227 = scmp.eq.s32.totalorder %s17, 1
    %p228 = por %p226, %p227
    %p229 = scmp.ne.s32.totalorder %s221, %s224
    %p230 = scmp.eq.s32.totalorder %s17, 0
    %p231 = por %p229, %p230
    %p232 = scmp.ne.s32.totalorder %s221, %s224
    %p233 = scmp.eq.s32.totalorder %s22, 1
    %p234 = por %p232, %p233
    %p235 = scmp.ne.s32.totalorder %s224, %s225
    %p236 = scmp.eq.s32.totalorder %s22, 0
    %p237 = por %p235, %p236
    %p238 = scmp.ne.s32.totalorder %s224, %s225
    %p239 = scmp.eq.s32.totalorder %s23, 1
    %p240 = por %p238, %p239
    %p242 = scmp.ne.s32.totalorder %s225, %s241
    %p243 = scmp.eq.s32.totalorder %s23, 0
    %p244 = por %p242, %p243
    %s245 = ssub.s32 %s17, %s24
    %p246 = scmp.eq.s32.totalorder %s245, 0
    %s248 = sadd.s32 %s247, 1
    %s249 = scalar_select %p246, %s247, %s248
    %p252 = pneg %p246
    %p253 = scmp.eq.s32.totalorder %s17, 1
    %p254 = por %p252, %p253
    %p255 = scmp.ne.s32.totalorder %s247, %s250
    %p256 = scmp.eq.s32.totalorder %s17, 0
    %p257 = por %p255, %p256
    %p258 = scmp.ne.s32.totalorder %s247, %s250
    %p259 = scmp.eq.s32.totalorder %s22, 1
    %p260 = por %p258, %p259
    %p261 = scmp.ne.s32.totalorder %s250, %s251
    %p262 = scmp.eq.s32.totalorder %s22, 0
    %p263 = por %p261, %p262
    %p264 = scmp.ne.s32.totalorder %s250, %s251
    %p265 = scmp.eq.s32.totalorder %s23, 1
    %p266 = por %p264, %p265
    %p268 = scmp.ne.s32.totalorder %s251, %s267
    %p269 = scmp.eq.s32.totalorder %s23, 0
    %p270 = por %p268, %p269
    %p271 = scmp.le.s32.totalorder 1, %s17
    %p272 = scmp.lt.s32.totalorder %s17, 3
    %p273 = pnand %p271, %p272
    %p274 = pneg %p273
    // Predicated region
    $region9: #{simclr_forward.1} parent=5 // pred_check
      _
    $region10: #{simclr_forward.1} parent=5 // pred_check_branch
      %276 = sbr.rel (%p273) target = $region12
    $region11: #{simclr_forward.1} parent=5 // pred_region
      %s277 = ssub.s32 %s17, 1
      // Predicated region
      $region13: #{simclr_forward.1} parent=11 // pred_check
        %p278 = pneg %p64
      $region14: #{simclr_forward.1} parent=11 // pred_check_branch
        %280 = sbr.rel (%p278) target = $region16
      $region15: #{simclr_forward.1} parent=11 // pred_region
        _
      $region16: #{simclr_forward.1} parent=11 // pred_fallthru
        _
      // Predicated region
      $region17: #{simclr_forward.1} parent=11 // pred_check
        %p281 = pneg %p85
      $region18: #{simclr_forward.1} parent=11 // pred_check_branch
        %283 = sbr.rel (%p281) target = $region20
      $region19: #{simclr_forward.1} parent=11 // pred_region
        _
      $region20: #{simclr_forward.1} parent=11 // pred_fallthru
        _
      // Predicated region
      $region21: #{simclr_forward.1} parent=11 // pred_check
        %p284 = pneg %p106
      $region22: #{simclr_forward.1} parent=11 // pred_check_branch
        %286 = sbr.rel (%p284) target = $region24
      $region23: #{simclr_forward.1} parent=11 // pred_region
        _
      $region24: #{simclr_forward.1} parent=11 // pred_fallthru
        _
      // Predicated region
      $region25: #{simclr_forward.1} parent=11 // pred_check
        %p287 = pneg %p127
      $region26: #{simclr_forward.1} parent=11 // pred_check_branch
        %289 = sbr.rel (%p287) target = $region28
      $region27: #{simclr_forward.1} parent=11 // pred_region
        _
      $region28: #{simclr_forward.1} parent=11 // pred_fallthru
        _
      // Predicated region
      $region29: #{simclr_forward.1} parent=11 // pred_check
        %p290 = pneg %p148
      $region30: #{simclr_forward.1} parent=11 // pred_check_branch
        %292 = sbr.rel (%p290) target = $region32
      $region31: #{simclr_forward.1} parent=11 // pred_region
        _
      $region32: #{simclr_forward.1} parent=11 // pred_fallthru
        _
      // Predicated region
      $region33: #{simclr_forward.1} parent=11 // pred_check
        %p293 = pneg %p169
      $region34: #{simclr_forward.1} parent=11 // pred_check_branch
        %295 = sbr.rel (%p293) target = $region36
      $region35: #{simclr_forward.1} parent=11 // pred_region
        _
      $region36: #{simclr_forward.1} parent=11 // pred_fallthru
        _
      // Predicated region
      $region37: #{simclr_forward.1} parent=11 // pred_check
        %p296 = pneg %p190
      $region38: #{simclr_forward.1} parent=11 // pred_check_branch
        %298 = sbr.rel (%p296) target = $region40
      $region39: #{simclr_forward.1} parent=11 // pred_region
        _
      $region40: #{simclr_forward.1} parent=11 // pred_fallthru
        _
      // Predicated region
      $region41: #{simclr_forward.1} parent=11 // pred_check
        %p299 = pneg %p211
      $region42: #{simclr_forward.1} parent=11 // pred_check_branch
        %301 = sbr.rel (%p299) target = $region44
      $region43: #{simclr_forward.1} parent=11 // pred_region
        _
      $region44: #{simclr_forward.1} parent=11 // pred_fallthru
        _
    $region12: #{simclr_forward.1} parent=5 // pred_fallthru
      _
    %p302 = scmp.lt.s32.totalorder %s17, 2
    // Predicated region
    $region45: #{simclr_forward.1} parent=5 // pred_check
      %p303 = pneg %p302
    $region46: #{simclr_forward.1} parent=5 // pred_check_branch
      %305 = sbr.rel (%p303) target = $region48
    $region47: #{simclr_forward.1} parent=5 // pred_region
      // Predicated region
      $region49: #{simclr_forward.1} parent=47 // pred_check
        %p306 = pneg %p37
      $region50: #{simclr_forward.1} parent=47 // pred_check_branch
        %308 = sbr.rel (%p306) target = $region52
      $region51: #{simclr_forward.1} parent=47 // pred_region
        %p309 = scmp.lt.s32.totalorder %s17, 1
        %s310 = scalar_select %p309, %s17, 1
        %s311 = smul.addr %s310, 16
        %s312 = smul.addr %s311, 4
        %s313 = scalar_lea.vmem %s0, %s312
      $region52: #{simclr_forward.1} parent=47 // pred_fallthru
        _
    $region48: #{simclr_forward.1} parent=5 // pred_fallthru
      _
    %p314 = scmp.le.s32.totalorder 1, %s17
    %p315 = scmp.lt.s32.totalorder %s17, 3
    %p316 = pnand %p314, %p315
    %p317 = pneg %p316
    // Predicated region
    $region53: #{simclr_forward.1} parent=5 // pred_check
      _
    $region54: #{simclr_forward.1} parent=5 // pred_check_branch
      %319 = sbr.rel (%p316) target = $region56
    $region55: #{simclr_forward.1} parent=5 // pred_region
      %s320 = ssub.s32 %s17, 1
      %p321 = scmp.lt.s32.totalorder %s22, 1
      %s322 = scalar_select %p321, %s22, 1
      %s323 = smul.addr %s322, 16
      %s324 = smul.addr %s323, 4
      %s325 = scalar_lea.vmem %s0, %s324
      %p326 = pneg %p43
      %p327 = pneg %p40
      %p328 = pneg %p64
      %p329 = pneg %p61
      %p330 = pneg %p85
      %p331 = pneg %p82
      %p332 = pneg %p106
      %p333 = pneg %p103
      %p334 = pneg %p127
      %p335 = pneg %p124
      %p336 = pneg %p148
      %p337 = pneg %p145
      %p338 = pneg %p169
      %p339 = pneg %p166
      %p340 = pneg %p190
      %p341 = pneg %p187
      %p342 = pneg %p211
      %p343 = pneg %p208
      %p344 = pneg %p237
      %p345 = pneg %p234
      %p346 = scmp.lt.s32.totalorder %s22, 1
      %s347 = scalar_select %p346, %s22, 1
      %s348 = smul.addr %s347, 2
      %s349 = scalar_lea.vmem %s9, %s348
      %p350 = pneg %p263
      %p351 = pneg %p260
      %p352 = scmp.lt.s32.totalorder %s22, 1
      %s353 = scalar_select %p352, %s22, 1
      %s354 = smul.addr %s353, 2
      %s355 = scalar_lea.vmem %s10, %s354
      %p356 = scmp.lt.s32.totalorder %s22, 1
      %s357 = scalar_select %p356, %s22, 1
      %s358 = smul.addr %s357, 16
      %s359 = smul.addr %s358, 4
      %s360 = scalar_lea.vmem %s0, %s359
      %p361 = scmp.lt.s32.totalorder %s22, 1
      %s362 = scalar_select %p361, %s22, 1
      %s363 = smul.addr %s362, 2
      %s364 = scalar_lea.vmem %s9, %s363
      %p365 = scmp.lt.s32.totalorder %s22, 1
      %s366 = scalar_select %p365, %s22, 1
      %s367 = smul.addr %s366, 2
      %s368 = scalar_lea.vmem %s10, %s367
      %vm370 = vcmask 517120
      %371 = vst.msk [vmem:[#allocation2] sm:$0x3] %vm370, 0.0
      %372 = vst.msk [vmem:[#allocation2 + $0x2] sm:$0x3] %vm370, 0.0
      %373 = vst.msk [vmem:[#allocation2 + $0x4] sm:$0x3] %vm370, 0.0
      %374 = vst.msk [vmem:[#allocation2 + $0x6] sm:$0x3] %vm370, 0.0
      %375 = vst.msk [vmem:[#allocation2 + $0x8] sm:$0x3] %vm370, 0.0
      %376 = vst.msk [vmem:[#allocation2 + $0xa] sm:$0x3] %vm370, 0.0
      %377 = vst.msk [vmem:[#allocation2 + $0xc] sm:$0x3] %vm370, 0.0
      %378 = vst.msk [vmem:[#allocation2 + $0xe] sm:$0x3] %vm370, 0.0
      %379 = vst.msk [vmem:[#allocation2 + $0x10] sm:$0x3] %vm370, 0.0
      %380 = vst.msk [vmem:[#allocation2 + $0x12] sm:$0x3] %vm370, 0.0
      %381 = vst.msk [vmem:[#allocation2 + $0x14] sm:$0x3] %vm370, 0.0
      %382 = vst.msk [vmem:[#allocation2 + $0x16] sm:$0x3] %vm370, 0.0
      %383 = vst.msk [vmem:[#allocation2 + $0x18] sm:$0x3] %vm370, 0.0
      %384 = vst.msk [vmem:[#allocation2 + $0x1a] sm:$0x3] %vm370, 0.0
      %385 = vst.msk [vmem:[#allocation2 + $0x1c] sm:$0x3] %vm370, 0.0
      %386 = vst.msk [vmem:[#allocation2 + $0x1e] sm:$0x3] %vm370, 0.0
      %387 = vst.msk [vmem:[#allocation2 + $0x20] sm:$0x3] %vm370, 0.0
      %388 = vst.msk [vmem:[#allocation2 + $0x22] sm:$0x3] %vm370, 0.0
      %389 = vst.msk [vmem:[#allocation2 + $0x24] sm:$0x3] %vm370, 0.0
      %390 = vst.msk [vmem:[#allocation2 + $0x26] sm:$0x3] %vm370, 0.0
      %391 = vst.msk [vmem:[#allocation2 + $0x28] sm:$0x3] %vm370, 0.0
      %392 = vst.msk [vmem:[#allocation2 + $0x2a] sm:$0x3] %vm370, 0.0
      %393 = vst.msk [vmem:[#allocation2 + $0x2c] sm:$0x3] %vm370, 0.0
      %394 = vst.msk [vmem:[#allocation2 + $0x2e] sm:$0x3] %vm370, 0.0
      %395 = vst.msk [vmem:[#allocation2 + $0x30] sm:$0x3] %vm370, 0.0
      %396 = vst.msk [vmem:[#allocation2 + $0x32] sm:$0x3] %vm370, 0.0
      %397 = vst.msk [vmem:[#allocation2 + $0x34] sm:$0x3] %vm370, 0.0
      %398 = vst.msk [vmem:[#allocation2 + $0x36] sm:$0x3] %vm370, 0.0
      %399 = vst.msk [vmem:[#allocation2 + $0x38] sm:$0x3] %vm370, 0.0
      %400 = vst.msk [vmem:[#allocation2 + $0x3a] sm:$0x3] %vm370, 0.0
      %401 = vst.msk [vmem:[#allocation2 + $0x3c] sm:$0x3] %vm370, 0.0
      %402 = vst.msk [vmem:[#allocation2 + $0x3e] sm:$0x3] %vm370, 0.0
      %403 = vst.msk [vmem:[#allocation2 + $0x40] sm:$0x3] %vm370, 0.0
      %404 = vst.msk [vmem:[#allocation2 + $0x42] sm:$0x3] %vm370, 0.0
      %405 = vst.msk [vmem:[#allocation2 + $0x44] sm:$0x3] %vm370, 0.0
      %406 = vst.msk [vmem:[#allocation2 + $0x46] sm:$0x3] %vm370, 0.0
      %407 = vst.msk [vmem:[#allocation2 + $0x48] sm:$0x3] %vm370, 0.0
      %408 = vst.msk [vmem:[#allocation2 + $0x4a] sm:$0x3] %vm370, 0.0
      %409 = vst.msk [vmem:[#allocation2 + $0x4c] sm:$0x3] %vm370, 0.0
      %410 = vst.msk [vmem:[#allocation2 + $0x4e] sm:$0x3] %vm370, 0.0
      %411 = vst.msk [vmem:[#allocation2 + $0x50] sm:$0x3] %vm370, 0.0
      %412 = vst.msk [vmem:[#allocation2 + $0x52] sm:$0x3] %vm370, 0.0
      %413 = vst.msk [vmem:[#allocation2 + $0x54] sm:$0x3] %vm370, 0.0
      %414 = vst.msk [vmem:[#allocation2 + $0x56] sm:$0x3] %vm370, 0.0
      %415 = vst.msk [vmem:[#allocation2 + $0x58] sm:$0x3] %vm370, 0.0
      %416 = vst.msk [vmem:[#allocation2 + $0x5a] sm:$0x3] %vm370, 0.0
      %417 = vst.msk [vmem:[#allocation2 + $0x5c] sm:$0x3] %vm370, 0.0
      %418 = vst.msk [vmem:[#allocation2 + $0x5e] sm:$0x3] %vm370, 0.0
      %419 = vst.msk [vmem:[#allocation2 + $0x60] sm:$0x3] %vm370, 0.0
      %420 = vst.msk [vmem:[#allocation2 + $0x62] sm:$0x3] %vm370, 0.0
      %421 = vst.msk [vmem:[#allocation2 + $0x64] sm:$0x3] %vm370, 0.0
      %422 = vst.msk [vmem:[#allocation2 + $0x66] sm:$0x3] %vm370, 0.0
      %423 = vst.msk [vmem:[#allocation2 + $0x68] sm:$0x3] %vm370, 0.0
      %424 = vst.msk [vmem:[#allocation2 + $0x6a] sm:$0x3] %vm370, 0.0
      %425 = vst.msk [vmem:[#allocation2 + $0x6c] sm:$0x3] %vm370, 0.0
      %426 = vst.msk [vmem:[#allocation2 + $0x6e] sm:$0x3] %vm370, 0.0
      %427 = vst.msk [vmem:[#allocation2 + $0x70] sm:$0x3] %vm370, 0.0
      %428 = vst.msk [vmem:[#allocation2 + $0x72] sm:$0x3] %vm370, 0.0
      %429 = vst.msk [vmem:[#allocation2 + $0x74] sm:$0x3] %vm370, 0.0
      %430 = vst.msk [vmem:[#allocation2 + $0x76] sm:$0x3] %vm370, 0.0
      %431 = vst.msk [vmem:[#allocation2 + $0x78] sm:$0x3] %vm370, 0.0
      %432 = vst.msk [vmem:[#allocation2 + $0x7a] sm:$0x3] %vm370, 0.0
      %433 = vst.msk [vmem:[#allocation2 + $0x7c] sm:$0x3] %vm370, 0.0
      %434 = vst.msk [vmem:[#allocation2 + $0x7e] sm:$0x3] %vm370, 0.0
      %435 = vst.msk [vmem:[#allocation2 + $0x80] sm:$0x3] %vm370, 0.0
      %436 = vst.msk [vmem:[#allocation2 + $0x82] sm:$0x3] %vm370, 0.0
      %437 = vst.msk [vmem:[#allocation2 + $0x84] sm:$0x3] %vm370, 0.0
      %438 = vst.msk [vmem:[#allocation2 + $0x86] sm:$0x3] %vm370, 0.0
      %439 = vst.msk [vmem:[#allocation2 + $0x88] sm:$0x3] %vm370, 0.0
      %440 = vst.msk [vmem:[#allocation2 + $0x8a] sm:$0x3] %vm370, 0.0
      %441 = vst.msk [vmem:[#allocation2 + $0x8c] sm:$0x3] %vm370, 0.0
      %442 = vst.msk [vmem:[#allocation2 + $0x8e] sm:$0x3] %vm370, 0.0
      %443 = vst.msk [vmem:[#allocation2 + $0x90] sm:$0x3] %vm370, 0.0
      %444 = vst.msk [vmem:[#allocation2 + $0x92] sm:$0x3] %vm370, 0.0
      %445 = vst.msk [vmem:[#allocation2 + $0x94] sm:$0x3] %vm370, 0.0
      %446 = vst.msk [vmem:[#allocation2 + $0x96] sm:$0x3] %vm370, 0.0
      %447 = vst.msk [vmem:[#allocation2 + $0x98] sm:$0x3] %vm370, 0.0
      %448 = vst.msk [vmem:[#allocation2 + $0x9a] sm:$0x3] %vm370, 0.0
      %449 = vst.msk [vmem:[#allocation2 + $0x9c] sm:$0x3] %vm370, 0.0
      %450 = vst.msk [vmem:[#allocation2 + $0x9e] sm:$0x3] %vm370, 0.0
      %451 = vst.msk [vmem:[#allocation2 + $0xa0] sm:$0x3] %vm370, 0.0
      %452 = vst.msk [vmem:[#allocation2 + $0xa2] sm:$0x3] %vm370, 0.0
      %453 = vst.msk [vmem:[#allocation2 + $0xa4] sm:$0x3] %vm370, 0.0
      %454 = vst.msk [vmem:[#allocation2 + $0xa6] sm:$0x3] %vm370, 0.0
      %455 = vst.msk [vmem:[#allocation2 + $0xa8] sm:$0x3] %vm370, 0.0
      %456 = vst.msk [vmem:[#allocation2 + $0xaa] sm:$0x3] %vm370, 0.0
      %457 = vst.msk [vmem:[#allocation2 + $0xac] sm:$0x3] %vm370, 0.0
      %458 = vst.msk [vmem:[#allocation2 + $0xae] sm:$0x3] %vm370, 0.0
      %459 = vst.msk [vmem:[#allocation2 + $0xb0] sm:$0x3] %vm370, 0.0
      %460 = vst.msk [vmem:[#allocation2 + $0xb2] sm:$0x3] %vm370, 0.0
      %461 = vst.msk [vmem:[#allocation2 + $0xb4] sm:$0x3] %vm370, 0.0
      %462 = vst.msk [vmem:[#allocation2 + $0xb6] sm:$0x3] %vm370, 0.0
      %463 = vst.msk [vmem:[#allocation2 + $0xb8] sm:$0x3] %vm370, 0.0
      %464 = vst.msk [vmem:[#allocation2 + $0xba] sm:$0x3] %vm370, 0.0
      %465 = vst.msk [vmem:[#allocation2 + $0xbc] sm:$0x3] %vm370, 0.0
      %466 = vst.msk [vmem:[#allocation2 + $0xbe] sm:$0x3] %vm370, 0.0
      %467 = vst.msk [vmem:[#allocation2 + $0xc0] sm:$0x3] %vm370, 0.0
      %468 = vst.msk [vmem:[#allocation2 + $0xc2] sm:$0x3] %vm370, 0.0
      %469 = vst.msk [vmem:[#allocation2 + $0xc4] sm:$0x3] %vm370, 0.0
      %470 = vst.msk [vmem:[#allocation2 + $0xc6] sm:$0x3] %vm370, 0.0
      %471 = vst.msk [vmem:[#allocation3] sm:$0x3] %vm370, 0.0
      %472 = vst.msk [vmem:[#allocation3 + $0x2] sm:$0x3] %vm370, 0.0
      %473 = vst.msk [vmem:[#allocation3 + $0x4] sm:$0x3] %vm370, 0.0
      %474 = vst.msk [vmem:[#allocation3 + $0x6] sm:$0x3] %vm370, 0.0
      %475 = vst.msk [vmem:[#allocation3 + $0x8] sm:$0x3] %vm370, 0.0
      %476 = vst.msk [vmem:[#allocation3 + $0xa] sm:$0x3] %vm370, 0.0
      %477 = vst.msk [vmem:[#allocation3 + $0xc] sm:$0x3] %vm370, 0.0
      %478 = vst.msk [vmem:[#allocation3 + $0xe] sm:$0x3] %vm370, 0.0
      %479 = vst.msk [vmem:[#allocation3 + $0x10] sm:$0x3] %vm370, 0.0
      %480 = vst.msk [vmem:[#allocation3 + $0x12] sm:$0x3] %vm370, 0.0
      %481 = vst.msk [vmem:[#allocation3 + $0x14] sm:$0x3] %vm370, 0.0
      %482 = vst.msk [vmem:[#allocation3 + $0x16] sm:$0x3] %vm370, 0.0
      %483 = vst.msk [vmem:[#allocation3 + $0x18] sm:$0x3] %vm370, 0.0
      %484 = vst.msk [vmem:[#allocation3 + $0x1a] sm:$0x3] %vm370, 0.0
      %485 = vst.msk [vmem:[#allocation3 + $0x1c] sm:$0x3] %vm370, 0.0
      %486 = vst.msk [vmem:[#allocation3 + $0x1e] sm:$0x3] %vm370, 0.0
      %487 = vst.msk [vmem:[#allocation3 + $0x20] sm:$0x3] %vm370, 0.0
      %488 = vst.msk [vmem:[#allocation3 + $0x22] sm:$0x3] %vm370, 0.0
      %489 = vst.msk [vmem:[#allocation3 + $0x24] sm:$0x3] %vm370, 0.0
      %490 = vst.msk [vmem:[#allocation3 + $0x26] sm:$0x3] %vm370, 0.0
      %491 = vst.msk [vmem:[#allocation3 + $0x28] sm:$0x3] %vm370, 0.0
      %492 = vst.msk [vmem:[#allocation3 + $0x2a] sm:$0x3] %vm370, 0.0
      %493 = vst.msk [vmem:[#allocation3 + $0x2c] sm:$0x3] %vm370, 0.0
      %494 = vst.msk [vmem:[#allocation3 + $0x2e] sm:$0x3] %vm370, 0.0
      %495 = vst.msk [vmem:[#allocation3 + $0x30] sm:$0x3] %vm370, 0.0
      %496 = vst.msk [vmem:[#allocation3 + $0x32] sm:$0x3] %vm370, 0.0
      %497 = vst.msk [vmem:[#allocation3 + $0x34] sm:$0x3] %vm370, 0.0
      %498 = vst.msk [vmem:[#allocation3 + $0x36] sm:$0x3] %vm370, 0.0
      %499 = vst.msk [vmem:[#allocation3 + $0x38] sm:$0x3] %vm370, 0.0
      %500 = vst.msk [vmem:[#allocation3 + $0x3a] sm:$0x3] %vm370, 0.0
      %501 = vst.msk [vmem:[#allocation3 + $0x3c] sm:$0x3] %vm370, 0.0
      %502 = vst.msk [vmem:[#allocation3 + $0x3e] sm:$0x3] %vm370, 0.0
      %503 = vst.msk [vmem:[#allocation3 + $0x40] sm:$0x3] %vm370, 0.0
      %504 = vst.msk [vmem:[#allocation3 + $0x42] sm:$0x3] %vm370, 0.0
      %505 = vst.msk [vmem:[#allocation3 + $0x44] sm:$0x3] %vm370, 0.0
      %506 = vst.msk [vmem:[#allocation3 + $0x46] sm:$0x3] %vm370, 0.0
      %507 = vst.msk [vmem:[#allocation4] sm:$0x3] %vm370, 0.0
      %508 = vst.msk [vmem:[#allocation4 + $0x2] sm:$0x3] %vm370, 0.0
      %509 = vst.msk [vmem:[#allocation4 + $0x4] sm:$0x3] %vm370, 0.0
      %510 = vst.msk [vmem:[#allocation4 + $0x6] sm:$0x3] %vm370, 0.0
      %511 = vst.msk [vmem:[#allocation4 + $0x8] sm:$0x3] %vm370, 0.0
      %512 = vst.msk [vmem:[#allocation4 + $0xa] sm:$0x3] %vm370, 0.0
      %513 = vst.msk [vmem:[#allocation4 + $0xc] sm:$0x3] %vm370, 0.0
      %514 = vst.msk [vmem:[#allocation4 + $0xe] sm:$0x3] %vm370, 0.0
      %515 = vst.msk [vmem:[#allocation4 + $0x10] sm:$0x3] %vm370, 0.0
      %516 = vst.msk [vmem:[#allocation4 + $0x12] sm:$0x3] %vm370, 0.0
      %517 = vst.msk [vmem:[#allocation4 + $0x14] sm:$0x3] %vm370, 0.0
      %518 = vst.msk [vmem:[#allocation4 + $0x16] sm:$0x3] %vm370, 0.0
      %519 = vst.msk [vmem:[#allocation4 + $0x18] sm:$0x3] %vm370, 0.0
      %520 = vst.msk [vmem:[#allocation4 + $0x1a] sm:$0x3] %vm370, 0.0
      %521 = vst.msk [vmem:[#allocation4 + $0x1c] sm:$0x3] %vm370, 0.0
      %522 = vst.msk [vmem:[#allocation4 + $0x1e] sm:$0x3] %vm370, 0.0
      %523 = vst.msk [vmem:[#allocation4 + $0x20] sm:$0x3] %vm370, 0.0
      %524 = vst.msk [vmem:[#allocation4 + $0x22] sm:$0x3] %vm370, 0.0
      %525 = vst.msk [vmem:[#allocation4 + $0x24] sm:$0x3] %vm370, 0.0
      %526 = vst.msk [vmem:[#allocation4 + $0x26] sm:$0x3] %vm370, 0.0
      %527 = vst.msk [vmem:[#allocation4 + $0x28] sm:$0x3] %vm370, 0.0
      %528 = vst.msk [vmem:[#allocation4 + $0x2a] sm:$0x3] %vm370, 0.0
      %529 = vst.msk [vmem:[#allocation4 + $0x2c] sm:$0x3] %vm370, 0.0
      %530 = vst.msk [vmem:[#allocation4 + $0x2e] sm:$0x3] %vm370, 0.0
      %531 = vst.msk [vmem:[#allocation4 + $0x30] sm:$0x3] %vm370, 0.0
      %532 = vst.msk [vmem:[#allocation4 + $0x32] sm:$0x3] %vm370, 0.0
      %533 = vst.msk [vmem:[#allocation4 + $0x34] sm:$0x3] %vm370, 0.0
      %534 = vst.msk [vmem:[#allocation4 + $0x36] sm:$0x3] %vm370, 0.0
      %535 = vst.msk [vmem:[#allocation4 + $0x38] sm:$0x3] %vm370, 0.0
      %536 = vst.msk [vmem:[#allocation4 + $0x3a] sm:$0x3] %vm370, 0.0
      %537 = vst.msk [vmem:[#allocation4 + $0x3c] sm:$0x3] %vm370, 0.0
      %538 = vst.msk [vmem:[#allocation4 + $0x3e] sm:$0x3] %vm370, 0.0
      %539 = vst.msk [vmem:[#allocation4 + $0x40] sm:$0x3] %vm370, 0.0
      %540 = vst.msk [vmem:[#allocation4 + $0x42] sm:$0x3] %vm370, 0.0
      %541 = vst.msk [vmem:[#allocation4 + $0x44] sm:$0x3] %vm370, 0.0
      %542 = vst.msk [vmem:[#allocation4 + $0x46] sm:$0x3] %vm370, 0.0
      %v543 = vld [vmem:[%s360] sm:$0xf]
      %v544 = vld [vmem:[%s360 + $0x4] sm:$0xf]
      %v545 = vld [vmem:[%s360 + $0x8] sm:$0xf]
      %v546 = vld [vmem:[%s360 + $0xc] sm:$0xf]
      %v547 = vld [vmem:[%s360 + $0x10] sm:$0xf]
      %v548 = vld [vmem:[%s360 + $0x14] sm:$0xf]
      %v549 = vld [vmem:[%s360 + $0x18] sm:$0xf]
      %v550 = vld [vmem:[%s360 + $0x1c] sm:$0xf]
      %v551 = vld [vmem:[%s360 + $0x20] sm:$0xf]
      %v552 = vld [vmem:[%s360 + $0x24] sm:$0xf]
      %v553 = vld [vmem:[%s360 + $0x28] sm:$0xf]
      %v554 = vld [vmem:[%s360 + $0x2c] sm:$0xf]
      %v555 = vld [vmem:[%s360 + $0x30] sm:$0xf]
      %v556 = vld [vmem:[%s360 + $0x34] sm:$0xf]
      %v557 = vld [vmem:[%s360 + $0x38] sm:$0xf]
      %v558 = vld [vmem:[%s360 + $0x3c] sm:$0xf]
      %v559 = vld [vmem:[%s1] sm:$0xf]
      %v560 = vld [vmem:[%s1 + $0x4] sm:$0xf]
      %v561 = vld [vmem:[%s1 + $0x8] sm:$0xf]
      %v562 = vld [vmem:[%s1 + $0xc] sm:$0xf]
      %v563 = vld [vmem:[%s1 + $0x10] sm:$0xf]
      %v564 = vld [vmem:[%s1 + $0x14] sm:$0xf]
      %v565 = vld [vmem:[%s1 + $0x18] sm:$0xf]
      %v566 = vld [vmem:[%s1 + $0x1c] sm:$0xf]
      %v567 = vld [vmem:[%s2] sm:$0x1]
      %v569 = vlaneseq
      %v570 = vshrl.u32 %v569, 7
      %v571 = vsub.s32 0, %v570
      %v572 = vrot.slane %v567, %v571
      %v590 = vunpack.c.l.b16 %v543
      %v591 = vunpack.c.l.b16 %v544
      %v592 = vunpack.c.l.b16 %v545
      %v593 = vunpack.c.l.b16 %v546
      %v594 = vunpack.c.l.b16 %v547
      %v595 = vunpack.c.l.b16 %v548
      %v596 = vunpack.c.l.b16 %v549
      %v597 = vunpack.c.l.b16 %v550
      %v598 = vunpack.c.l.b16 %v551
      %v599 = vunpack.c.l.b16 %v552
      %v600 = vunpack.c.l.b16 %v553
      %v601 = vunpack.c.l.b16 %v554
      %v602 = vunpack.c.l.b16 %v555
      %v603 = vunpack.c.l.b16 %v556
      %v604 = vunpack.c.l.b16 %v557
      %v605 = vunpack.c.l.b16 %v558
      %v606 = vpack.c.b16 %v591, %v590
      %v607 = vpack.c.b16 %v593, %v592
      %v608 = vpack.c.b16 %v595, %v594
      %v609 = vpack.c.b16 %v597, %v596
      %v610 = vpack.c.b16 %v599, %v598
      %v611 = vpack.c.b16 %v601, %v600
      %v612 = vpack.c.b16 %v603, %v602
      %v613 = vpack.c.b16 %v605, %v604
      %v622 = vunpack.c.l.b16 %v559
      %v623 = vunpack.c.l.b16 %v560
      %v624 = vunpack.c.l.b16 %v561
      %v625 = vunpack.c.l.b16 %v562
      %v626 = vunpack.c.l.b16 %v563
      %v627 = vunpack.c.l.b16 %v564
      %v628 = vunpack.c.l.b16 %v565
      %v629 = vunpack.c.l.b16 %v566
      %v630 = vpack.c.b16 %v623, %v622
      %v631 = vpack.c.b16 %v625, %v624
      %v632 = vpack.c.b16 %v627, %v626
      %v633 = vpack.c.b16 %v629, %v628
      %vm638 = vcmask 523264
      %v640 = vsel %vm638, %v606, 0
      %v643 = vsel %vm638, %v607, 0
      %v646 = vsel %vm638, %v608, 0
      %v649 = vsel %vm638, %v609, 0
      %v652 = vsel %vm638, %v610, 0
      %v655 = vsel %vm638, %v611, 0
      %v658 = vsel %vm638, %v612, 0
      %v661 = vsel %vm638, %v613, 0
      %663 = vmatprep.subr.bf16.mxu0 0
      %664 = vmatpush1.bf16.msra.mxu0 %v630
      %665 = vmatprep.subr.bf16.mxu0 0
      %666 = vmatpush1.bf16.msra.mxu0 %v631
      %667 = vmatprep.subr.bf16.mxu0 0
      %668 = vmatpush1.bf16.msra.mxu0 %v632
      %669 = vmatprep.subr.bf16.mxu0 0
      %670 = vmatpush1.bf16.msra.mxu0 %v633
      %671 = vmatprep.subr.bf16.mxu0 0
      %672 = vmatpush1.bf16.msra.mxu0 0
      %673 = vmatprep.subr.bf16.mxu0 0
      %674 = vmatpush1.bf16.msra.mxu0 0
      %675 = vmatprep.subr.bf16.mxu0 0
      %676 = vmatpush1.bf16.msra.mxu0 0
      %677 = vmatprep.subr.bf16.mxu0 0
      %678 = vmatpush1.bf16.msra.mxu0 0
      %679 = vmatprep.subr.bf16.mxu0 0
      %680 = vmatpush1.bf16.msra.mxu0 0
      %681 = vmatprep.subr.bf16.mxu0 0
      %682 = vmatpush1.bf16.msra.mxu0 0
      %683 = vmatprep.subr.bf16.mxu0 0
      %684 = vmatpush1.bf16.msra.mxu0 0
      %685 = vmatprep.subr.bf16.mxu0 0
      %686 = vmatpush1.bf16.msra.mxu0 0
      %687 = vmatprep.subr.bf16.mxu0 0
      %688 = vmatpush1.bf16.msra.mxu0 0
      %689 = vmatprep.subr.bf16.mxu0 0
      %690 = vmatpush1.bf16.msra.mxu0 0
      %691 = vmatprep.subr.bf16.mxu0 0
      %692 = vmatpush1.bf16.msra.mxu0 0
      %693 = vmatprep.subr.bf16.mxu0 0
      %694 = vmatpush1.bf16.msra.mxu0 0
      %695 = vmatprep.mubr.bf16.mxu0 0
      %696 = vmatmul.mubr.bf16.gmra.mrb[0].mxu0 %v640
      %v697 = vpop.f32.mrb[0].mxu0
      %v698 = vadd.f32 %v572, %v697
      %v699 = vpop.f32.mrb[0].mxu0
      %v700 = vpop.f32.mrb[0].mxu0
      %v701 = vadd.f32 %v572, %v700
      %v702 = vpop.f32.mrb[0].mxu0
      %703 = vmatprep.mubr.bf16.mxu0 0
      %704 = vmatmul.mubr.bf16.gmra.mrb[0].mxu0 %v643
      %v705 = vpop.f32.mrb[0].mxu0
      %v706 = vadd.f32 %v572, %v705
      %v707 = vpop.f32.mrb[0].mxu0
      %v708 = vpop.f32.mrb[0].mxu0
      %v709 = vadd.f32 %v572, %v708
      %v710 = vpop.f32.mrb[0].mxu0
      %711 = vmatprep.mubr.bf16.mxu0 0
      %712 = vmatmul.mubr.bf16.gmra.mrb[0].mxu0 %v646
      %v713 = vpop.f32.mrb[0].mxu0
      %v714 = vadd.f32 %v572, %v713
      %v715 = vpop.f32.mrb[0].mxu0
      %v716 = vpop.f32.mrb[0].mxu0
      %v717 = vadd.f32 %v572, %v716
      %v718 = vpop.f32.mrb[0].mxu0
      %719 = vmatprep.mubr.bf16.mxu0 0
      %720 = vmatmul.mubr.bf16.gmra.mrb[0].mxu0 %v649
      %v721 = vpop.f32.mrb[0].mxu0
      %v722 = vadd.f32 %v572, %v721
      %v723 = vpop.f32.mrb[0].mxu0
      %v724 = vpop.f32.mrb[0].mxu0
      %v725 = vadd.f32 %v572, %v724
      %v726 = vpop.f32.mrb[0].mxu0
      %727 = vmatprep.mubr.bf16.mxu0 0
      %728 = vmatmul.mubr.bf16.gmra.mrb[0].mxu0 %v652
      %v729 = vpop.f32.mrb[0].mxu0
      %v730 = vadd.f32 %v572, %v729
      %v731 = vpop.f32.mrb[0].mxu0
      %v732 = vpop.f32.mrb[0].mxu0
      %v733 = vadd.f32 %v572, %v732
      %v734 = vpop.f32.mrb[0].mxu0
      %735 = vmatprep.mubr.bf16.mxu0 0
      %736 = vmatmul.mubr.bf16.gmra.mrb[0].mxu0 %v655
      %v737 = vpop.f32.mrb[0].mxu0
      %v738 = vadd.f32 %v572, %v737
      %v739 = vpop.f32.mrb[0].mxu0
      %v740 = vpop.f32.mrb[0].mxu0
      %v741 = vadd.f32 %v572, %v740
      %v742 = vpop.f32.mrb[0].mxu0
      %743 = vmatprep.mubr.bf16.mxu0 0
      %744 = vmatmul.mubr.bf16.gmra.mrb[0].mxu0 %v658
      %v745 = vpop.f32.mrb[0].mxu0
      %v746 = vadd.f32 %v572, %v745
      %v747 = vpop.f32.mrb[0].mxu0
      %v748 = vpop.f32.mrb[0].mxu0
      %v749 = vadd.f32 %v572, %v748
      %v750 = vpop.f32.mrb[0].mxu0
      %751 = vmatprep.mubr.bf16.mxu0 0
      %752 = vmatmul.mubr.bf16.gmra.mrb[0].mxu0 %v661
      %v753 = vpop.f32.mrb[0].mxu0
      %v754 = vadd.f32 %v572, %v753
      %v755 = vpop.f32.mrb[0].mxu0
      %v756 = vpop.f32.mrb[0].mxu0
      %v757 = vadd.f32 %v572, %v756
      %v758 = vpop.f32.mrb[0].mxu0
      %759 = vdwg.mxu0
      %v760 = vmax.f32 %v698, 0.0
      %v761 = vmax.f32 %v701, 0.0
      %v762 = vmax.f32 %v706, 0.0
      %v763 = vmax.f32 %v709, 0.0
      %v764 = vmax.f32 %v714, 0.0
      %v765 = vmax.f32 %v717, 0.0
      %v766 = vmax.f32 %v722, 0.0
      %v767 = vmax.f32 %v725, 0.0
      %v768 = vmax.f32 %v730, 0.0
      %v769 = vmax.f32 %v733, 0.0
      %v770 = vmax.f32 %v738, 0.0
      %v771 = vmax.f32 %v741, 0.0
      %v772 = vmax.f32 %v746, 0.0
      %v773 = vmax.f32 %v749, 0.0
      %v774 = vmax.f32 %v754, 0.0
      %v775 = vmax.f32 %v757, 0.0
      %v792 = vcombine.high %v760, %v760
      %v794 = vunpack.c.l.s4 1983009808
      %v795 = vunpack.c.0.s8 %v794
      %v796 = vlaneseq
      %v797 = vshrl.u32 %v796, 7
      %v798 = vsub.s32 %v795, %v797
      %v799 = vrot.slane %v760, %v798
      %v801 = vunpack.c.l.s4 1983009808
      %v802 = vunpack.c.0.s8 %v801
      %v803 = vlaneseq
      %v804 = vshrl.u32 %v803, 7
      %v805 = vsub.s32 %v802, %v804
      %v806 = vrot.slane %v792, %v805
      %v807 = vcombine.high %v799, %v799
      %v808 = vcombine.high %v806, %v806
      %v809 = vcombine.high %v761, %v761
      %v811 = vunpack.c.l.s4 1983009808
      %v812 = vunpack.c.0.s8 %v811
      %v813 = vlaneseq
      %v814 = vshrl.u32 %v813, 7
      %v815 = vsub.s32 %v812, %v814
      %v816 = vrot.slane %v761, %v815
      %v818 = vunpack.c.l.s4 1983009808
      %v819 = vunpack.c.0.s8 %v818
      %v820 = vlaneseq
      %v821 = vshrl.u32 %v820, 7
      %v822 = vsub.s32 %v819, %v821
      %v823 = vrot.slane %v809, %v822
      %v824 = vcombine.high %v816, %v816
      %v825 = vcombine.high %v823, %v823
      %v826 = vcombine.high %v762, %v762
      %v828 = vunpack.c.l.s4 1983009808
      %v829 = vunpack.c.0.s8 %v828
      %v830 = vlaneseq
      %v831 = vshrl.u32 %v830, 7
      %v832 = vsub.s32 %v829, %v831
      %v833 = vrot.slane %v762, %v832
      %v835 = vunpack.c.l.s4 1983009808
      %v836 = vunpack.c.0.s8 %v835
      %v837 = vlaneseq
      %v838 = vshrl.u32 %v837, 7
      %v839 = vsub.s32 %v836, %v838
      %v840 = vrot.slane %v826, %v839
      %v841 = vcombine.high %v833, %v833
      %v842 = vcombine.high %v840, %v840
      %v843 = vcombine.high %v763, %v763
      %v845 = vunpack.c.l.s4 1983009808
      %v846 = vunpack.c.0.s8 %v845
      %v847 = vlaneseq
      %v848 = vshrl.u32 %v847, 7
      %v849 = vsub.s32 %v846, %v848
      %v850 = vrot.slane %v763, %v849
      %v852 = vunpack.c.l.s4 1983009808
      %v853 = vunpack.c.0.s8 %v852
      %v854 = vlaneseq
      %v855 = vshrl.u32 %v854, 7
      %v856 = vsub.s32 %v853, %v855
      %v857 = vrot.slane %v843, %v856
      %v858 = vcombine.high %v850, %v850
      %v859 = vcombine.high %v857, %v857
      %v860 = vcombine.high %v764, %v764
      %v862 = vunpack.c.l.s4 1983009808
      %v863 = vunpack.c.0.s8 %v862
      %v864 = vlaneseq
      %v865 = vshrl.u32 %v864, 7
      %v866 = vsub.s32 %v863, %v865
      %v867 = vrot.slane %v764, %v866
      %v869 = vunpack.c.l.s4 1983009808
      %v870 = vunpack.c.0.s8 %v869
      %v871 = vlaneseq
      %v872 = vshrl.u32 %v871, 7
      %v873 = vsub.s32 %v870, %v872
      %v874 = vrot.slane %v860, %v873
      %v875 = vcombine.high %v867, %v867
      %v876 = vcombine.high %v874, %v874
      %v877 = vcombine.high %v765, %v765
      %v879 = vunpack.c.l.s4 1983009808
      %v880 = vunpack.c.0.s8 %v879
      %v881 = vlaneseq
      %v882 = vshrl.u32 %v881, 7
      %v883 = vsub.s32 %v880, %v882
      %v884 = vrot.slane %v765, %v883
      %v886 = vunpack.c.l.s4 1983009808
      %v887 = vunpack.c.0.s8 %v886
      %v888 = vlaneseq
      %v889 = vshrl.u32 %v888, 7
      %v890 = vsub.s32 %v887, %v889
      %v891 = vrot.slane %v877, %v890
      %v892 = vcombine.high %v884, %v884
      %v893 = vcombine.high %v891, %v891
      %v894 = vcombine.high %v766, %v766
      %v896 = vunpack.c.l.s4 1983009808
      %v897 = vunpack.c.0.s8 %v896
      %v898 = vlaneseq
      %v899 = vshrl.u32 %v898, 7
      %v900 = vsub.s32 %v897, %v899
      %v901 = vrot.slane %v766, %v900
      %v903 = vunpack.c.l.s4 1983009808
      %v904 = vunpack.c.0.s8 %v903
      %v905 = vlaneseq
      %v906 = vshrl.u32 %v905, 7
      %v907 = vsub.s32 %v904, %v906
      %v908 = vrot.slane %v894, %v907
      %v909 = vcombine.high %v901, %v901
      %v910 = vcombine.high %v908, %v908
      %v911 = vcombine.high %v767, %v767
      %v913 = vunpack.c.l.s4 1983009808
      %v914 = vunpack.c.0.s8 %v913
      %v915 = vlaneseq
      %v916 = vshrl.u32 %v915, 7
      %v917 = vsub.s32 %v914, %v916
      %v918 = vrot.slane %v767, %v917
      %v920 = vunpack.c.l.s4 1983009808
      %v921 = vunpack.c.0.s8 %v920
      %v922 = vlaneseq
      %v923 = vshrl.u32 %v922, 7
      %v924 = vsub.s32 %v921, %v923
      %v925 = vrot.slane %v911, %v924
      %v926 = vcombine.high %v918, %v918
      %v927 = vcombine.high %v925, %v925
      %v928 = vcombine.high %v768, %v768
      %v930 = vunpack.c.l.s4 1983009808
      %v931 = vunpack.c.0.s8 %v930
      %v932 = vlaneseq
      %v933 = vshrl.u32 %v932, 7
      %v934 = vsub.s32 %v931, %v933
      %v935 = vrot.slane %v768, %v934
      %v937 = vunpack.c.l.s4 1983009808
      %v938 = vunpack.c.0.s8 %v937
      %v939 = vlaneseq
      %v940 = vshrl.u32 %v939, 7
      %v941 = vsub.s32 %v938, %v940
      %v942 = vrot.slane %v928, %v941
      %v943 = vcombine.high %v935, %v935
      %v944 = vcombine.high %v942, %v942
      %v945 = vcombine.high %v769, %v769
      %v947 = vunpack.c.l.s4 1983009808
      %v948 = vunpack.c.0.s8 %v947
      %v949 = vlaneseq
      %v950 = vshrl.u32 %v949, 7
      %v951 = vsub.s32 %v948, %v950
      %v952 = vrot.slane %v769, %v951
      %v954 = vunpack.c.l.s4 1983009808
      %v955 = vunpack.c.0.s8 %v954
      %v956 = vlaneseq
      %v957 = vshrl.u32 %v956, 7
      %v958 = vsub.s32 %v955, %v957
      %v959 = vrot.slane %v945, %v958
      %v960 = vcombine.high %v952, %v952
      %v961 = vcombine.high %v959, %v959
      %v962 = vcombine.high %v770, %v770
      %v964 = vunpack.c.l.s4 1983009808
      %v965 = vunpack.c.0.s8 %v964
      %v966 = vlaneseq
      %v967 = vshrl.u32 %v966, 7
      %v968 = vsub.s32 %v965, %v967
      %v969 = vrot.slane %v770, %v968
      %v971 = vunpack.c.l.s4 1983009808
      %v972 = vunpack.c.0.s8 %v971
      %v973 = vlaneseq
      %v974 = vshrl.u32 %v973, 7
      %v975 = vsub.s32 %v972, %v974
      %v976 = vrot.slane %v962, %v975
      %v977 = vcombine.high %v969, %v969
      %v978 = vcombine.high %v976, %v976
      %v979 = vcombine.high %v771, %v771
      %v981 = vunpack.c.l.s4 1983009808
      %v982 = vunpack.c.0.s8 %v981
      %v983 = vlaneseq
      %v984 = vshrl.u32 %v983, 7
      %v985 = vsub.s32 %v982, %v984
      %v986 = vrot.slane %v771, %v985
      %v988 = vunpack.c.l.s4 1983009808
      %v989 = vunpack.c.0.s8 %v988
      %v990 = vlaneseq
      %v991 = vshrl.u32 %v990, 7
      %v992 = vsub.s32 %v989, %v991
      %v993 = vrot.slane %v979, %v992
      %v994 = vcombine.high %v986, %v986
      %v995 = vcombine.high %v993, %v993
      %v996 = vcombine.high %v772, %v772
      %v998 = vunpack.c.l.s4 1983009808
      %v999 = vunpack.c.0.s8 %v998
      %v1000 = vlaneseq
      %v1001 = vshrl.u32 %v1000, 7
      %v1002 = vsub.s32 %v999, %v1001
      %v1003 = vrot.slane %v772, %v1002
      %v1005 = vunpack.c.l.s4 1983009808
      %v1006 = vunpack.c.0.s8 %v1005
      %v1007 = vlaneseq
      %v1008 = vshrl.u32 %v1007, 7
      %v1009 = vsub.s32 %v1006, %v1008
      %v1010 = vrot.slane %v996, %v1009
      %v1011 = vcombine.high %v1003, %v1003
      %v1012 = vcombine.high %v1010, %v1010
      %v1013 = vcombine.high %v773, %v773
      %v1015 = vunpack.c.l.s4 1983009808
      %v1016 = vunpack.c.0.s8 %v1015
      %v1017 = vlaneseq
      %v1018 = vshrl.u32 %v1017, 7
      %v1019 = vsub.s32 %v1016, %v1018
      %v1020 = vrot.slane %v773, %v1019
      %v1022 = vunpack.c.l.s4 1983009808
      %v1023 = vunpack.c.0.s8 %v1022
      %v1024 = vlaneseq
      %v1025 = vshrl.u32 %v1024, 7
      %v1026 = vsub.s32 %v1023, %v1025
      %v1027 = vrot.slane %v1013, %v1026
      %v1028 = vcombine.high %v1020, %v1020
      %v1029 = vcombine.high %v1027, %v1027
      %v1030 = vcombine.high %v774, %v774
      %v1032 = vunpack.c.l.s4 1983009808
      %v1033 = vunpack.c.0.s8 %v1032
      %v1034 = vlaneseq
      %v1035 = vshrl.u32 %v1034, 7
      %v1036 = vsub.s32 %v1033, %v1035
      %v1037 = vrot.slane %v774, %v1036
      %v1039 = vunpack.c.l.s4 1983009808
      %v1040 = vunpack.c.0.s8 %v1039
      %v1041 = vlaneseq
      %v1042 = vshrl.u32 %v1041, 7
      %v1043 = vsub.s32 %v1040, %v1042
      %v1044 = vrot.slane %v1030, %v1043
      %v1045 = vcombine.high %v1037, %v1037
      %v1046 = vcombine.high %v1044, %v1044
      %v1047 = vcombine.high %v775, %v775
      %v1049 = vunpack.c.l.s4 1983009808
      %v1050 = vunpack.c.0.s8 %v1049
      %v1051 = vlaneseq
      %v1052 = vshrl.u32 %v1051, 7
      %v1053 = vsub.s32 %v1050, %v1052
      %v1054 = vrot.slane %v775, %v1053
      %v1056 = vunpack.c.l.s4 1983009808
      %v1057 = vunpack.c.0.s8 %v1056
      %v1058 = vlaneseq
      %v1059 = vshrl.u32 %v1058, 7
      %v1060 = vsub.s32 %v1057, %v1059
      %v1061 = vrot.slane %v1047, %v1060
      %v1062 = vcombine.high %v1054, %v1054
      %v1063 = vcombine.high %v1061, %v1061
      %s1128 = scalar_lea.vmem [#allocation2], 22
      %1129 = vst.msk [vmem:[%s1128] sm:$0x3] %vm370, %v799
      %1130 = vst.msk [vmem:[%s1128 + $0x2] sm:$0x3] %vm370, %v807
      %1131 = vst.msk [vmem:[%s1128 + $0x4] sm:$0x3] %vm370, %v806
      %1132 = vst.msk [vmem:[%s1128 + $0x6] sm:$0x3] %vm370, %v808
      %1133 = vst.msk [vmem:[%s1128 + $0x8] sm:$0x3] %vm370, %v816
      %1134 = vst.msk [vmem:[%s1128 + $0xa] sm:$0x3] %vm370, %v824
      %1135 = vst.msk [vmem:[%s1128 + $0xc] sm:$0x3] %vm370, %v823
      %1136 = vst.msk [vmem:[%s1128 + $0xe] sm:$0x3] %vm370, %v825
      %1137 = vst.msk [vmem:[%s1128 + $0x14] sm:$0x3] %vm370, %v833
      %1138 = vst.msk [vmem:[%s1128 + $0x16] sm:$0x3] %vm370, %v841
      %1139 = vst.msk [vmem:[%s1128 + $0x18] sm:$0x3] %vm370, %v840
      %1140 = vst.msk [vmem:[%s1128 + $0x1a] sm:$0x3] %vm370, %v842
      %1141 = vst.msk [vmem:[%s1128 + $0x1c] sm:$0x3] %vm370, %v850
      %1142 = vst.msk [vmem:[%s1128 + $0x1e] sm:$0x3] %vm370, %v858
      %1143 = vst.msk [vmem:[%s1128 + $0x20] sm:$0x3] %vm370, %v857
      %1144 = vst.msk [vmem:[%s1128 + $0x22] sm:$0x3] %vm370, %v859
      %1145 = vst.msk [vmem:[%s1128 + $0x28] sm:$0x3] %vm370, %v867
      %1146 = vst.msk [vmem:[%s1128 + $0x2a] sm:$0x3] %vm370, %v875
      %1147 = vst.msk [vmem:[%s1128 + $0x2c] sm:$0x3] %vm370, %v874
      %1148 = vst.msk [vmem:[%s1128 + $0x2e] sm:$0x3] %vm370, %v876
      %1149 = vst.msk [vmem:[%s1128 + $0x30] sm:$0x3] %vm370, %v884
      %1150 = vst.msk [vmem:[%s1128 + $0x32] sm:$0x3] %vm370, %v892
      %1151 = vst.msk [vmem:[%s1128 + $0x34] sm:$0x3] %vm370, %v891
      %1152 = vst.msk [vmem:[%s1128 + $0x36] sm:$0x3] %vm370, %v893
      %1153 = vst.msk [vmem:[%s1128 + $0x3c] sm:$0x3] %vm370, %v901
      %1154 = vst.msk [vmem:[%s1128 + $0x3e] sm:$0x3] %vm370, %v909
      %1155 = vst.msk [vmem:[%s1128 + $0x40] sm:$0x3] %vm370, %v908
      %1156 = vst.msk [vmem:[%s1128 + $0x42] sm:$0x3] %vm370, %v910
      %1157 = vst.msk [vmem:[%s1128 + $0x44] sm:$0x3] %vm370, %v918
      %1158 = vst.msk [vmem:[%s1128 + $0x46] sm:$0x3] %vm370, %v926
      %1159 = vst.msk [vmem:[%s1128 + $0x48] sm:$0x3] %vm370, %v925
      %1160 = vst.msk [vmem:[%s1128 + $0x4a] sm:$0x3] %vm370, %v927
      %1161 = vst.msk [vmem:[%s1128 + $0x50] sm:$0x3] %vm370, %v935
      %1162 = vst.msk [vmem:[%s1128 + $0x52] sm:$0x3] %vm370, %v943
      %1163 = vst.msk [vmem:[%s1128 + $0x54] sm:$0x3] %vm370, %v942
      %1164 = vst.msk [vmem:[%s1128 + $0x56] sm:$0x3] %vm370, %v944
      %1165 = vst.msk [vmem:[%s1128 + $0x58] sm:$0x3] %vm370, %v952
      %1166 = vst.msk [vmem:[%s1128 + $0x5a] sm:$0x3] %vm370, %v960
      %1167 = vst.msk [vmem:[%s1128 + $0x5c] sm:$0x3] %vm370, %v959
      %1168 = vst.msk [vmem:[%s1128 + $0x5e] sm:$0x3] %vm370, %v961
      %1169 = vst.msk [vmem:[%s1128 + $0x64] sm:$0x3] %vm370, %v969
      %1170 = vst.msk [vmem:[%s1128 + $0x66] sm:$0x3] %vm370, %v977
      %1171 = vst.msk [vmem:[%s1128 + $0x68] sm:$0x3] %vm370, %v976
      %1172 = vst.msk [vmem:[%s1128 + $0x6a] sm:$0x3] %vm370, %v978
      %1173 = vst.msk [vmem:[%s1128 + $0x6c] sm:$0x3] %vm370, %v986
      %1174 = vst.msk [vmem:[%s1128 + $0x6e] sm:$0x3] %vm370, %v994
      %1175 = vst.msk [vmem:[%s1128 + $0x70] sm:$0x3] %vm370, %v993
      %1176 = vst.msk [vmem:[%s1128 + $0x72] sm:$0x3] %vm370, %v995
      %1177 = vst.msk [vmem:[%s1128 + $0x78] sm:$0x3] %vm370, %v1003
      %1178 = vst.msk [vmem:[%s1128 + $0x7a] sm:$0x3] %vm370, %v1011
      %1179 = vst.msk [vmem:[%s1128 + $0x7c] sm:$0x3] %vm370, %v1010
      %1180 = vst.msk [vmem:[%s1128 + $0x7e] sm:$0x3] %vm370, %v1012
      %1181 = vst.msk [vmem:[%s1128 + $0x80] sm:$0x3] %vm370, %v1020
      %1182 = vst.msk [vmem:[%s1128 + $0x82] sm:$0x3] %vm370, %v1028
      %1183 = vst.msk [vmem:[%s1128 + $0x84] sm:$0x3] %vm370, %v1027
      %1184 = vst.msk [vmem:[%s1128 + $0x86] sm:$0x3] %vm370, %v1029
      %1185 = vst.msk [vmem:[%s1128 + $0x8c] sm:$0x3] %vm370, %v1037
      %1186 = vst.msk [vmem:[%s1128 + $0x8e] sm:$0x3] %vm370, %v1045
      %1187 = vst.msk [vmem:[%s1128 + $0x90] sm:$0x3] %vm370, %v1044
      %1188 = vst.msk [vmem:[%s1128 + $0x92] sm:$0x3] %vm370, %v1046
      %1189 = vst.msk [vmem:[%s1128 + $0x94] sm:$0x3] %vm370, %v1054
      %1190 = vst.msk [vmem:[%s1128 + $0x96] sm:$0x3] %vm370, %v1062
      %1191 = vst.msk [vmem:[%s1128 + $0x98] sm:$0x3] %vm370, %v1061
      %1192 = vst.msk [vmem:[%s1128 + $0x9a] sm:$0x3] %vm370, %v1063
      %v1193 = vld [vmem:[#allocation2] sm:$0x3]
      %v1194 = vld [vmem:[#allocation2 + $0x2] sm:$0x3]
      %v1195 = vld [vmem:[#allocation2 + $0x4] sm:$0x3]
      %v1196 = vld [vmem:[#allocation2 + $0x6] sm:$0x3]
      %v1197 = vld [vmem:[#allocation2 + $0x8] sm:$0x3]
      %v1198 = vld [vmem:[#allocation2 + $0xa] sm:$0x3]
      %v1199 = vld [vmem:[#allocation2 + $0xc] sm:$0x3]
      %v1200 = vld [vmem:[#allocation2 + $0xe] sm:$0x3]
      %v1201 = vld [vmem:[#allocation2 + $0x10] sm:$0x3]
      %v1202 = vld [vmem:[#allocation2 + $0x14] sm:$0x3]
      %v1203 = vld [vmem:[#allocation2 + $0x16] sm:$0x3]
      %v1204 = vld [vmem:[#allocation2 + $0x18] sm:$0x3]
      %v1205 = vld [vmem:[#allocation2 + $0x1a] sm:$0x3]
      %v1206 = vld [vmem:[#allocation2 + $0x1c] sm:$0x3]
      %v1207 = vld [vmem:[#allocation2 + $0x1e] sm:$0x3]
      %v1208 = vld [vmem:[#allocation2 + $0x20] sm:$0x3]
      %v1209 = vld [vmem:[#allocation2 + $0x22] sm:$0x3]
      %v1210 = vld [vmem:[#allocation2 + $0x24] sm:$0x3]
      %v1211 = vld [vmem:[#allocation2 + $0x28] sm:$0x3]
      %v1212 = vld [vmem:[#allocation2 + $0x2a] sm:$0x3]
      %v1213 = vld [vmem:[#allocation2 + $0x2c] sm:$0x3]
      %v1214 = vld [vmem:[#allocation2 + $0x2e] sm:$0x3]
      %v1215 = vld [vmem:[#allocation2 + $0x30] sm:$0x3]
      %v1216 = vld [vmem:[#allocation2 + $0x32] sm:$0x3]
      %v1217 = vld [vmem:[#allocation2 + $0x34] sm:$0x3]
      %v1218 = vld [vmem:[#allocation2 + $0x36] sm:$0x3]
      %v1219 = vld [vmem:[#allocation2 + $0x38] sm:$0x3]
      %v1220 = vld [vmem:[#allocation2 + $0x3c] sm:$0x3]
      %v1221 = vld [vmem:[#allocation2 + $0x3e] sm:$0x3]
      %v1222 = vld [vmem:[#allocation2 + $0x40] sm:$0x3]
      %v1223 = vld [vmem:[#allocation2 + $0x42] sm:$0x3]
      %v1224 = vld [vmem:[#allocation2 + $0x44] sm:$0x3]
      %v1225 = vld [vmem:[#allocation2 + $0x46] sm:$0x3]
      %v1226 = vld [vmem:[#allocation2 + $0x48] sm:$0x3]
      %v1227 = vld [vmem:[#allocation2 + $0x4a] sm:$0x3]
      %v1228 = vld [vmem:[#allocation2 + $0x4c] sm:$0x3]
      %v1229 = vld [vmem:[#allocation2 + $0x50] sm:$0x3]
      %v1230 = vld [vmem:[#allocation2 + $0x52] sm:$0x3]
      %v1231 = vld [vmem:[#allocation2 + $0x54] sm:$0x3]
      %v1232 = vld [vmem:[#allocation2 + $0x56] sm:$0x3]
      %v1233 = vld [vmem:[#allocation2 + $0x58] sm:$0x3]
      %v1234 = vld [vmem:[#allocation2 + $0x5a] sm:$0x3]
      %v1235 = vld [vmem:[#allocation2 + $0x5c] sm:$0x3]
      %v1236 = vld [vmem:[#allocation2 + $0x5e] sm:$0x3]
      %v1237 = vld [vmem:[#allocation2 + $0x60] sm:$0x3]
      %v1238 = vld [vmem:[#allocation2 + $0x64] sm:$0x3]
      %v1239 = vld [vmem:[#allocation2 + $0x66] sm:$0x3]
      %v1240 = vld [vmem:[#allocation2 + $0x68] sm:$0x3]
      %v1241 = vld [vmem:[#allocation2 + $0x6a] sm:$0x3]
      %v1242 = vld [vmem:[#allocation2 + $0x6c] sm:$0x3]
      %v1243 = vld [vmem:[#allocation2 + $0x6e] sm:$0x3]
      %v1244 = vld [vmem:[#allocation2 + $0x70] sm:$0x3]
      %v1245 = vld [vmem:[#allocation2 + $0x72] sm:$0x3]
      %v1246 = vld [vmem:[#allocation2 + $0x74] sm:$0x3]
      %v1247 = vld [vmem:[#allocation2 + $0x78] sm:$0x3]
      %v1248 = vld [vmem:[#allocation2 + $0x7a] sm:$0x3]
      %v1249 = vld [vmem:[#allocation2 + $0x7c] sm:$0x3]
      %v1250 = vld [vmem:[#allocation2 + $0x7e] sm:$0x3]
      %v1251 = vld [vmem:[#allocation2 + $0x80] sm:$0x3]
      %v1252 = vld [vmem:[#allocation2 + $0x82] sm:$0x3]
      %v1253 = vld [vmem:[#allocation2 + $0x84] sm:$0x3]
      %v1254 = vld [vmem:[#allocation2 + $0x86] sm:$0x3]
      %v1255 = vld [vmem:[#allocation2 + $0x88] sm:$0x3]
      %v1256 = vld [vmem:[#allocation2 + $0x8c] sm:$0x3]
      %v1257 = vld [vmem:[#allocation2 + $0x8e] sm:$0x3]
      %v1258 = vld [vmem:[#allocation2 + $0x90] sm:$0x3]
      %v1259 = vld [vmem:[#allocation2 + $0x92] sm:$0x3]
      %v1260 = vld [vmem:[#allocation2 + $0x94] sm:$0x3]
      %v1261 = vld [vmem:[#allocation2 + $0x96] sm:$0x3]
      %v1262 = vld [vmem:[#allocation2 + $0x98] sm:$0x3]
      %v1263 = vld [vmem:[#allocation2 + $0x9a] sm:$0x3]
      %v1264 = vld [vmem:[#allocation2 + $0x9c] sm:$0x3]
      %v1265 = vld [vmem:[#allocation2 + $0xa0] sm:$0x3]
      %v1266 = vld [vmem:[#allocation2 + $0xa2] sm:$0x3]
      %v1267 = vld [vmem:[#allocation2 + $0xa4] sm:$0x3]
      %v1268 = vld [vmem:[#allocation2 + $0xa6] sm:$0x3]
      %v1269 = vld [vmem:[#allocation2 + $0xa8] sm:$0x3]
      %v1270 = vld [vmem:[#allocation2 + $0xaa] sm:$0x3]
      %v1271 = vld [vmem:[#allocation2 + $0xac] sm:$0x3]
      %v1272 = vld [vmem:[#allocation2 + $0xae] sm:$0x3]
      %v1273 = vld [vmem:[#allocation2 + $0xb0] sm:$0x3]
      %v1274 = vmax.f32 %v1193, %v1202
      %v1275 = vmax.f32 %v1194, %v1203
      %v1276 = vmax.f32 %v1195, %v1204
      %v1277 = vmax.f32 %v1196, %v1205
      %v1278 = vmax.f32 %v1197, %v1206
      %v1279 = vmax.f32 %v1198, %v1207
      %v1280 = vmax.f32 %v1199, %v1208
      %v1281 = vmax.f32 %v1200, %v1209
      %v1282 = vmax.f32 %v1201, %v1210
      %v1283 = vmax.f32 %v1274, %v1211
      %v1284 = vmax.f32 %v1275, %v1212
      %v1285 = vmax.f32 %v1276, %v1213
      %v1286 = vmax.f32 %v1277, %v1214
      %v1287 = vmax.f32 %v1278, %v1215
      %v1288 = vmax.f32 %v1279, %v1216
      %v1289 = vmax.f32 %v1280, %v1217
      %v1290 = vmax.f32 %v1281, %v1218
      %v1291 = vmax.f32 %v1282, %v1219
      %v1292 = vmax.f32 %v1283, %v1284
      %v1293 = vmax.f32 %v1292, %v1285
      %s1294 = scalar_lea.vmem [#allocation3], 14
      %1295 = vst.msk [vmem:[%s1294] sm:$0x3] %vm370, %v1293
      %v1296 = vmax.f32 %v1285, %v1286
      %v1297 = vmax.f32 %v1296, %v1287
      %s1298 = scalar_lea.vmem [#allocation3], 16
      %1299 = vst.msk [vmem:[%s1298] sm:$0x3] %vm370, %v1297
      %v1300 = vmax.f32 %v1287, %v1288
      %v1301 = vmax.f32 %v1300, %v1289
      %s1302 = scalar_lea.vmem [#allocation3], 18
      %1303 = vst.msk [vmem:[%s1302] sm:$0x3] %vm370, %v1301
      %v1304 = vmax.f32 %v1289, %v1290
      %v1305 = vmax.f32 %v1304, %v1291
      %s1306 = scalar_lea.vmem [#allocation3], 20
      %1307 = vst.msk [vmem:[%s1306] sm:$0x3] %vm370, %v1305
      %v1308 = vmax.f32 %v1211, %v1220
      %v1309 = vmax.f32 %v1212, %v1221
      %v1310 = vmax.f32 %v1213, %v1222
      %v1311 = vmax.f32 %v1214, %v1223
      %v1312 = vmax.f32 %v1215, %v1224
      %v1313 = vmax.f32 %v1216, %v1225
      %v1314 = vmax.f32 %v1217, %v1226
      %v1315 = vmax.f32 %v1218, %v1227
      %v1316 = vmax.f32 %v1219, %v1228
      %v1317 = vmax.f32 %v1308, %v1229
      %v1318 = vmax.f32 %v1309, %v1230
      %v1319 = vmax.f32 %v1310, %v1231
      %v1320 = vmax.f32 %v1311, %v1232
      %v1321 = vmax.f32 %v1312, %v1233
      %v1322 = vmax.f32 %v1313, %v1234
      %v1323 = vmax.f32 %v1314, %v1235
      %v1324 = vmax.f32 %v1315, %v1236
      %v1325 = vmax.f32 %v1316, %v1237
      %v1326 = vmax.f32 %v1317, %v1318
      %v1327 = vmax.f32 %v1326, %v1319
      %s1328 = scalar_lea.vmem [#allocation3], 26
      %1329 = vst.msk [vmem:[%s1328] sm:$0x3] %vm370, %v1327
      %v1330 = vmax.f32 %v1319, %v1320
      %v1331 = vmax.f32 %v1330, %v1321
      %s1332 = scalar_lea.vmem [#allocation3], 28
      %1333 = vst.msk [vmem:[%s1332] sm:$0x3] %vm370, %v1331
      %v1334 = vmax.f32 %v1321, %v1322
      %v1335 = vmax.f32 %v1334, %v1323
      %s1336 = scalar_lea.vmem [#allocation3], 30
      %1337 = vst.msk [vmem:[%s1336] sm:$0x3] %vm370, %v1335
      %v1338 = vmax.f32 %v1323, %v1324
      %v1339 = vmax.f32 %v1338, %v1325
      %s1340 = scalar_lea.vmem [#allocation3], 32
      %1341 = vst.msk [vmem:[%s1340] sm:$0x3] %vm370, %v1339
      %v1342 = vmax.f32 %v1229, %v1238
      %v1343 = vmax.f32 %v1230, %v1239
      %v1344 = vmax.f32 %v1231, %v1240
      %v1345 = vmax.f32 %v1232, %v1241
      %v1346 = vmax.f32 %v1233, %v1242
      %v1347 = vmax.f32 %v1234, %v1243
      %v1348 = vmax.f32 %v1235, %v1244
      %v1349 = vmax.f32 %v1236, %v1245
      %v1350 = vmax.f32 %v1237, %v1246
      %v1351 = vmax.f32 %v1342, %v1247
      %v1352 = vmax.f32 %v1343, %v1248
      %v1353 = vmax.f32 %v1344, %v1249
      %v1354 = vmax.f32 %v1345, %v1250
      %v1355 = vmax.f32 %v1346, %v1251
      %v1356 = vmax.f32 %v1347, %v1252
      %v1357 = vmax.f32 %v1348, %v1253
      %v1358 = vmax.f32 %v1349, %v1254
      %v1359 = vmax.f32 %v1350, %v1255
      %v1360 = vmax.f32 %v1351, %v1352
      %v1361 = vmax.f32 %v1360, %v1353
      %s1362 = scalar_lea.vmem [#allocation3], 38
      %1363 = vst.msk [vmem:[%s1362] sm:$0x3] %vm370, %v1361
      %v1364 = vmax.f32 %v1353, %v1354
      %v1365 = vmax.f32 %v1364, %v1355
      %s1366 = scalar_lea.vmem [#allocation3], 40
      %1367 = vst.msk [vmem:[%s1366] sm:$0x3] %vm370, %v1365
      %v1368 = vmax.f32 %v1355, %v1356
      %v1369 = vmax.f32 %v1368, %v1357
      %s1370 = scalar_lea.vmem [#allocation3], 42
      %1371 = vst.msk [vmem:[%s1370] sm:$0x3] %vm370, %v1369
      %v1372 = vmax.f32 %v1357, %v1358
      %v1373 = vmax.f32 %v1372, %v1359
      %s1374 = scalar_lea.vmem [#allocation3], 44
      %1375 = vst.msk [vmem:[%s1374] sm:$0x3] %vm370, %v1373
      %v1376 = vmax.f32 %v1247, %v1256
      %v1377 = vmax.f32 %v1248, %v1257
      %v1378 = vmax.f32 %v1249, %v1258
      %v1379 = vmax.f32 %v1250, %v1259
      %v1380 = vmax.f32 %v1251, %v1260
      %v1381 = vmax.f32 %v1252, %v1261
      %v1382 = vmax.f32 %v1253, %v1262
      %v1383 = vmax.f32 %v1254, %v1263
      %v1384 = vmax.f32 %v1255, %v1264
      %v1385 = vmax.f32 %v1376, %v1265
      %v1386 = vmax.f32 %v1377, %v1266
      %v1387 = vmax.f32 %v1378, %v1267
      %v1388 = vmax.f32 %v1379, %v1268
      %v1389 = vmax.f32 %v1380, %v1269
      %v1390 = vmax.f32 %v1381, %v1270
      %v1391 = vmax.f32 %v1382, %v1271
      %v1392 = vmax.f32 %v1383, %v1272
      %v1393 = vmax.f32 %v1384, %v1273
      %v1394 = vmax.f32 %v1385, %v1386
      %v1395 = vmax.f32 %v1394, %v1387
      %s1396 = scalar_lea.vmem [#allocation3], 50
      %1397 = vst.msk [vmem:[%s1396] sm:$0x3] %vm370, %v1395
      %v1398 = vmax.f32 %v1387, %v1388
      %v1399 = vmax.f32 %v1398, %v1389
      %s1400 = scalar_lea.vmem [#allocation3], 52
      %1401 = vst.msk [vmem:[%s1400] sm:$0x3] %vm370, %v1399
      %v1402 = vmax.f32 %v1389, %v1390
      %v1403 = vmax.f32 %v1402, %v1391
      %s1404 = scalar_lea.vmem [#allocation3], 54
      %1405 = vst.msk [vmem:[%s1404] sm:$0x3] %vm370, %v1403
      %v1406 = vmax.f32 %v1391, %v1392
      %v1407 = vmax.f32 %v1406, %v1393
      %s1408 = scalar_lea.vmem [#allocation3], 56
      %1409 = vst.msk [vmem:[%s1408] sm:$0x3] %vm370, %v1407
      %v1410 = vld [vmem:[#allocation3] sm:$0x3]
      %v1411 = vld [vmem:[#allocation3 + $0x2] sm:$0x3]
      %v1412 = vld [vmem:[#allocation3 + $0x4] sm:$0x3]
      %v1413 = vld [vmem:[#allocation3 + $0x6] sm:$0x3]
      %v1414 = vld [vmem:[#allocation3 + $0x8] sm:$0x3]
      %v1415 = vld [vmem:[#allocation3 + $0xa] sm:$0x3]
      %v1416 = vld [vmem:[#allocation3 + $0xc] sm:$0x3]
      %v1417 = vld [vmem:[#allocation3 + $0xe] sm:$0x3]
      %v1418 = vld [vmem:[#allocation3 + $0x10] sm:$0x3]
      %v1419 = vld [vmem:[#allocation3 + $0x12] sm:$0x3]
      %v1420 = vld [vmem:[#allocation3 + $0x14] sm:$0x3]
      %v1421 = vld [vmem:[#allocation3 + $0x16] sm:$0x3]
      %v1422 = vld [vmem:[#allocation3 + $0x18] sm:$0x3]
      %v1423 = vld [vmem:[#allocation3 + $0x1a] sm:$0x3]
      %v1424 = vld [vmem:[#allocation3 + $0x1c] sm:$0x3]
      %v1425 = vld [vmem:[#allocation3 + $0x1e] sm:$0x3]
      %v1426 = vld [vmem:[#allocation3 + $0x20] sm:$0x3]
      %v1427 = vld [vmem:[#allocation3 + $0x22] sm:$0x3]
      %v1428 = vld [vmem:[#allocation3 + $0x24] sm:$0x3]
      %v1429 = vld [vmem:[#allocation3 + $0x26] sm:$0x3]
      %v1430 = vld [vmem:[#allocation3 + $0x28] sm:$0x3]
      %v1431 = vld [vmem:[#allocation3 + $0x2a] sm:$0x3]
      %v1432 = vld [vmem:[#allocation3 + $0x2c] sm:$0x3]
      %v1433 = vld [vmem:[#allocation3 + $0x2e] sm:$0x3]
      %v1434 = vld [vmem:[#allocation3 + $0x30] sm:$0x3]
      %v1435 = vld [vmem:[#allocation3 + $0x32] sm:$0x3]
      %v1436 = vld [vmem:[#allocation3 + $0x34] sm:$0x3]
      %v1437 = vld [vmem:[#allocation3 + $0x36] sm:$0x3]
      %v1438 = vld [vmem:[#allocation3 + $0x38] sm:$0x3]
      %v1439 = vld [vmem:[#allocation3 + $0x3a] sm:$0x3]
      %v1440 = vld [vmem:[#allocation3 + $0x3c] sm:$0x3]
      %v1441 = vld [vmem:[#allocation3 + $0x3e] sm:$0x3]
      %v1442 = vld [vmem:[#allocation3 + $0x40] sm:$0x3]
      %v1443 = vld [vmem:[#allocation3 + $0x42] sm:$0x3]
      %v1444 = vld [vmem:[#allocation3 + $0x44] sm:$0x3]
      %v1445 = vld [vmem:[#allocation3 + $0x46] sm:$0x3]
      %v1462 = vcombine.low %v1410, %v1411
      %v1463 = vcombine.low %v1412, %v1413
      %v1465 = vunpack.c.l.s4 1983009808
      %v1466 = vunpack.c.0.s8 %v1465
      %v1467 = vlaneseq
      %v1468 = vshrl.u32 %v1467, 7
      %v1469 = vsub.s32 %v1466, %v1468
      %v1470 = vrot.slane %v1462, %v1469
      %v1472 = vunpack.c.l.s4 1983009808
      %v1473 = vunpack.c.0.s8 %v1472
      %v1474 = vlaneseq
      %v1475 = vshrl.u32 %v1474, 7
      %v1476 = vsub.s32 %v1473, %v1475
      %v1477 = vrot.slane %v1463, %v1476
      %v1478 = vcombine.low %v1470, %v1477
      %v1479 = vcombine.low %v1416, %v1417
      %v1480 = vcombine.low %v1418, %v1419
      %v1482 = vunpack.c.l.s4 1983009808
      %v1483 = vunpack.c.0.s8 %v1482
      %v1484 = vlaneseq
      %v1485 = vshrl.u32 %v1484, 7
      %v1486 = vsub.s32 %v1483, %v1485
      %v1487 = vrot.slane %v1479, %v1486
      %v1489 = vunpack.c.l.s4 1983009808
      %v1490 = vunpack.c.0.s8 %v1489
      %v1491 = vlaneseq
      %v1492 = vshrl.u32 %v1491, 7
      %v1493 = vsub.s32 %v1490, %v1492
      %v1494 = vrot.slane %v1480, %v1493
      %v1495 = vcombine.low %v1487, %v1494
      %v1496 = vcombine.low %v1422, %v1423
      %v1497 = vcombine.low %v1424, %v1425
      %v1499 = vunpack.c.l.s4 1983009808
      %v1500 = vunpack.c.0.s8 %v1499
      %v1501 = vlaneseq
      %v1502 = vshrl.u32 %v1501, 7
      %v1503 = vsub.s32 %v1500, %v1502
      %v1504 = vrot.slane %v1496, %v1503
      %v1506 = vunpack.c.l.s4 1983009808
      %v1507 = vunpack.c.0.s8 %v1506
      %v1508 = vlaneseq
      %v1509 = vshrl.u32 %v1508, 7
      %v1510 = vsub.s32 %v1507, %v1509
      %v1511 = vrot.slane %v1497, %v1510
      %v1512 = vcombine.low %v1504, %v1511
      %v1513 = vcombine.low %v1428, %v1429
      %v1514 = vcombine.low %v1430, %v1431
      %v1516 = vunpack.c.l.s4 1983009808
      %v1517 = vunpack.c.0.s8 %v1516
      %v1518 = vlaneseq
      %v1519 = vshrl.u32 %v1518, 7
      %v1520 = vsub.s32 %v1517, %v1519
      %v1521 = vrot.slane %v1513, %v1520
      %v1523 = vunpack.c.l.s4 1983009808
      %v1524 = vunpack.c.0.s8 %v1523
      %v1525 = vlaneseq
      %v1526 = vshrl.u32 %v1525, 7
      %v1527 = vsub.s32 %v1524, %v1526
      %v1528 = vrot.slane %v1514, %v1527
      %v1529 = vcombine.low %v1521, %v1528
      %v1534 = vpack.c.bf16 %v1495, %v1478
      %v1535 = vpack.c.bf16 %v1529, %v1512
      %v1536 = vld [vmem:[%s3] sm:$0xf]
      %v1537 = vld [vmem:[%s3 + $0x4] sm:$0xf]
      %v1538 = vld [vmem:[%s3 + $0x8] sm:$0xf]
      %v1539 = vld [vmem:[%s3 + $0xc] sm:$0xf]
      %v1540 = vld [vmem:[%s3 + $0x10] sm:$0xf]
      %v1541 = vld [vmem:[%s3 + $0x14] sm:$0xf]
      %v1542 = vld [vmem:[%s3 + $0x18] sm:$0xf]
      %v1543 = vld [vmem:[%s3 + $0x1c] sm:$0xf]
      %v1548 = vcombine.low %v1411, %v1412
      %v1549 = vcombine.low %v1413, %v1414
      %v1551 = vunpack.c.l.s4 1983009808
      %v1552 = vunpack.c.0.s8 %v1551
      %v1553 = vlaneseq
      %v1554 = vshrl.u32 %v1553, 7
      %v1555 = vsub.s32 %v1552, %v1554
      %v1556 = vrot.slane %v1548, %v1555
      %v1558 = vunpack.c.l.s4 1983009808
      %v1559 = vunpack.c.0.s8 %v1558
      %v1560 = vlaneseq
      %v1561 = vshrl.u32 %v1560, 7
      %v1562 = vsub.s32 %v1559, %v1561
      %v1563 = vrot.slane %v1549, %v1562
      %v1564 = vcombine.low %v1556, %v1563
      %v1565 = vcombine.low %v1417, %v1418
      %v1566 = vcombine.low %v1419, %v1420
      %v1568 = vunpack.c.l.s4 1983009808
      %v1569 = vunpack.c.0.s8 %v1568
      %v1570 = vlaneseq
      %v1571 = vshrl.u32 %v1570, 7
      %v1572 = vsub.s32 %v1569, %v1571
      %v1573 = vrot.slane %v1565, %v1572
      %v1575 = vunpack.c.l.s4 1983009808
      %v1576 = vunpack.c.0.s8 %v1575
      %v1577 = vlaneseq
      %v1578 = vshrl.u32 %v1577, 7
      %v1579 = vsub.s32 %v1576, %v1578
      %v1580 = vrot.slane %v1566, %v1579
      %v1581 = vcombine.low %v1573, %v1580
      %v1582 = vcombine.low %v1423, %v1424
      %v1583 = vcombine.low %v1425, %v1426
      %v1585 = vunpack.c.l.s4 1983009808
      %v1586 = vunpack.c.0.s8 %v1585
      %v1587 = vlaneseq
      %v1588 = vshrl.u32 %v1587, 7
      %v1589 = vsub.s32 %v1586, %v1588
      %v1590 = vrot.slane %v1582, %v1589
      %v1592 = vunpack.c.l.s4 1983009808
      %v1593 = vunpack.c.0.s8 %v1592
      %v1594 = vlaneseq
      %v1595 = vshrl.u32 %v1594, 7
      %v1596 = vsub.s32 %v1593, %v1595
      %v1597 = vrot.slane %v1583, %v1596
      %v1598 = vcombine.low %v1590, %v1597
      %v1599 = vcombine.low %v1429, %v1430
      %v1600 = vcombine.low %v1431, %v1432
      %v1602 = vunpack.c.l.s4 1983009808
      %v1603 = vunpack.c.0.s8 %v1602
      %v1604 = vlaneseq
      %v1605 = vshrl.u32 %v1604, 7
      %v1606 = vsub.s32 %v1603, %v1605
      %v1607 = vrot.slane %v1599, %v1606
      %v1609 = vunpack.c.l.s4 1983009808
      %v1610 = vunpack.c.0.s8 %v1609
      %v1611 = vlaneseq
      %v1612 = vshrl.u32 %v1611, 7
      %v1613 = vsub.s32 %v1610, %v1612
      %v1614 = vrot.slane %v1600, %v1613
      %v1615 = vcombine.low %v1607, %v1614
      %v1620 = vpack.c.bf16 %v1581, %v1564
      %v1621 = vpack.c.bf16 %v1615, %v1598
      %s1622 = scalar_lea.vmem %s3, 32
      %v1623 = vld [vmem:[%s1622] sm:$0xf]
      %v1624 = vld [vmem:[%s1622 + $0x4] sm:$0xf]
      %v1625 = vld [vmem:[%s1622 + $0x8] sm:$0xf]
      %v1626 = vld [vmem:[%s1622 + $0xc] sm:$0xf]
      %v1627 = vld [vmem:[%s1622 + $0x10] sm:$0xf]
      %v1628 = vld [vmem:[%s1622 + $0x14] sm:$0xf]
      %v1629 = vld [vmem:[%s1622 + $0x18] sm:$0xf]
      %v1630 = vld [vmem:[%s1622 + $0x1c] sm:$0xf]
      %v1639 = vunpack.c.l.b16 %v1623
      %v1640 = vunpack.c.l.b16 %v1624
      %v1641 = vunpack.c.l.b16 %v1625
      %v1642 = vunpack.c.l.b16 %v1626
      %v1643 = vunpack.c.l.b16 %v1627
      %v1644 = vunpack.c.l.b16 %v1628
      %v1645 = vunpack.c.l.b16 %v1629
      %v1646 = vunpack.c.l.b16 %v1630
      %v1647 = vpack.c.b16 %v1640, %v1639
      %v1648 = vpack.c.b16 %v1642, %v1641
      %v1649 = vpack.c.b16 %v1644, %v1643
      %v1650 = vpack.c.b16 %v1646, %v1645
      %v1656 = vsel %vm638, %v1620, 0
      %v1659 = vsel %vm638, %v1621, 0
      %1661 = vmatprep.subr.bf16.mxu0 0
      %1662 = vmatpush1.bf16.msra.mxu0 %v1647
      %1663 = vmatprep.subr.bf16.mxu0 0
      %1664 = vmatpush1.bf16.msra.mxu0 %v1648
      %1665 = vmatprep.subr.bf16.mxu0 0
      %1666 = vmatpush1.bf16.msra.mxu0 %v1649
      %1667 = vmatprep.subr.bf16.mxu0 0
      %1668 = vmatpush1.bf16.msra.mxu0 %v1650
      %1669 = vmatprep.subr.bf16.mxu0 0
      %1670 = vmatpush1.bf16.msra.mxu0 0
      %1671 = vmatprep.subr.bf16.mxu0 0
      %1672 = vmatpush1.bf16.msra.mxu0 0
      %1673 = vmatprep.subr.bf16.mxu0 0
      %1674 = vmatpush1.bf16.msra.mxu0 0
      %1675 = vmatprep.subr.bf16.mxu0 0
      %1676 = vmatpush1.bf16.msra.mxu0 0
      %1677 = vmatprep.subr.bf16.mxu0 0
      %1678 = vmatpush1.bf16.msra.mxu0 0
      %1679 = vmatprep.subr.bf16.mxu0 0
      %1680 = vmatpush1.bf16.msra.mxu0 0
      %1681 = vmatprep.subr.bf16.mxu0 0
      %1682 = vmatpush1.bf16.msra.mxu0 0
      %1683 = vmatprep.subr.bf16.mxu0 0
      %1684 = vmatpush1.bf16.msra.mxu0 0
      %1685 = vmatprep.subr.bf16.mxu0 0
      %1686 = vmatpush1.bf16.msra.mxu0 0
      %1687 = vmatprep.subr.bf16.mxu0 0
      %1688 = vmatpush1.bf16.msra.mxu0 0
      %1689 = vmatprep.subr.bf16.mxu0 0
      %1690 = vmatpush1.bf16.msra.mxu0 0
      %1691 = vmatprep.subr.bf16.mxu0 0
      %1692 = vmatpush1.bf16.msra.mxu0 0
      %1693 = vmatprep.mubr.bf16.mxu0 0
      %1694 = vmatmul.mubr.bf16.gmra.mrb[0].mxu0 %v1656
      %v1695 = vpop.f32.mrb[0].mxu0
      %v1696 = vadd.f32 0.0, %v1695
      %v1697 = vpop.f32.mrb[0].mxu0
      %v1698 = vpop.f32.mrb[0].mxu0
      %v1699 = vadd.f32 0.0, %v1698
      %v1700 = vpop.f32.mrb[0].mxu0
      %1701 = vmatprep.mubr.bf16.mxu0 0
      %1702 = vmatmul.mubr.bf16.gmra.mrb[0].mxu0 %v1659
      %v1703 = vpop.f32.mrb[0].mxu0
      %v1704 = vadd.f32 0.0, %v1703
      %v1705 = vpop.f32.mrb[0].mxu0
      %v1706 = vpop.f32.mrb[0].mxu0
      %v1707 = vadd.f32 0.0, %v1706
      %v1708 = vpop.f32.mrb[0].mxu0
      %1709 = vdwg.mxu0
      %v1718 = vunpack.c.l.b16 %v1536
      %v1719 = vunpack.c.l.b16 %v1537
      %v1720 = vunpack.c.l.b16 %v1538
      %v1721 = vunpack.c.l.b16 %v1539
      %v1722 = vunpack.c.l.b16 %v1540
      %v1723 = vunpack.c.l.b16 %v1541
      %v1724 = vunpack.c.l.b16 %v1542
      %v1725 = vunpack.c.l.b16 %v1543
      %v1726 = vpack.c.b16 %v1719, %v1718
      %v1727 = vpack.c.b16 %v1721, %v1720
      %v1728 = vpack.c.b16 %v1723, %v1722
      %v1729 = vpack.c.b16 %v1725, %v1724
      %v1735 = vsel %vm638, %v1534, 0
      %v1738 = vsel %vm638, %v1535, 0
      %1740 = vmatprep.subr.bf16.mxu0 0
      %1741 = vmatpush1.bf16.msra.mxu0 %v1726
      %1742 = vmatprep.subr.bf16.mxu0 0
      %1743 = vmatpush1.bf16.msra.mxu0 %v1727
      %1744 = vmatprep.subr.bf16.mxu0 0
      %1745 = vmatpush1.bf16.msra.mxu0 %v1728
      %1746 = vmatprep.subr.bf16.mxu0 0
      %1747 = vmatpush1.bf16.msra.mxu0 %v1729
      %1748 = vmatprep.subr.bf16.mxu0 0
      %1749 = vmatpush1.bf16.msra.mxu0 0
      %1750 = vmatprep.subr.bf16.mxu0 0
      %1751 = vmatpush1.bf16.msra.mxu0 0
      %1752 = vmatprep.subr.bf16.mxu0 0
      %1753 = vmatpush1.bf16.msra.mxu0 0
      %1754 = vmatprep.subr.bf16.mxu0 0
      %1755 = vmatpush1.bf16.msra.mxu0 0
      %1756 = vmatprep.subr.bf16.mxu0 0
      %1757 = vmatpush1.bf16.msra.mxu0 0
      %1758 = vmatprep.subr.bf16.mxu0 0
      %1759 = vmatpush1.bf16.msra.mxu0 0
      %1760 = vmatprep.subr.bf16.mxu0 0
      %1761 = vmatpush1.bf16.msra.mxu0 0
      %1762 = vmatprep.subr.bf16.mxu0 0
      %1763 = vmatpush1.bf16.msra.mxu0 0
      %1764 = vmatprep.subr.bf16.mxu0 0
      %1765 = vmatpush1.bf16.msra.mxu0 0
      %1766 = vmatprep.subr.bf16.mxu0 0
      %1767 = vmatpush1.bf16.msra.mxu0 0
      %1768 = vmatprep.subr.bf16.mxu0 0
      %1769 = vmatpush1.bf16.msra.mxu0 0
      %1770 = vmatprep.subr.bf16.mxu0 0
      %1771 = vmatpush1.bf16.msra.mxu0 0
      %1772 = vmatprep.mubr.bf16.mxu0 0
      %1773 = vmatmul.mubr.bf16.gmra.mrb[0].mxu0 %v1735
      %v1774 = vpop.f32.mrb[0].mxu0
      %v1775 = vadd.f32 %v1696, %v1774
      %v1776 = vpop.f32.mrb[0].mxu0
      %v1777 = vpop.f32.mrb[0].mxu0
      %v1778 = vadd.f32 %v1699, %v1777
      %v1779 = vpop.f32.mrb[0].mxu0
      %1780 = vmatprep.mubr.bf16.mxu0 0
      %1781 = vmatmul.mubr.bf16.gmra.mrb[0].mxu0 %v1738
      %v1782 = vpop.f32.mrb[0].mxu0
      %v1783 = vadd.f32 %v1704, %v1782
      %v1784 = vpop.f32.mrb[0].mxu0
      %v1785 = vpop.f32.mrb[0].mxu0
      %v1786 = vadd.f32 %v1707, %v1785
      %v1787 = vpop.f32.mrb[0].mxu0
      %1788 = vdwg.mxu0
      %v1793 = vcombine.low %v1414, %v1415
      %v1795 = vunpack.c.l.s4 1983009808
      %v1796 = vunpack.c.0.s8 %v1795
      %v1797 = vlaneseq
      %v1798 = vshrl.u32 %v1797, 7
      %v1799 = vsub.s32 %v1796, %v1798
      %v1800 = vrot.slane %v1793, %v1799
      %v1801 = vcombine.low %v1477, %v1800
      %v1802 = vcombine.low %v1420, %v1421
      %v1804 = vunpack.c.l.s4 1983009808
      %v1805 = vunpack.c.0.s8 %v1804
      %v1806 = vlaneseq
      %v1807 = vshrl.u32 %v1806, 7
      %v1808 = vsub.s32 %v1805, %v1807
      %v1809 = vrot.slane %v1802, %v1808
      %v1810 = vcombine.low %v1494, %v1809
      %v1811 = vcombine.low %v1426, %v1427
      %v1813 = vunpack.c.l.s4 1983009808
      %v1814 = vunpack.c.0.s8 %v1813
      %v1815 = vlaneseq
      %v1816 = vshrl.u32 %v1815, 7
      %v1817 = vsub.s32 %v1814, %v1816
      %v1818 = vrot.slane %v1811, %v1817
      %v1819 = vcombine.low %v1511, %v1818
      %v1820 = vcombine.low %v1432, %v1433
      %v1822 = vunpack.c.l.s4 1983009808
      %v1823 = vunpack.c.0.s8 %v1822
      %v1824 = vlaneseq
      %v1825 = vshrl.u32 %v1824, 7
      %v1826 = vsub.s32 %v1823, %v1825
      %v1827 = vrot.slane %v1820, %v1826
      %v1828 = vcombine.low %v1528, %v1827
      %v1833 = vpack.c.bf16 %v1810, %v1801
      %v1834 = vpack.c.bf16 %v1828, %v1819
      %s1835 = scalar_lea.vmem %s3, 64
      %v1836 = vld [vmem:[%s1835] sm:$0xf]
      %v1837 = vld [vmem:[%s1835 + $0x4] sm:$0xf]
      %v1838 = vld [vmem:[%s1835 + $0x8] sm:$0xf]
      %v1839 = vld [vmem:[%s1835 + $0xc] sm:$0xf]
      %v1840 = vld [vmem:[%s1835 + $0x10] sm:$0xf]
      %v1841 = vld [vmem:[%s1835 + $0x14] sm:$0xf]
      %v1842 = vld [vmem:[%s1835 + $0x18] sm:$0xf]
      %v1843 = vld [vmem:[%s1835 + $0x1c] sm:$0xf]
      %v1852 = vunpack.c.l.b16 %v1836
      %v1853 = vunpack.c.l.b16 %v1837
      %v1854 = vunpack.c.l.b16 %v1838
      %v1855 = vunpack.c.l.b16 %v1839
      %v1856 = vunpack.c.l.b16 %v1840
      %v1857 = vunpack.c.l.b16 %v1841
      %v1858 = vunpack.c.l.b16 %v1842
      %v1859 = vunpack.c.l.b16 %v1843
      %v1860 = vpack.c.b16 %v1853, %v1852
      %v1861 = vpack.c.b16 %v1855, %v1854
      %v1862 = vpack.c.b16 %v1857, %v1856
      %v1863 = vpack.c.b16 %v1859, %v1858
      %v1869 = vsel %vm638, %v1833, 0
      %v1872 = vsel %vm638, %v1834, 0
      %1874 = vmatprep.subr.bf16.mxu0 0
      %1875 = vmatpush1.bf16.msra.mxu0 %v1860
      %1876 = vmatprep.subr.bf16.mxu0 0
      %1877 = vmatpush1.bf16.msra.mxu0 %v1861
      %1878 = vmatprep.subr.bf16.mxu0 0
      %1879 = vmatpush1.bf16.msra.mxu0 %v1862
      %1880 = vmatprep.subr.bf16.mxu0 0
      %1881 = vmatpush1.bf16.msra.mxu0 %v1863
      %1882 = vmatprep.subr.bf16.mxu0 0
      %1883 = vmatpush1.bf16.msra.mxu0 0
      %1884 = vmatprep.subr.bf16.mxu0 0
      %1885 = vmatpush1.bf16.msra.mxu0 0
      %1886 = vmatprep.subr.bf16.mxu0 0
      %1887 = vmatpush1.bf16.msra.mxu0 0
      %1888 = vmatprep.subr.bf16.mxu0 0
      %1889 = vmatpush1.bf16.msra.mxu0 0
      %1890 = vmatprep.subr.bf16.mxu0 0
      %1891 = vmatpush1.bf16.msra.mxu0 0
      %1892 = vmatprep.subr.bf16.mxu0 0
      %1893 = vmatpush1.bf16.msra.mxu0 0
      %1894 = vmatprep.subr.bf16.mxu0 0
      %1895 = vmatpush1.bf16.msra.mxu0 0
      %1896 = vmatprep.subr.bf16.mxu0 0
      %1897 = vmatpush1.bf16.msra.mxu0 0
      %1898 = vmatprep.subr.bf16.mxu0 0
      %1899 = vmatpush1.bf16.msra.mxu0 0
      %1900 = vmatprep.subr.bf16.mxu0 0
      %1901 = vmatpush1.bf16.msra.mxu0 0
      %1902 = vmatprep.subr.bf16.mxu0 0
      %1903 = vmatpush1.bf16.msra.mxu0 0
      %1904 = vmatprep.subr.bf16.mxu0 0
      %1905 = vmatpush1.bf16.msra.mxu0 0
      %1906 = vmatprep.mubr.bf16.mxu0 0
      %1907 = vmatmul.mubr.bf16.gmra.mrb[0].mxu0 %v1869
      %v1908 = vpop.f32.mrb[0].mxu0
      %v1909 = vadd.f32 0.0, %v1908
      %v1910 = vpop.f32.mrb[0].mxu0
      %v1911 = vpop.f32.mrb[0].mxu0
      %v1912 = vadd.f32 0.0, %v1911
      %v1913 = vpop.f32.mrb[0].mxu0
      %1914 = vmatprep.mubr.bf16.mxu0 0
      %1915 = vmatmul.mubr.bf16.gmra.mrb[0].mxu0 %v1872
      %v1916 = vpop.f32.mrb[0].mxu0
      %v1917 = vadd.f32 0.0, %v1916
      %v1918 = vpop.f32.mrb[0].mxu0
      %v1919 = vpop.f32.mrb[0].mxu0
      %v1920 = vadd.f32 0.0, %v1919
      %v1921 = vpop.f32.mrb[0].mxu0
      %1922 = vdwg.mxu0
      %v1923 = vadd.f32 %v1775, %v1909
      %v1924 = vadd.f32 %v1778, %v1912
      %v1925 = vadd.f32 %v1783, %v1917
      %v1926 = vadd.f32 %v1786, %v1920
      %v1931 = vcombine.low %v1434, %v1435
      %v1932 = vcombine.low %v1436, %v1437
      %v1934 = vunpack.c.l.s4 1983009808
      %v1935 = vunpack.c.0.s8 %v1934
      %v1936 = vlaneseq
      %v1937 = vshrl.u32 %v1936, 7
      %v1938 = vsub.s32 %v1935, %v1937
      %v1939 = vrot.slane %v1931, %v1938
      %v1941 = vunpack.c.l.s4 1983009808
      %v1942 = vunpack.c.0.s8 %v1941
      %v1943 = vlaneseq
      %v1944 = vshrl.u32 %v1943, 7
      %v1945 = vsub.s32 %v1942, %v1944
      %v1946 = vrot.slane %v1932, %v1945
      %v1947 = vcombine.low %v1939, %v1946
      %v1949 = vpack.c.bf16 %v1512, %v1495
      %v1950 = vpack.c.bf16 %v1947, %v1529
      %s1951 = scalar_lea.vmem %s3, 96
      %v1952 = vld [vmem:[%s1951] sm:$0xf]
      %v1953 = vld [vmem:[%s1951 + $0x4] sm:$0xf]
      %v1954 = vld [vmem:[%s1951 + $0x8] sm:$0xf]
      %v1955 = vld [vmem:[%s1951 + $0xc] sm:$0xf]
      %v1956 = vld [vmem:[%s1951 + $0x10] sm:$0xf]
      %v1957 = vld [vmem:[%s1951 + $0x14] sm:$0xf]
      %v1958 = vld [vmem:[%s1951 + $0x18] sm:$0xf]
      %v1959 = vld [vmem:[%s1951 + $0x1c] sm:$0xf]
      %v1968 = vunpack.c.l.b16 %v1952
      %v1969 = vunpack.c.l.b16 %v1953
      %v1970 = vunpack.c.l.b16 %v1954
      %v1971 = vunpack.c.l.b16 %v1955
      %v1972 = vunpack.c.l.b16 %v1956
      %v1973 = vunpack.c.l.b16 %v1957
      %v1974 = vunpack.c.l.b16 %v1958
      %v1975 = vunpack.c.l.b16 %v1959
      %v1976 = vpack.c.b16 %v1969, %v1968
      %v1977 = vpack.c.b16 %v1971, %v1970
      %v1978 = vpack.c.b16 %v1973, %v1972
      %v1979 = vpack.c.b16 %v1975, %v1974
      %v1985 = vsel %vm638, %v1949, 0
      %v1988 = vsel %vm638, %v1950, 0
      %1990 = vmatprep.subr.bf16.mxu0 0
      %1991 = vmatpush1.bf16.msra.mxu0 %v1976
      %1992 = vmatprep.subr.bf16.mxu0 0
      %1993 = vmatpush1.bf16.msra.mxu0 %v1977
      %1994 = vmatprep.subr.bf16.mxu0 0
      %1995 = vmatpush1.bf16.msra.mxu0 %v1978
      %1996 = vmatprep.subr.bf16.mxu0 0
      %1997 = vmatpush1.bf16.msra.mxu0 %v1979
      %1998 = vmatprep.subr.bf16.mxu0 0
      %1999 = vmatpush1.bf16.msra.mxu0 0
      %2000 = vmatprep.subr.bf16.mxu0 0
      %2001 = vmatpush1.bf16.msra.mxu0 0
      %2002 = vmatprep.subr.bf16.mxu0 0
      %2003 = vmatpush1.bf16.msra.mxu0 0
      %2004 = vmatprep.subr.bf16.mxu0 0
      %2005 = vmatpush1.bf16.msra.mxu0 0
      %2006 = vmatprep.subr.bf16.mxu0 0
      %2007 = vmatpush1.bf16.msra.mxu0 0
      %2008 = vmatprep.subr.bf16.mxu0 0
      %2009 = vmatpush1.bf16.msra.mxu0 0
      %2010 = vmatprep.subr.bf16.mxu0 0
      %2011 = vmatpush1.bf16.msra.mxu0 0
      %2012 = vmatprep.subr.bf16.mxu0 0
      %2013 = vmatpush1.bf16.msra.mxu0 0
      %2014 = vmatprep.subr.bf16.mxu0 0
      %2015 = vmatpush1.bf16.msra.mxu0 0
      %2016 = vmatprep.subr.bf16.mxu0 0
      %2017 = vmatpush1.bf16.msra.mxu0 0
      %2018 = vmatprep.subr.bf16.mxu0 0
      %2019 = vmatpush1.bf16.msra.mxu0 0
      %2020 = vmatprep.subr.bf16.mxu0 0
      %2021 = vmatpush1.bf16.msra.mxu0 0
      %2022 = vmatprep.mubr.bf16.mxu0 0
      %2023 = vmatmul.mubr.bf16.gmra.mrb[0].mxu0 %v1985
      %v2024 = vpop.f32.mrb[0].mxu0
      %v2025 = vadd.f32 0.0, %v2024
      %v2026 = vpop.f32.mrb[0].mxu0
      %v2027 = vpop.f32.mrb[0].mxu0
      %v2028 = vadd.f32 0.0, %v2027
      %v2029 = vpop.f32.mrb[0].mxu0
      %2030 = vmatprep.mubr.bf16.mxu0 0
      %2031 = vmatmul.mubr.bf16.gmra.mrb[0].mxu0 %v1988
      %v2032 = vpop.f32.mrb[0].mxu0
      %v2033 = vadd.f32 0.0, %v2032
      %v2034 = vpop.f32.mrb[0].mxu0
      %v2035 = vpop.f32.mrb[0].mxu0
      %v2036 = vadd.f32 0.0, %v2035
      %v2037 = vpop.f32.mrb[0].mxu0
      %2038 = vdwg.mxu0
      %v2039 = vadd.f32 %v1923, %v2025
      %v2040 = vadd.f32 %v1924, %v2028
      %v2041 = vadd.f32 %v1925, %v2033
      %v2042 = vadd.f32 %v1926, %v2036
      %v2044 = vcombine.low %v1435, %v1436
      %v2045 = vcombine.low %v1437, %v1438
      %v2047 = vunpack.c.l.s4 1983009808
      %v2048 = vunpack.c.0.s8 %v2047
      %v2049 = vlaneseq
      %v2050 = vshrl.u32 %v2049, 7
      %v2051 = vsub.s32 %v2048, %v2050
      %v2052 = vrot.slane %v2044, %v2051
      %v2054 = vunpack.c.l.s4 1983009808
      %v2055 = vunpack.c.0.s8 %v2054
      %v2056 = vlaneseq
      %v2057 = vshrl.u32 %v2056, 7
      %v2058 = vsub.s32 %v2055, %v2057
      %v2059 = vrot.slane %v2045, %v2058
      %v2060 = vcombine.low %v2052, %v2059
      %v2062 = vpack.c.bf16 %v1598, %v1581
      %v2063 = vpack.c.bf16 %v2060, %v1615
      %s2064 = scalar_lea.vmem %s3, 128
      %v2065 = vld [vmem:[%s2064] sm:$0xf]
      %v2066 = vld [vmem:[%s2064 + $0x4] sm:$0xf]
      %v2067 = vld [vmem:[%s2064 + $0x8] sm:$0xf]
      %v2068 = vld [vmem:[%s2064 + $0xc] sm:$0xf]
      %v2069 = vld [vmem:[%s2064 + $0x10] sm:$0xf]
      %v2070 = vld [vmem:[%s2064 + $0x14] sm:$0xf]
      %v2071 = vld [vmem:[%s2064 + $0x18] sm:$0xf]
      %v2072 = vld [vmem:[%s2064 + $0x1c] sm:$0xf]
      %v2081 = vunpack.c.l.b16 %v2065
      %v2082 = vunpack.c.l.b16 %v2066
      %v2083 = vunpack.c.l.b16 %v2067
      %v2084 = vunpack.c.l.b16 %v2068
      %v2085 = vunpack.c.l.b16 %v2069
      %v2086 = vunpack.c.l.b16 %v2070
      %v2087 = vunpack.c.l.b16 %v2071
      %v2088 = vunpack.c.l.b16 %v2072
      %v2089 = vpack.c.b16 %v2082, %v2081
      %v2090 = vpack.c.b16 %v2084, %v2083
      %v2091 = vpack.c.b16 %v2086, %v2085
      %v2092 = vpack.c.b16 %v2088, %v2087
      %v2098 = vsel %vm638, %v2062, 0
      %v2101 = vsel %vm638, %v2063, 0
      %2103 = vmatprep.subr.bf16.mxu0 0
      %2104 = vmatpush1.bf16.msra.mxu0 %v2089
      %2105 = vmatprep.subr.bf16.mxu0 0
      %2106 = vmatpush1.bf16.msra.mxu0 %v2090
      %2107 = vmatprep.subr.bf16.mxu0 0
      %2108 = vmatpush1.bf16.msra.mxu0 %v2091
      %2109 = vmatprep.subr.bf16.mxu0 0
      %2110 = vmatpush1.bf16.msra.mxu0 %v2092
      %2111 = vmatprep.subr.bf16.mxu0 0
      %2112 = vmatpush1.bf16.msra.mxu0 0
      %2113 = vmatprep.subr.bf16.mxu0 0
      %2114 = vmatpush1.bf16.msra.mxu0 0
      %2115 = vmatprep.subr.bf16.mxu0 0
      %2116 = vmatpush1.bf16.msra.mxu0 0
      %2117 = vmatprep.subr.bf16.mxu0 0
      %2118 = vmatpush1.bf16.msra.mxu0 0
      %2119 = vmatprep.subr.bf16.mxu0 0
      %2120 = vmatpush1.bf16.msra.mxu0 0
      %2121 = vmatprep.subr.bf16.mxu0 0
      %2122 = vmatpush1.bf16.msra.mxu0 0
      %2123 = vmatprep.subr.bf16.mxu0 0
      %2124 = vmatpush1.bf16.msra.mxu0 0
      %2125 = vmatprep.subr.bf16.mxu0 0
      %2126 = vmatpush1.bf16.msra.mxu0 0
      %2127 = vmatprep.subr.bf16.mxu0 0
      %2128 = vmatpush1.bf16.msra.mxu0 0
      %2129 = vmatprep.subr.bf16.mxu0 0
      %2130 = vmatpush1.bf16.msra.mxu0 0
      %2131 = vmatprep.subr.bf16.mxu0 0
      %2132 = vmatpush1.bf16.msra.mxu0 0
      %2133 = vmatprep.subr.bf16.mxu0 0
      %2134 = vmatpush1.bf16.msra.mxu0 0
      %2135 = vmatprep.mubr.bf16.mxu0 0
      %2136 = vmatmul.mubr.bf16.gmra.mrb[0].mxu0 %v2098
      %v2137 = vpop.f32.mrb[0].mxu0
      %v2138 = vadd.f32 0.0, %v2137
      %v2139 = vpop.f32.mrb[0].mxu0
      %v2140 = vpop.f32.mrb[0].mxu0
      %v2141 = vadd.f32 0.0, %v2140
      %v2142 = vpop.f32.mrb[0].mxu0
      %2143 = vmatprep.mubr.bf16.mxu0 0
      %2144 = vmatmul.mubr.bf16.gmra.mrb[0].mxu0 %v2101
      %v2145 = vpop.f32.mrb[0].mxu0
      %v2146 = vadd.f32 0.0, %v2145
      %v2147 = vpop.f32.mrb[0].mxu0
      %v2148 = vpop.f32.mrb[0].mxu0
      %v2149 = vadd.f32 0.0, %v2148
      %v2150 = vpop.f32.mrb[0].mxu0
      %2151 = vdwg.mxu0
      %v2152 = vadd.f32 %v2039, %v2138
      %v2153 = vadd.f32 %v2040, %v2141
      %v2154 = vadd.f32 %v2041, %v2146
      %v2155 = vadd.f32 %v2042, %v2149
      %v2157 = vcombine.low %v1438, %v1439
      %v2159 = vunpack.c.l.s4 1983009808
      %v2160 = vunpack.c.0.s8 %v2159
      %v2161 = vlaneseq
      %v2162 = vshrl.u32 %v2161, 7
      %v2163 = vsub.s32 %v2160, %v2162
      %v2164 = vrot.slane %v2157, %v2163
      %v2165 = vcombine.low %v1946, %v2164
      %v2167 = vpack.c.bf16 %v1819, %v1810
      %v2168 = vpack.c.bf16 %v2165, %v1828
      %s2169 = scalar_lea.vmem %s3, 160
      %v2170 = vld [vmem:[%s2169] sm:$0xf]
      %v2171 = vld [vmem:[%s2169 + $0x4] sm:$0xf]
      %v2172 = vld [vmem:[%s2169 + $0x8] sm:$0xf]
      %v2173 = vld [vmem:[%s2169 + $0xc] sm:$0xf]
      %v2174 = vld [vmem:[%s2169 + $0x10] sm:$0xf]
      %v2175 = vld [vmem:[%s2169 + $0x14] sm:$0xf]
      %v2176 = vld [vmem:[%s2169 + $0x18] sm:$0xf]
      %v2177 = vld [vmem:[%s2169 + $0x1c] sm:$0xf]
      %v2186 = vunpack.c.l.b16 %v2170
      %v2187 = vunpack.c.l.b16 %v2171
      %v2188 = vunpack.c.l.b16 %v2172
      %v2189 = vunpack.c.l.b16 %v2173
      %v2190 = vunpack.c.l.b16 %v2174
      %v2191 = vunpack.c.l.b16 %v2175
      %v2192 = vunpack.c.l.b16 %v2176
      %v2193 = vunpack.c.l.b16 %v2177
      %v2194 = vpack.c.b16 %v2187, %v2186
      %v2195 = vpack.c.b16 %v2189, %v2188
      %v2196 = vpack.c.b16 %v2191, %v2190
      %v2197 = vpack.c.b16 %v2193, %v2192
      %v2203 = vsel %vm638, %v2167, 0
      %v2206 = vsel %vm638, %v2168, 0
      %2208 = vmatprep.subr.bf16.mxu0 0
      %2209 = vmatpush1.bf16.msra.mxu0 %v2194
      %2210 = vmatprep.subr.bf16.mxu0 0
      %2211 = vmatpush1.bf16.msra.mxu0 %v2195
      %2212 = vmatprep.subr.bf16.mxu0 0
      %2213 = vmatpush1.bf16.msra.mxu0 %v2196
      %2214 = vmatprep.subr.bf16.mxu0 0
      %2215 = vmatpush1.bf16.msra.mxu0 %v2197
      %2216 = vmatprep.subr.bf16.mxu0 0
      %2217 = vmatpush1.bf16.msra.mxu0 0
      %2218 = vmatprep.subr.bf16.mxu0 0
      %2219 = vmatpush1.bf16.msra.mxu0 0
      %2220 = vmatprep.subr.bf16.mxu0 0
      %2221 = vmatpush1.bf16.msra.mxu0 0
      %2222 = vmatprep.subr.bf16.mxu0 0
      %2223 = vmatpush1.bf16.msra.mxu0 0
      %2224 = vmatprep.subr.bf16.mxu0 0
      %2225 = vmatpush1.bf16.msra.mxu0 0
      %2226 = vmatprep.subr.bf16.mxu0 0
      %2227 = vmatpush1.bf16.msra.mxu0 0
      %2228 = vmatprep.subr.bf16.mxu0 0
      %2229 = vmatpush1.bf16.msra.mxu0 0
      %2230 = vmatprep.subr.bf16.mxu0 0
      %2231 = vmatpush1.bf16.msra.mxu0 0
      %2232 = vmatprep.subr.bf16.mxu0 0
      %2233 = vmatpush1.bf16.msra.mxu0 0
      %2234 = vmatprep.subr.bf16.mxu0 0
      %2235 = vmatpush1.bf16.msra.mxu0 0
      %2236 = vmatprep.subr.bf16.mxu0 0
      %2237 = vmatpush1.bf16.msra.mxu0 0
      %2238 = vmatprep.subr.bf16.mxu0 0
      %2239 = vmatpush1.bf16.msra.mxu0 0
      %2240 = vmatprep.mubr.bf16.mxu0 0
      %2241 = vmatmul.mubr.bf16.gmra.mrb[0].mxu0 %v2203
      %v2242 = vpop.f32.mrb[0].mxu0
      %v2243 = vadd.f32 0.0, %v2242
      %v2244 = vpop.f32.mrb[0].mxu0
      %v2245 = vpop.f32.mrb[0].mxu0
      %v2246 = vadd.f32 0.0, %v2245
      %v2247 = vpop.f32.mrb[0].mxu0
      %2248 = vmatprep.mubr.bf16.mxu0 0
      %2249 = vmatmul.mubr.bf16.gmra.mrb[0].mxu0 %v2206
      %v2250 = vpop.f32.mrb[0].mxu0
      %v2251 = vadd.f32 0.0, %v2250
      %v2252 = vpop.f32.mrb[0].mxu0
      %v2253 = vpop.f32.mrb[0].mxu0
      %v2254 = vadd.f32 0.0, %v2253
      %v2255 = vpop.f32.mrb[0].mxu0
      %2256 = vdwg.mxu0
      %v2257 = vadd.f32 %v2152, %v2243
      %v2258 = vadd.f32 %v2153, %v2246
      %v2259 = vadd.f32 %v2154, %v2251
      %v2260 = vadd.f32 %v2155, %v2254
      %v2265 = vcombine.low %v1440, %v1441
      %v2266 = vcombine.low %v1442, %v1443
      %v2268 = vunpack.c.l.s4 1983009808
      %v2269 = vunpack.c.0.s8 %v2268
      %v2270 = vlaneseq
      %v2271 = vshrl.u32 %v2270, 7
      %v2272 = vsub.s32 %v2269, %v2271
      %v2273 = vrot.slane %v2265, %v2272
      %v2275 = vunpack.c.l.s4 1983009808
      %v2276 = vunpack.c.0.s8 %v2275
      %v2277 = vlaneseq
      %v2278 = vshrl.u32 %v2277, 7
      %v2279 = vsub.s32 %v2276, %v2278
      %v2280 = vrot.slane %v2266, %v2279
      %v2281 = vcombine.low %v2273, %v2280
      %v2283 = vpack.c.bf16 %v2281, %v1947
      %s2284 = scalar_lea.vmem %s3, 192
      %v2285 = vld [vmem:[%s2284] sm:$0xf]
      %v2286 = vld [vmem:[%s2284 + $0x4] sm:$0xf]
      %v2287 = vld [vmem:[%s2284 + $0x8] sm:$0xf]
      %v2288 = vld [vmem:[%s2284 + $0xc] sm:$0xf]
      %v2289 = vld [vmem:[%s2284 + $0x10] sm:$0xf]
      %v2290 = vld [vmem:[%s2284 + $0x14] sm:$0xf]
      %v2291 = vld [vmem:[%s2284 + $0x18] sm:$0xf]
      %v2292 = vld [vmem:[%s2284 + $0x1c] sm:$0xf]
      %v2301 = vunpack.c.l.b16 %v2285
      %v2302 = vunpack.c.l.b16 %v2286
      %v2303 = vunpack.c.l.b16 %v2287
      %v2304 = vunpack.c.l.b16 %v2288
      %v2305 = vunpack.c.l.b16 %v2289
      %v2306 = vunpack.c.l.b16 %v2290
      %v2307 = vunpack.c.l.b16 %v2291
      %v2308 = vunpack.c.l.b16 %v2292
      %v2309 = vpack.c.b16 %v2302, %v2301
      %v2310 = vpack.c.b16 %v2304, %v2303
      %v2311 = vpack.c.b16 %v2306, %v2305
      %v2312 = vpack.c.b16 %v2308, %v2307
      %v2318 = vsel %vm638, %v2283, 0
      %2320 = vmatprep.subr.bf16.mxu0 0
      %2321 = vmatpush1.bf16.msra.mxu0 %v2309
      %2322 = vmatprep.subr.bf16.mxu0 0
      %2323 = vmatpush1.bf16.msra.mxu0 %v2310
      %2324 = vmatprep.subr.bf16.mxu0 0
      %2325 = vmatpush1.bf16.msra.mxu0 %v2311
      %2326 = vmatprep.subr.bf16.mxu0 0
      %2327 = vmatpush1.bf16.msra.mxu0 %v2312
      %2328 = vmatprep.subr.bf16.mxu0 0
      %2329 = vmatpush1.bf16.msra.mxu0 0
      %2330 = vmatprep.subr.bf16.mxu0 0
      %2331 = vmatpush1.bf16.msra.mxu0 0
      %2332 = vmatprep.subr.bf16.mxu0 0
      %2333 = vmatpush1.bf16.msra.mxu0 0
      %2334 = vmatprep.subr.bf16.mxu0 0
      %2335 = vmatpush1.bf16.msra.mxu0 0
      %2336 = vmatprep.subr.bf16.mxu0 0
      %2337 = vmatpush1.bf16.msra.mxu0 0
      %2338 = vmatprep.subr.bf16.mxu0 0
      %2339 = vmatpush1.bf16.msra.mxu0 0
      %2340 = vmatprep.subr.bf16.mxu0 0
      %2341 = vmatpush1.bf16.msra.mxu0 0
      %2342 = vmatprep.subr.bf16.mxu0 0
      %2343 = vmatpush1.bf16.msra.mxu0 0
      %2344 = vmatprep.subr.bf16.mxu0 0
      %2345 = vmatpush1.bf16.msra.mxu0 0
      %2346 = vmatprep.subr.bf16.mxu0 0
      %2347 = vmatpush1.bf16.msra.mxu0 0
      %2348 = vmatprep.subr.bf16.mxu0 0
      %2349 = vmatpush1.bf16.msra.mxu0 0
      %2350 = vmatprep.subr.bf16.mxu0 0
      %2351 = vmatpush1.bf16.msra.mxu0 0
      %2352 = vmatprep.mubr.bf16.mxu0 0
      %2353 = vmatmul.mubr.bf16.gmra.mrb[0].mxu0 %v1738
      %v2354 = vpop.f32.mrb[0].mxu0
      %v2355 = vadd.f32 0.0, %v2354
      %v2356 = vpop.f32.mrb[0].mxu0
      %v2357 = vpop.f32.mrb[0].mxu0
      %v2358 = vadd.f32 0.0, %v2357
      %v2359 = vpop.f32.mrb[0].mxu0
      %2360 = vmatprep.mubr.bf16.mxu0 0
      %2361 = vmatmul.mubr.bf16.gmra.mrb[0].mxu0 %v2318
      %v2362 = vpop.f32.mrb[0].mxu0
      %v2363 = vadd.f32 0.0, %v2362
      %v2364 = vpop.f32.mrb[0].mxu0
      %v2365 = vpop.f32.mrb[0].mxu0
      %v2366 = vadd.f32 0.0, %v2365
      %v2367 = vpop.f32.mrb[0].mxu0
      %2368 = vdwg.mxu0
      %v2369 = vadd.f32 %v2257, %v2355
      %v2370 = vadd.f32 %v2258, %v2358
      %v2371 = vadd.f32 %v2259, %v2363
      %v2372 = vadd.f32 %v2260, %v2366
      %v2374 = vcombine.low %v1441, %v1442
      %v2375 = vcombine.low %v1443, %v1444
      %v2377 = vunpack.c.l.s4 1983009808
      %v2378 = vunpack.c.0.s8 %v2377
      %v2379 = vlaneseq
      %v2380 = vshrl.u32 %v2379, 7
      %v2381 = vsub.s32 %v2378, %v2380
      %v2382 = vrot.slane %v2374, %v2381
      %v2384 = vunpack.c.l.s4 1983009808
      %v2385 = vunpack.c.0.s8 %v2384
      %v2386 = vlaneseq
      %v2387 = vshrl.u32 %v2386, 7
      %v2388 = vsub.s32 %v2385, %v2387
      %v2389 = vrot.slane %v2375, %v2388
      %v2390 = vcombine.low %v2382, %v2389
      %v2392 = vpack.c.bf16 %v2390, %v2060
      %s2393 = scalar_lea.vmem %s3, 224
      %v2394 = vld [vmem:[%s2393] sm:$0xf]
      %v2395 = vld [vmem:[%s2393 + $0x4] sm:$0xf]
      %v2396 = vld [vmem:[%s2393 + $0x8] sm:$0xf]
      %v2397 = vld [vmem:[%s2393 + $0xc] sm:$0xf]
      %v2398 = vld [vmem:[%s2393 + $0x10] sm:$0xf]
      %v2399 = vld [vmem:[%s2393 + $0x14] sm:$0xf]
      %v2400 = vld [vmem:[%s2393 + $0x18] sm:$0xf]
      %v2401 = vld [vmem:[%s2393 + $0x1c] sm:$0xf]
      %v2410 = vunpack.c.l.b16 %v2394
      %v2411 = vunpack.c.l.b16 %v2395
      %v2412 = vunpack.c.l.b16 %v2396
      %v2413 = vunpack.c.l.b16 %v2397
      %v2414 = vunpack.c.l.b16 %v2398
      %v2415 = vunpack.c.l.b16 %v2399
      %v2416 = vunpack.c.l.b16 %v2400
      %v2417 = vunpack.c.l.b16 %v2401
      %v2418 = vpack.c.b16 %v2411, %v2410
      %v2419 = vpack.c.b16 %v2413, %v2412
      %v2420 = vpack.c.b16 %v2415, %v2414
      %v2421 = vpack.c.b16 %v2417, %v2416
      %v2427 = vsel %vm638, %v2392, 0
      %2429 = vmatprep.subr.bf16.mxu0 0
      %2430 = vmatpush1.bf16.msra.mxu0 %v2418
      %2431 = vmatprep.subr.bf16.mxu0 0
      %2432 = vmatpush1.bf16.msra.mxu0 %v2419
      %2433 = vmatprep.subr.bf16.mxu0 0
      %2434 = vmatpush1.bf16.msra.mxu0 %v2420
      %2435 = vmatprep.subr.bf16.mxu0 0
      %2436 = vmatpush1.bf16.msra.mxu0 %v2421
      %2437 = vmatprep.subr.bf16.mxu0 0
      %2438 = vmatpush1.bf16.msra.mxu0 0
      %2439 = vmatprep.subr.bf16.mxu0 0
      %2440 = vmatpush1.bf16.msra.mxu0 0
      %2441 = vmatprep.subr.bf16.mxu0 0
      %2442 = vmatpush1.bf16.msra.mxu0 0
      %2443 = vmatprep.subr.bf16.mxu0 0
      %2444 = vmatpush1.bf16.msra.mxu0 0
      %2445 = vmatprep.subr.bf16.mxu0 0
      %2446 = vmatpush1.bf16.msra.mxu0 0
      %2447 = vmatprep.subr.bf16.mxu0 0
      %2448 = vmatpush1.bf16.msra.mxu0 0
      %2449 = vmatprep.subr.bf16.mxu0 0
      %2450 = vmatpush1.bf16.msra.mxu0 0
      %2451 = vmatprep.subr.bf16.mxu0 0
      %2452 = vmatpush1.bf16.msra.mxu0 0
      %2453 = vmatprep.subr.bf16.mxu0 0
      %2454 = vmatpush1.bf16.msra.mxu0 0
      %2455 = vmatprep.subr.bf16.mxu0 0
      %2456 = vmatpush1.bf16.msra.mxu0 0
      %2457 = vmatprep.subr.bf16.mxu0 0
      %2458 = vmatpush1.bf16.msra.mxu0 0
      %2459 = vmatprep.subr.bf16.mxu0 0
      %2460 = vmatpush1.bf16.msra.mxu0 0
      %2461 = vmatprep.mubr.bf16.mxu0 0
      %2462 = vmatmul.mubr.bf16.gmra.mrb[0].mxu0 %v1659
      %v2463 = vpop.f32.mrb[0].mxu0
      %v2464 = vadd.f32 0.0, %v2463
      %v2465 = vpop.f32.mrb[0].mxu0
      %v2466 = vpop.f32.mrb[0].mxu0
      %v2467 = vadd.f32 0.0, %v2466
      %v2468 = vpop.f32.mrb[0].mxu0
      %2469 = vmatprep.mubr.bf16.mxu0 0
      %2470 = vmatmul.mubr.bf16.gmra.mrb[0].mxu0 %v2427
      %v2471 = vpop.f32.mrb[0].mxu0
      %v2472 = vadd.f32 0.0, %v2471
      %v2473 = vpop.f32.mrb[0].mxu0
      %v2474 = vpop.f32.mrb[0].mxu0
      %v2475 = vadd.f32 0.0, %v2474
      %v2476 = vpop.f32.mrb[0].mxu0
      %2477 = vdwg.mxu0
      %v2478 = vadd.f32 %v2369, %v2464
      %v2479 = vadd.f32 %v2370, %v2467
      %v2480 = vadd.f32 %v2371, %v2472
      %v2481 = vadd.f32 %v2372, %v2475
      %v2483 = vcombine.low %v1444, %v1445
      %v2485 = vunpack.c.l.s4 1983009808
      %v2486 = vunpack.c.0.s8 %v2485
      %v2487 = vlaneseq
      %v2488 = vshrl.u32 %v2487, 7
      %v2489 = vsub.s32 %v2486, %v2488
      %v2490 = vrot.slane %v2483, %v2489
      %v2491 = vcombine.low %v2280, %v2490
      %v2493 = vpack.c.bf16 %v2491, %v2165
      %s2494 = scalar_lea.vmem %s3, 256
      %v2495 = vld [vmem:[%s2494] sm:$0xf]
      %v2496 = vld [vmem:[%s2494 + $0x4] sm:$0xf]
      %v2497 = vld [vmem:[%s2494 + $0x8] sm:$0xf]
      %v2498 = vld [vmem:[%s2494 + $0xc] sm:$0xf]
      %v2499 = vld [vmem:[%s2494 + $0x10] sm:$0xf]
      %v2500 = vld [vmem:[%s2494 + $0x14] sm:$0xf]
      %v2501 = vld [vmem:[%s2494 + $0x18] sm:$0xf]
      %v2502 = vld [vmem:[%s2494 + $0x1c] sm:$0xf]
      %v2511 = vunpack.c.l.b16 %v2495
      %v2512 = vunpack.c.l.b16 %v2496
      %v2513 = vunpack.c.l.b16 %v2497
      %v2514 = vunpack.c.l.b16 %v2498
      %v2515 = vunpack.c.l.b16 %v2499
      %v2516 = vunpack.c.l.b16 %v2500
      %v2517 = vunpack.c.l.b16 %v2501
      %v2518 = vunpack.c.l.b16 %v2502
      %v2519 = vpack.c.b16 %v2512, %v2511
      %v2520 = vpack.c.b16 %v2514, %v2513
      %v2521 = vpack.c.b16 %v2516, %v2515
      %v2522 = vpack.c.b16 %v2518, %v2517
      %v2528 = vsel %vm638, %v2493, 0
      %2530 = vmatprep.subr.bf16.mxu0 0
      %2531 = vmatpush1.bf16.msra.mxu0 %v2519
      %2532 = vmatprep.subr.bf16.mxu0 0
      %2533 = vmatpush1.bf16.msra.mxu0 %v2520
      %2534 = vmatprep.subr.bf16.mxu0 0
      %2535 = vmatpush1.bf16.msra.mxu0 %v2521
      %2536 = vmatprep.subr.bf16.mxu0 0
      %2537 = vmatpush1.bf16.msra.mxu0 %v2522
      %2538 = vmatprep.subr.bf16.mxu0 0
      %2539 = vmatpush1.bf16.msra.mxu0 0
      %2540 = vmatprep.subr.bf16.mxu0 0
      %2541 = vmatpush1.bf16.msra.mxu0 0
      %2542 = vmatprep.subr.bf16.mxu0 0
      %2543 = vmatpush1.bf16.msra.mxu0 0
      %2544 = vmatprep.subr.bf16.mxu0 0
      %2545 = vmatpush1.bf16.msra.mxu0 0
      %2546 = vmatprep.subr.bf16.mxu0 0
      %2547 = vmatpush1.bf16.msra.mxu0 0
      %2548 = vmatprep.subr.bf16.mxu0 0
      %2549 = vmatpush1.bf16.msra.mxu0 0
      %2550 = vmatprep.subr.bf16.mxu0 0
      %2551 = vmatpush1.bf16.msra.mxu0 0
      %2552 = vmatprep.subr.bf16.mxu0 0
      %2553 = vmatpush1.bf16.msra.mxu0 0
      %2554 = vmatprep.subr.bf16.mxu0 0
      %2555 = vmatpush1.bf16.msra.mxu0 0
      %2556 = vmatprep.subr.bf16.mxu0 0
      %2557 = vmatpush1.bf16.msra.mxu0 0
      %2558 = vmatprep.subr.bf16.mxu0 0
      %2559 = vmatpush1.bf16.msra.mxu0 0
      %2560 = vmatprep.subr.bf16.mxu0 0
      %2561 = vmatpush1.bf16.msra.mxu0 0
      %2562 = vmatprep.mubr.bf16.mxu0 0
      %2563 = vmatmul.mubr.bf16.gmra.mrb[0].mxu0 %v1872
      %v2564 = vpop.f32.mrb[0].mxu0
      %v2565 = vadd.f32 0.0, %v2564
      %v2566 = vpop.f32.mrb[0].mxu0
      %v2567 = vpop.f32.mrb[0].mxu0
      %v2568 = vadd.f32 0.0, %v2567
      %v2569 = vpop.f32.mrb[0].mxu0
      %2570 = vmatprep.mubr.bf16.mxu0 0
      %2571 = vmatmul.mubr.bf16.gmra.mrb[0].mxu0 %v2528
      %v2572 = vpop.f32.mrb[0].mxu0
      %v2573 = vadd.f32 0.0, %v2572
      %v2574 = vpop.f32.mrb[0].mxu0
      %v2575 = vpop.f32.mrb[0].mxu0
      %v2576 = vadd.f32 0.0, %v2575
      %v2577 = vpop.f32.mrb[0].mxu0
      %2578 = vdwg.mxu0
      %v2579 = vadd.f32 %v2478, %v2565
      %v2580 = vadd.f32 %v2479, %v2568
      %v2581 = vadd.f32 %v2480, %v2573
      %v2582 = vadd.f32 %v2481, %v2576
      %v2583 = vld [vmem:[%s4] sm:$0x1]
      %v2585 = vlaneseq
      %v2586 = vshrl.u32 %v2585, 7
      %v2587 = vsub.s32 0, %v2586
      %v2588 = vrot.slane %v2583, %v2587
      %v2590 = vadd.f32 %v2579, %v2588
      %v2591 = vadd.f32 %v2580, %v2588
      %v2592 = vadd.f32 %v2581, %v2588
      %v2593 = vadd.f32 %v2582, %v2588
      %v2594 = vmax.f32 %v2590, 0.0
      %v2595 = vmax.f32 %v2591, 0.0
      %v2596 = vmax.f32 %v2592, 0.0
      %v2597 = vmax.f32 %v2593, 0.0
      %v2602 = vcombine.high %v2594, %v2594
      %v2604 = vunpack.c.l.s4 1983009808
      %v2605 = vunpack.c.0.s8 %v2604
      %v2606 = vlaneseq
      %v2607 = vshrl.u32 %v2606, 7
      %v2608 = vsub.s32 %v2605, %v2607
      %v2609 = vrot.slane %v2594, %v2608
      %v2611 = vunpack.c.l.s4 1983009808
      %v2612 = vunpack.c.0.s8 %v2611
      %v2613 = vlaneseq
      %v2614 = vshrl.u32 %v2613, 7
      %v2615 = vsub.s32 %v2612, %v2614
      %v2616 = vrot.slane %v2602, %v2615
      %v2617 = vcombine.high %v2609, %v2609
      %v2618 = vcombine.high %v2616, %v2616
      %v2619 = vcombine.high %v2595, %v2595
      %v2621 = vunpack.c.l.s4 1983009808
      %v2622 = vunpack.c.0.s8 %v2621
      %v2623 = vlaneseq
      %v2624 = vshrl.u32 %v2623, 7
      %v2625 = vsub.s32 %v2622, %v2624
      %v2626 = vrot.slane %v2595, %v2625
      %v2628 = vunpack.c.l.s4 1983009808
      %v2629 = vunpack.c.0.s8 %v2628
      %v2630 = vlaneseq
      %v2631 = vshrl.u32 %v2630, 7
      %v2632 = vsub.s32 %v2629, %v2631
      %v2633 = vrot.slane %v2619, %v2632
      %v2634 = vcombine.high %v2626, %v2626
      %v2635 = vcombine.high %v2633, %v2633
      %v2636 = vcombine.high %v2596, %v2596
      %v2638 = vunpack.c.l.s4 1983009808
      %v2639 = vunpack.c.0.s8 %v2638
      %v2640 = vlaneseq
      %v2641 = vshrl.u32 %v2640, 7
      %v2642 = vsub.s32 %v2639, %v2641
      %v2643 = vrot.slane %v2596, %v2642
      %v2645 = vunpack.c.l.s4 1983009808
      %v2646 = vunpack.c.0.s8 %v2645
      %v2647 = vlaneseq
      %v2648 = vshrl.u32 %v2647, 7
      %v2649 = vsub.s32 %v2646, %v2648
      %v2650 = vrot.slane %v2636, %v2649
      %v2651 = vcombine.high %v2643, %v2643
      %v2652 = vcombine.high %v2650, %v2650
      %v2653 = vcombine.high %v2597, %v2597
      %v2655 = vunpack.c.l.s4 1983009808
      %v2656 = vunpack.c.0.s8 %v2655
      %v2657 = vlaneseq
      %v2658 = vshrl.u32 %v2657, 7
      %v2659 = vsub.s32 %v2656, %v2658
      %v2660 = vrot.slane %v2597, %v2659
      %v2662 = vunpack.c.l.s4 1983009808
      %v2663 = vunpack.c.0.s8 %v2662
      %v2664 = vlaneseq
      %v2665 = vshrl.u32 %v2664, 7
      %v2666 = vsub.s32 %v2663, %v2665
      %v2667 = vrot.slane %v2653, %v2666
      %v2668 = vcombine.high %v2660, %v2660
      %v2669 = vcombine.high %v2667, %v2667
      %s2686 = scalar_lea.vmem [#allocation4], 14
      %2687 = vst.msk [vmem:[%s2686] sm:$0x3] %vm370, %v2609
      %2688 = vst.msk [vmem:[%s2686 + $0x2] sm:$0x3] %vm370, %v2617
      %2689 = vst.msk [vmem:[%s2686 + $0x4] sm:$0x3] %vm370, %v2616
      %2690 = vst.msk [vmem:[%s2686 + $0x6] sm:$0x3] %vm370, %v2618
      %2691 = vst.msk [vmem:[%s2686 + $0xc] sm:$0x3] %vm370, %v2626
      %2692 = vst.msk [vmem:[%s2686 + $0xe] sm:$0x3] %vm370, %v2634
      %2693 = vst.msk [vmem:[%s2686 + $0x10] sm:$0x3] %vm370, %v2633
      %2694 = vst.msk [vmem:[%s2686 + $0x12] sm:$0x3] %vm370, %v2635
      %2695 = vst.msk [vmem:[%s2686 + $0x18] sm:$0x3] %vm370, %v2643
      %2696 = vst.msk [vmem:[%s2686 + $0x1a] sm:$0x3] %vm370, %v2651
      %2697 = vst.msk [vmem:[%s2686 + $0x1c] sm:$0x3] %vm370, %v2650
      %2698 = vst.msk [vmem:[%s2686 + $0x1e] sm:$0x3] %vm370, %v2652
      %2699 = vst.msk [vmem:[%s2686 + $0x24] sm:$0x3] %vm370, %v2660
      %2700 = vst.msk [vmem:[%s2686 + $0x26] sm:$0x3] %vm370, %v2668
      %2701 = vst.msk [vmem:[%s2686 + $0x28] sm:$0x3] %vm370, %v2667
      %2702 = vst.msk [vmem:[%s2686 + $0x2a] sm:$0x3] %vm370, %v2669
      %v2703 = vld [vmem:[#allocation4] sm:$0x3]
      %v2704 = vld [vmem:[#allocation4 + $0x2] sm:$0x3]
      %v2705 = vld [vmem:[#allocation4 + $0x4] sm:$0x3]
      %v2706 = vld [vmem:[#allocation4 + $0x6] sm:$0x3]
      %v2707 = vld [vmem:[#allocation4 + $0x8] sm:$0x3]
      %v2708 = vld [vmem:[#allocation4 + $0xa] sm:$0x3]
      %v2709 = vld [vmem:[#allocation4 + $0xc] sm:$0x3]
      %v2710 = vld [vmem:[#allocation4 + $0xe] sm:$0x3]
      %v2711 = vld [vmem:[#allocation4 + $0x10] sm:$0x3]
      %v2712 = vld [vmem:[#allocation4 + $0x12] sm:$0x3]
      %v2713 = vld [vmem:[#allocation4 + $0x14] sm:$0x3]
      %v2714 = vld [vmem:[#allocation4 + $0x16] sm:$0x3]
      %v2715 = vld [vmem:[#allocation4 + $0x18] sm:$0x3]
      %v2716 = vld [vmem:[#allocation4 + $0x1a] sm:$0x3]
      %v2717 = vld [vmem:[#allocation4 + $0x1c] sm:$0x3]
      %v2718 = vld [vmem:[#allocation4 + $0x1e] sm:$0x3]
      %v2719 = vld [vmem:[#allocation4 + $0x20] sm:$0x3]
      %v2720 = vld [vmem:[#allocation4 + $0x22] sm:$0x3]
      %v2721 = vld [vmem:[#allocation4 + $0x24] sm:$0x3]
      %v2722 = vld [vmem:[#allocation4 + $0x26] sm:$0x3]
      %v2723 = vld [vmem:[#allocation4 + $0x28] sm:$0x3]
      %v2724 = vld [vmem:[#allocation4 + $0x2a] sm:$0x3]
      %v2725 = vld [vmem:[#allocation4 + $0x2c] sm:$0x3]
      %v2726 = vld [vmem:[#allocation4 + $0x2e] sm:$0x3]
      %v2727 = vld [vmem:[#allocation4 + $0x30] sm:$0x3]
      %v2728 = vld [vmem:[#allocation4 + $0x32] sm:$0x3]
      %v2729 = vld [vmem:[#allocation4 + $0x34] sm:$0x3]
      %v2730 = vld [vmem:[#allocation4 + $0x36] sm:$0x3]
      %v2731 = vld [vmem:[#allocation4 + $0x38] sm:$0x3]
      %v2732 = vld [vmem:[#allocation4 + $0x3a] sm:$0x3]
      %v2733 = vld [vmem:[#allocation4 + $0x3c] sm:$0x3]
      %v2734 = vld [vmem:[#allocation4 + $0x3e] sm:$0x3]
      %v2735 = vld [vmem:[#allocation4 + $0x40] sm:$0x3]
      %v2736 = vld [vmem:[#allocation4 + $0x42] sm:$0x3]
      %v2737 = vld [vmem:[#allocation4 + $0x44] sm:$0x3]
      %v2738 = vld [vmem:[#allocation4 + $0x46] sm:$0x3]
      %v2755 = vcombine.low %v2703, %v2704
      %v2756 = vcombine.low %v2705, %v2706
      %v2758 = vunpack.c.l.s4 1983009808
      %v2759 = vunpack.c.0.s8 %v2758
      %v2760 = vlaneseq
      %v2761 = vshrl.u32 %v2760, 7
      %v2762 = vsub.s32 %v2759, %v2761
      %v2763 = vrot.slane %v2755, %v2762
      %v2765 = vunpack.c.l.s4 1983009808
      %v2766 = vunpack.c.0.s8 %v2765
      %v2767 = vlaneseq
      %v2768 = vshrl.u32 %v2767, 7
      %v2769 = vsub.s32 %v2766, %v2768
      %v2770 = vrot.slane %v2756, %v2769
      %v2771 = vcombine.low %v2763, %v2770
      %v2772 = vcombine.low %v2709, %v2710
      %v2773 = vcombine.low %v2711, %v2712
      %v2775 = vunpack.c.l.s4 1983009808
      %v2776 = vunpack.c.0.s8 %v2775
      %v2777 = vlaneseq
      %v2778 = vshrl.u32 %v2777, 7
      %v2779 = vsub.s32 %v2776, %v2778
      %v2780 = vrot.slane %v2772, %v2779
      %v2782 = vunpack.c.l.s4 1983009808
      %v2783 = vunpack.c.0.s8 %v2782
      %v2784 = vlaneseq
      %v2785 = vshrl.u32 %v2784, 7
      %v2786 = vsub.s32 %v2783, %v2785
      %v2787 = vrot.slane %v2773, %v2786
      %v2788 = vcombine.low %v2780, %v2787
      %v2789 = vcombine.low %v2715, %v2716
      %v2790 = vcombine.low %v2717, %v2718
      %v2792 = vunpack.c.l.s4 1983009808
      %v2793 = vunpack.c.0.s8 %v2792
      %v2794 = vlaneseq
      %v2795 = vshrl.u32 %v2794, 7
      %v2796 = vsub.s32 %v2793, %v2795
      %v2797 = vrot.slane %v2789, %v2796
      %v2799 = vunpack.c.l.s4 1983009808
      %v2800 = vunpack.c.0.s8 %v2799
      %v2801 = vlaneseq
      %v2802 = vshrl.u32 %v2801, 7
      %v2803 = vsub.s32 %v2800, %v2802
      %v2804 = vrot.slane %v2790, %v2803
      %v2805 = vcombine.low %v2797, %v2804
      %v2806 = vcombine.low %v2721, %v2722
      %v2807 = vcombine.low %v2723, %v2724
      %v2809 = vunpack.c.l.s4 1983009808
      %v2810 = vunpack.c.0.s8 %v2809
      %v2811 = vlaneseq
      %v2812 = vshrl.u32 %v2811, 7
      %v2813 = vsub.s32 %v2810, %v2812
      %v2814 = vrot.slane %v2806, %v2813
      %v2816 = vunpack.c.l.s4 1983009808
      %v2817 = vunpack.c.0.s8 %v2816
      %v2818 = vlaneseq
      %v2819 = vshrl.u32 %v2818, 7
      %v2820 = vsub.s32 %v2817, %v2819
      %v2821 = vrot.slane %v2807, %v2820
      %v2822 = vcombine.low %v2814, %v2821
      %v2827 = vpack.c.bf16 %v2788, %v2771
      %v2828 = vpack.c.bf16 %v2822, %v2805
      %v2829 = vld [vmem:[%s5] sm:$0xf]
      %v2830 = vld [vmem:[%s5 + $0x4] sm:$0xf]
      %v2831 = vld [vmem:[%s5 + $0x8] sm:$0xf]
      %v2832 = vld [vmem:[%s5 + $0xc] sm:$0xf]
      %v2833 = vld [vmem:[%s5 + $0x10] sm:$0xf]
      %v2834 = vld [vmem:[%s5 + $0x14] sm:$0xf]
      %v2835 = vld [vmem:[%s5 + $0x18] sm:$0xf]
      %v2836 = vld [vmem:[%s5 + $0x1c] sm:$0xf]
      %v2841 = vcombine.low %v2704, %v2705
      %v2842 = vcombine.low %v2706, %v2707
      %v2844 = vunpack.c.l.s4 1983009808
      %v2845 = vunpack.c.0.s8 %v2844
      %v2846 = vlaneseq
      %v2847 = vshrl.u32 %v2846, 7
      %v2848 = vsub.s32 %v2845, %v2847
      %v2849 = vrot.slane %v2841, %v2848
      %v2851 = vunpack.c.l.s4 1983009808
      %v2852 = vunpack.c.0.s8 %v2851
      %v2853 = vlaneseq
      %v2854 = vshrl.u32 %v2853, 7
      %v2855 = vsub.s32 %v2852, %v2854
      %v2856 = vrot.slane %v2842, %v2855
      %v2857 = vcombine.low %v2849, %v2856
      %v2858 = vcombine.low %v2710, %v2711
      %v2859 = vcombine.low %v2712, %v2713
      %v2861 = vunpack.c.l.s4 1983009808
      %v2862 = vunpack.c.0.s8 %v2861
      %v2863 = vlaneseq
      %v2864 = vshrl.u32 %v2863, 7
      %v2865 = vsub.s32 %v2862, %v2864
      %v2866 = vrot.slane %v2858, %v2865
      %v2868 = vunpack.c.l.s4 1983009808
      %v2869 = vunpack.c.0.s8 %v2868
      %v2870 = vlaneseq
      %v2871 = vshrl.u32 %v2870, 7
      %v2872 = vsub.s32 %v2869, %v2871
      %v2873 = vrot.slane %v2859, %v2872
      %v2874 = vcombine.low %v2866, %v2873
      %v2875 = vcombine.low %v2716, %v2717
      %v2876 = vcombine.low %v2718, %v2719
      %v2878 = vunpack.c.l.s4 1983009808
      %v2879 = vunpack.c.0.s8 %v2878
      %v2880 = vlaneseq
      %v2881 = vshrl.u32 %v2880, 7
      %v2882 = vsub.s32 %v2879, %v2881
      %v2883 = vrot.slane %v2875, %v2882
      %v2885 = vunpack.c.l.s4 1983009808
      %v2886 = vunpack.c.0.s8 %v2885
      %v2887 = vlaneseq
      %v2888 = vshrl.u32 %v2887, 7
      %v2889 = vsub.s32 %v2886, %v2888
      %v2890 = vrot.slane %v2876, %v2889
      %v2891 = vcombine.low %v2883, %v2890
      %v2892 = vcombine.low %v2722, %v2723
      %v2893 = vcombine.low %v2724, %v2725
      %v2895 = vunpack.c.l.s4 1983009808
      %v2896 = vunpack.c.0.s8 %v2895
      %v2897 = vlaneseq
      %v2898 = vshrl.u32 %v2897, 7
      %v2899 = vsub.s32 %v2896, %v2898
      %v2900 = vrot.slane %v2892, %v2899
      %v2902 = vunpack.c.l.s4 1983009808
      %v2903 = vunpack.c.0.s8 %v2902
      %v2904 = vlaneseq
      %v2905 = vshrl.u32 %v2904, 7
      %v2906 = vsub.s32 %v2903, %v2905
      %v2907 = vrot.slane %v2893, %v2906
      %v2908 = vcombine.low %v2900, %v2907
      %v2913 = vpack.c.bf16 %v2874, %v2857
      %v2914 = vpack.c.bf16 %v2908, %v2891
      %s2915 = scalar_lea.vmem %s5, 32
      %v2916 = vld [vmem:[%s2915] sm:$0xf]
      %v2917 = vld [vmem:[%s2915 + $0x4] sm:$0xf]
      %v2918 = vld [vmem:[%s2915 + $0x8] sm:$0xf]
      %v2919 = vld [vmem:[%s2915 + $0xc] sm:$0xf]
      %v2920 = vld [vmem:[%s2915 + $0x10] sm:$0xf]
      %v2921 = vld [vmem:[%s2915 + $0x14] sm:$0xf]
      %v2922 = vld [vmem:[%s2915 + $0x18] sm:$0xf]
      %v2923 = vld [vmem:[%s2915 + $0x1c] sm:$0xf]
      %v2932 = vunpack.c.l.b16 %v2916
      %v2933 = vunpack.c.l.b16 %v2917
      %v2934 = vunpack.c.l.b16 %v2918
      %v2935 = vunpack.c.l.b16 %v2919
      %v2936 = vunpack.c.l.b16 %v2920
      %v2937 = vunpack.c.l.b16 %v2921
      %v2938 = vunpack.c.l.b16 %v2922
      %v2939 = vunpack.c.l.b16 %v2923
      %v2940 = vpack.c.b16 %v2933, %v2932
      %v2941 = vpack.c.b16 %v2935, %v2934
      %v2942 = vpack.c.b16 %v2937, %v2936
      %v2943 = vpack.c.b16 %v2939, %v2938
      %v2949 = vsel %vm638, %v2913, 0
      %v2952 = vsel %vm638, %v2914, 0
      %2954 = vmatprep.subr.bf16.mxu0 0
      %2955 = vmatpush1.bf16.msra.mxu0 %v2940
      %2956 = vmatprep.subr.bf16.mxu0 0
      %2957 = vmatpush1.bf16.msra.mxu0 %v2941
      %2958 = vmatprep.subr.bf16.mxu0 0
      %2959 = vmatpush1.bf16.msra.mxu0 %v2942
      %2960 = vmatprep.subr.bf16.mxu0 0
      %2961 = vmatpush1.bf16.msra.mxu0 %v2943
      %2962 = vmatprep.subr.bf16.mxu0 0
      %2963 = vmatpush1.bf16.msra.mxu0 0
      %2964 = vmatprep.subr.bf16.mxu0 0
      %2965 = vmatpush1.bf16.msra.mxu0 0
      %2966 = vmatprep.subr.bf16.mxu0 0
      %2967 = vmatpush1.bf16.msra.mxu0 0
      %2968 = vmatprep.subr.bf16.mxu0 0
      %2969 = vmatpush1.bf16.msra.mxu0 0
      %2970 = vmatprep.subr.bf16.mxu0 0
      %2971 = vmatpush1.bf16.msra.mxu0 0
      %2972 = vmatprep.subr.bf16.mxu0 0
      %2973 = vmatpush1.bf16.msra.mxu0 0
      %2974 = vmatprep.subr.bf16.mxu0 0
      %2975 = vmatpush1.bf16.msra.mxu0 0
      %2976 = vmatprep.subr.bf16.mxu0 0
      %2977 = vmatpush1.bf16.msra.mxu0 0
      %2978 = vmatprep.subr.bf16.mxu0 0
      %2979 = vmatpush1.bf16.msra.mxu0 0
      %2980 = vmatprep.subr.bf16.mxu0 0
      %2981 = vmatpush1.bf16.msra.mxu0 0
      %2982 = vmatprep.subr.bf16.mxu0 0
      %2983 = vmatpush1.bf16.msra.mxu0 0
      %2984 = vmatprep.subr.bf16.mxu0 0
      %2985 = vmatpush1.bf16.msra.mxu0 0
      %2986 = vmatprep.mubr.bf16.mxu0 0
      %2987 = vmatmul.mubr.bf16.gmra.mrb[0].mxu0 %v2949
      %v2988 = vpop.f32.mrb[0].mxu0
      %v2989 = vadd.f32 0.0, %v2988
      %v2990 = vpop.f32.mrb[0].mxu0
      %v2991 = vpop.f32.mrb[0].mxu0
      %v2992 = vadd.f32 0.0, %v2991
      %v2993 = vpop.f32.mrb[0].mxu0
      %2994 = vmatprep.mubr.bf16.mxu0 0
      %2995 = vmatmul.mubr.bf16.gmra.mrb[0].mxu0 %v2952
      %v2996 = vpop.f32.mrb[0].mxu0
      %v2997 = vadd.f32 0.0, %v2996
      %v2998 = vpop.f32.mrb[0].mxu0
      %v2999 = vpop.f32.mrb[0].mxu0
      %v3000 = vadd.f32 0.0, %v2999
      %v3001 = vpop.f32.mrb[0].mxu0
      %3002 = vdwg.mxu0
      %v3011 = vunpack.c.l.b16 %v2829
      %v3012 = vunpack.c.l.b16 %v2830
      %v3013 = vunpack.c.l.b16 %v2831
      %v3014 = vunpack.c.l.b16 %v2832
      %v3015 = vunpack.c.l.b16 %v2833
      %v3016 = vunpack.c.l.b16 %v2834
      %v3017 = vunpack.c.l.b16 %v2835
      %v3018 = vunpack.c.l.b16 %v2836
      %v3019 = vpack.c.b16 %v3012, %v3011
      %v3020 = vpack.c.b16 %v3014, %v3013
      %v3021 = vpack.c.b16 %v3016, %v3015
      %v3022 = vpack.c.b16 %v3018, %v3017
      %v3028 = vsel %vm638, %v2827, 0
      %v3031 = vsel %vm638, %v2828, 0
      %3033 = vmatprep.subr.bf16.mxu0 0
      %3034 = vmatpush1.bf16.msra.mxu0 %v3019
      %3035 = vmatprep.subr.bf16.mxu0 0
      %3036 = vmatpush1.bf16.msra.mxu0 %v3020
      %3037 = vmatprep.subr.bf16.mxu0 0
      %3038 = vmatpush1.bf16.msra.mxu0 %v3021
      %3039 = vmatprep.subr.bf16.mxu0 0
      %3040 = vmatpush1.bf16.msra.mxu0 %v3022
      %3041 = vmatprep.subr.bf16.mxu0 0
      %3042 = vmatpush1.bf16.msra.mxu0 0
      %3043 = vmatprep.subr.bf16.mxu0 0
      %3044 = vmatpush1.bf16.msra.mxu0 0
      %3045 = vmatprep.subr.bf16.mxu0 0
      %3046 = vmatpush1.bf16.msra.mxu0 0
      %3047 = vmatprep.subr.bf16.mxu0 0
      %3048 = vmatpush1.bf16.msra.mxu0 0
      %3049 = vmatprep.subr.bf16.mxu0 0
      %3050 = vmatpush1.bf16.msra.mxu0 0
      %3051 = vmatprep.subr.bf16.mxu0 0
      %3052 = vmatpush1.bf16.msra.mxu0 0
      %3053 = vmatprep.subr.bf16.mxu0 0
      %3054 = vmatpush1.bf16.msra.mxu0 0
      %3055 = vmatprep.subr.bf16.mxu0 0
      %3056 = vmatpush1.bf16.msra.mxu0 0
      %3057 = vmatprep.subr.bf16.mxu0 0
      %3058 = vmatpush1.bf16.msra.mxu0 0
      %3059 = vmatprep.subr.bf16.mxu0 0
      %3060 = vmatpush1.bf16.msra.mxu0 0
      %3061 = vmatprep.subr.bf16.mxu0 0
      %3062 = vmatpush1.bf16.msra.mxu0 0
      %3063 = vmatprep.subr.bf16.mxu0 0
      %3064 = vmatpush1.bf16.msra.mxu0 0
      %3065 = vmatprep.mubr.bf16.mxu0 0
      %3066 = vmatmul.mubr.bf16.gmra.mrb[0].mxu0 %v3028
      %v3067 = vpop.f32.mrb[0].mxu0
      %v3068 = vadd.f32 %v2989, %v3067
      %v3069 = vpop.f32.mrb[0].mxu0
      %v3070 = vpop.f32.mrb[0].mxu0
      %v3071 = vadd.f32 %v2992, %v3070
      %v3072 = vpop.f32.mrb[0].mxu0
      %3073 = vmatprep.mubr.bf16.mxu0 0
      %3074 = vmatmul.mubr.bf16.gmra.mrb[0].mxu0 %v3031
      %v3075 = vpop.f32.mrb[0].mxu0
      %v3076 = vadd.f32 %v2997, %v3075
      %v3077 = vpop.f32.mrb[0].mxu0
      %v3078 = vpop.f32.mrb[0].mxu0
      %v3079 = vadd.f32 %v3000, %v3078
      %v3080 = vpop.f32.mrb[0].mxu0
      %3081 = vdwg.mxu0
      %v3086 = vcombine.low %v2707, %v2708
      %v3088 = vunpack.c.l.s4 1983009808
      %v3089 = vunpack.c.0.s8 %v3088
      %v3090 = vlaneseq
      %v3091 = vshrl.u32 %v3090, 7
      %v3092 = vsub.s32 %v3089, %v3091
      %v3093 = vrot.slane %v3086, %v3092
      %v3094 = vcombine.low %v2770, %v3093
      %v3095 = vcombine.low %v2713, %v2714
      %v3097 = vunpack.c.l.s4 1983009808
      %v3098 = vunpack.c.0.s8 %v3097
      %v3099 = vlaneseq
      %v3100 = vshrl.u32 %v3099, 7
      %v3101 = vsub.s32 %v3098, %v3100
      %v3102 = vrot.slane %v3095, %v3101
      %v3103 = vcombine.low %v2787, %v3102
      %v3104 = vcombine.low %v2719, %v2720
      %v3106 = vunpack.c.l.s4 1983009808
      %v3107 = vunpack.c.0.s8 %v3106
      %v3108 = vlaneseq
      %v3109 = vshrl.u32 %v3108, 7
      %v3110 = vsub.s32 %v3107, %v3109
      %v3111 = vrot.slane %v3104, %v3110
      %v3112 = vcombine.low %v2804, %v3111
      %v3113 = vcombine.low %v2725, %v2726
      %v3115 = vunpack.c.l.s4 1983009808
      %v3116 = vunpack.c.0.s8 %v3115
      %v3117 = vlaneseq
      %v3118 = vshrl.u32 %v3117, 7
      %v3119 = vsub.s32 %v3116, %v3118
      %v3120 = vrot.slane %v3113, %v3119
      %v3121 = vcombine.low %v2821, %v3120
      %v3126 = vpack.c.bf16 %v3103, %v3094
      %v3127 = vpack.c.bf16 %v3121, %v3112
      %s3128 = scalar_lea.vmem %s5, 64
      %v3129 = vld [vmem:[%s3128] sm:$0xf]
      %v3130 = vld [vmem:[%s3128 + $0x4] sm:$0xf]
      %v3131 = vld [vmem:[%s3128 + $0x8] sm:$0xf]
      %v3132 = vld [vmem:[%s3128 + $0xc] sm:$0xf]
      %v3133 = vld [vmem:[%s3128 + $0x10] sm:$0xf]
      %v3134 = vld [vmem:[%s3128 + $0x14] sm:$0xf]
      %v3135 = vld [vmem:[%s3128 + $0x18] sm:$0xf]
      %v3136 = vld [vmem:[%s3128 + $0x1c] sm:$0xf]
      %v3145 = vunpack.c.l.b16 %v3129
      %v3146 = vunpack.c.l.b16 %v3130
      %v3147 = vunpack.c.l.b16 %v3131
      %v3148 = vunpack.c.l.b16 %v3132
      %v3149 = vunpack.c.l.b16 %v3133
      %v3150 = vunpack.c.l.b16 %v3134
      %v3151 = vunpack.c.l.b16 %v3135
      %v3152 = vunpack.c.l.b16 %v3136
      %v3153 = vpack.c.b16 %v3146, %v3145
      %v3154 = vpack.c.b16 %v3148, %v3147
      %v3155 = vpack.c.b16 %v3150, %v3149
      %v3156 = vpack.c.b16 %v3152, %v3151
      %v3162 = vsel %vm638, %v3126, 0
      %v3165 = vsel %vm638, %v3127, 0
      %3167 = vmatprep.subr.bf16.mxu0 0
      %3168 = vmatpush1.bf16.msra.mxu0 %v3153
      %3169 = vmatprep.subr.bf16.mxu0 0
      %3170 = vmatpush1.bf16.msra.mxu0 %v3154
      %3171 = vmatprep.subr.bf16.mxu0 0
      %3172 = vmatpush1.bf16.msra.mxu0 %v3155
      %3173 = vmatprep.subr.bf16.mxu0 0
      %3174 = vmatpush1.bf16.msra.mxu0 %v3156
      %3175 = vmatprep.subr.bf16.mxu0 0
      %3176 = vmatpush1.bf16.msra.mxu0 0
      %3177 = vmatprep.subr.bf16.mxu0 0
      %3178 = vmatpush1.bf16.msra.mxu0 0
      %3179 = vmatprep.subr.bf16.mxu0 0
      %3180 = vmatpush1.bf16.msra.mxu0 0
      %3181 = vmatprep.subr.bf16.mxu0 0
      %3182 = vmatpush1.bf16.msra.mxu0 0
      %3183 = vmatprep.subr.bf16.mxu0 0
      %3184 = vmatpush1.bf16.msra.mxu0 0
      %3185 = vmatprep.subr.bf16.mxu0 0
      %3186 = vmatpush1.bf16.msra.mxu0 0
      %3187 = vmatprep.subr.bf16.mxu0 0
      %3188 = vmatpush1.bf16.msra.mxu0 0
      %3189 = vmatprep.subr.bf16.mxu0 0
      %3190 = vmatpush1.bf16.msra.mxu0 0
      %3191 = vmatprep.subr.bf16.mxu0 0
      %3192 = vmatpush1.bf16.msra.mxu0 0
      %3193 = vmatprep.subr.bf16.mxu0 0
      %3194 = vmatpush1.bf16.msra.mxu0 0
      %3195 = vmatprep.subr.bf16.mxu0 0
      %3196 = vmatpush1.bf16.msra.mxu0 0
      %3197 = vmatprep.subr.bf16.mxu0 0
      %3198 = vmatpush1.bf16.msra.mxu0 0
      %3199 = vmatprep.mubr.bf16.mxu0 0
      %3200 = vmatmul.mubr.bf16.gmra.mrb[0].mxu0 %v3162
      %v3201 = vpop.f32.mrb[0].mxu0
      %v3202 = vadd.f32 0.0, %v3201
      %v3203 = vpop.f32.mrb[0].mxu0
      %v3204 = vpop.f32.mrb[0].mxu0
      %v3205 = vadd.f32 0.0, %v3204
      %v3206 = vpop.f32.mrb[0].mxu0
      %3207 = vmatprep.mubr.bf16.mxu0 0
      %3208 = vmatmul.mubr.bf16.gmra.mrb[0].mxu0 %v3165
      %v3209 = vpop.f32.mrb[0].mxu0
      %v3210 = vadd.f32 0.0, %v3209
      %v3211 = vpop.f32.mrb[0].mxu0
      %v3212 = vpop.f32.mrb[0].mxu0
      %v3213 = vadd.f32 0.0, %v3212
      %v3214 = vpop.f32.mrb[0].mxu0
      %3215 = vdwg.mxu0
      %v3216 = vadd.f32 %v3068, %v3202
      %v3217 = vadd.f32 %v3071, %v3205
      %v3218 = vadd.f32 %v3076, %v3210
      %v3219 = vadd.f32 %v3079, %v3213
      %v3224 = vcombine.low %v2727, %v2728
      %v3225 = vcombine.low %v2729, %v2730
      %v3227 = vunpack.c.l.s4 1983009808
      %v3228 = vunpack.c.0.s8 %v3227
      %v3229 = vlaneseq
      %v3230 = vshrl.u32 %v3229, 7
      %v3231 = vsub.s32 %v3228, %v3230
      %v3232 = vrot.slane %v3224, %v3231
      %v3234 = vunpack.c.l.s4 1983009808
      %v3235 = vunpack.c.0.s8 %v3234
      %v3236 = vlaneseq
      %v3237 = vshrl.u32 %v3236, 7
      %v3238 = vsub.s32 %v3235, %v3237
      %v3239 = vrot.slane %v3225, %v3238
      %v3240 = vcombine.low %v3232, %v3239
      %v3242 = vpack.c.bf16 %v2805, %v2788
      %v3243 = vpack.c.bf16 %v3240, %v2822
      %s3244 = scalar_lea.vmem %s5, 96
      %v3245 = vld [vmem:[%s3244] sm:$0xf]
      %v3246 = vld [vmem:[%s3244 + $0x4] sm:$0xf]
      %v3247 = vld [vmem:[%s3244 + $0x8] sm:$0xf]
      %v3248 = vld [vmem:[%s3244 + $0xc] sm:$0xf]
      %v3249 = vld [vmem:[%s3244 + $0x10] sm:$0xf]
      %v3250 = vld [vmem:[%s3244 + $0x14] sm:$0xf]
      %v3251 = vld [vmem:[%s3244 + $0x18] sm:$0xf]
      %v3252 = vld [vmem:[%s3244 + $0x1c] sm:$0xf]
      %v3261 = vunpack.c.l.b16 %v3245
      %v3262 = vunpack.c.l.b16 %v3246
      %v3263 = vunpack.c.l.b16 %v3247
      %v3264 = vunpack.c.l.b16 %v3248
      %v3265 = vunpack.c.l.b16 %v3249
      %v3266 = vunpack.c.l.b16 %v3250
      %v3267 = vunpack.c.l.b16 %v3251
      %v3268 = vunpack.c.l.b16 %v3252
      %v3269 = vpack.c.b16 %v3262, %v3261
      %v3270 = vpack.c.b16 %v3264, %v3263
      %v3271 = vpack.c.b16 %v3266, %v3265
      %v3272 = vpack.c.b16 %v3268, %v3267
      %v3278 = vsel %vm638, %v3242, 0
      %v3281 = vsel %vm638, %v3243, 0
      %3283 = vmatprep.subr.bf16.mxu0 0
      %3284 = vmatpush1.bf16.msra.mxu0 %v3269
      %3285 = vmatprep.subr.bf16.mxu0 0
      %3286 = vmatpush1.bf16.msra.mxu0 %v3270
      %3287 = vmatprep.subr.bf16.mxu0 0
      %3288 = vmatpush1.bf16.msra.mxu0 %v3271
      %3289 = vmatprep.subr.bf16.mxu0 0
      %3290 = vmatpush1.bf16.msra.mxu0 %v3272
      %3291 = vmatprep.subr.bf16.mxu0 0
      %3292 = vmatpush1.bf16.msra.mxu0 0
      %3293 = vmatprep.subr.bf16.mxu0 0
      %3294 = vmatpush1.bf16.msra.mxu0 0
      %3295 = vmatprep.subr.bf16.mxu0 0
      %3296 = vmatpush1.bf16.msra.mxu0 0
      %3297 = vmatprep.subr.bf16.mxu0 0
      %3298 = vmatpush1.bf16.msra.mxu0 0
      %3299 = vmatprep.subr.bf16.mxu0 0
      %3300 = vmatpush1.bf16.msra.mxu0 0
      %3301 = vmatprep.subr.bf16.mxu0 0
      %3302 = vmatpush1.bf16.msra.mxu0 0
      %3303 = vmatprep.subr.bf16.mxu0 0
      %3304 = vmatpush1.bf16.msra.mxu0 0
      %3305 = vmatprep.subr.bf16.mxu0 0
      %3306 = vmatpush1.bf16.msra.mxu0 0
      %3307 = vmatprep.subr.bf16.mxu0 0
      %3308 = vmatpush1.bf16.msra.mxu0 0
      %3309 = vmatprep.subr.bf16.mxu0 0
      %3310 = vmatpush1.bf16.msra.mxu0 0
      %3311 = vmatprep.subr.bf16.mxu0 0
      %3312 = vmatpush1.bf16.msra.mxu0 0
      %3313 = vmatprep.subr.bf16.mxu0 0
      %3314 = vmatpush1.bf16.msra.mxu0 0
      %3315 = vmatprep.mubr.bf16.mxu0 0
      %3316 = vmatmul.mubr.bf16.gmra.mrb[0].mxu0 %v3278
      %v3317 = vpop.f32.mrb[0].mxu0
      %v3318 = vadd.f32 0.0, %v3317
      %v3319 = vpop.f32.mrb[0].mxu0
      %v3320 = vpop.f32.mrb[0].mxu0
      %v3321 = vadd.f32 0.0, %v3320
      %v3322 = vpop.f32.mrb[0].mxu0
      %3323 = vmatprep.mubr.bf16.mxu0 0
      %3324 = vmatmul.mubr.bf16.gmra.mrb[0].mxu0 %v3281
      %v3325 = vpop.f32.mrb[0].mxu0
      %v3326 = vadd.f32 0.0, %v3325
      %v3327 = vpop.f32.mrb[0].mxu0
      %v3328 = vpop.f32.mrb[0].mxu0
      %v3329 = vadd.f32 0.0, %v3328
      %v3330 = vpop.f32.mrb[0].mxu0
      %3331 = vdwg.mxu0
      %v3332 = vadd.f32 %v3216, %v3318
      %v3333 = vadd.f32 %v3217, %v3321
      %v3334 = vadd.f32 %v3218, %v3326
      %v3335 = vadd.f32 %v3219, %v3329
      %v3337 = vcombine.low %v2728, %v2729
      %v3338 = vcombine.low %v2730, %v2731
      %v3340 = vunpack.c.l.s4 1983009808
      %v3341 = vunpack.c.0.s8 %v3340
      %v3342 = vlaneseq
      %v3343 = vshrl.u32 %v3342, 7
      %v3344 = vsub.s32 %v3341, %v3343
      %v3345 = vrot.slane %v3337, %v3344
      %v3347 = vunpack.c.l.s4 1983009808
      %v3348 = vunpack.c.0.s8 %v3347
      %v3349 = vlaneseq
      %v3350 = vshrl.u32 %v3349, 7
      %v3351 = vsub.s32 %v3348, %v3350
      %v3352 = vrot.slane %v3338, %v3351
      %v3353 = vcombine.low %v3345, %v3352
      %v3355 = vpack.c.bf16 %v2891, %v2874
      %v3356 = vpack.c.bf16 %v3353, %v2908
      %s3357 = scalar_lea.vmem %s5, 128
      %v3358 = vld [vmem:[%s3357] sm:$0xf]
      %v3359 = vld [vmem:[%s3357 + $0x4] sm:$0xf]
      %v3360 = vld [vmem:[%s3357 + $0x8] sm:$0xf]
      %v3361 = vld [vmem:[%s3357 + $0xc] sm:$0xf]
      %v3362 = vld [vmem:[%s3357 + $0x10] sm:$0xf]
      %v3363 = vld [vmem:[%s3357 + $0x14] sm:$0xf]
      %v3364 = vld [vmem:[%s3357 + $0x18] sm:$0xf]
      %v3365 = vld [vmem:[%s3357 + $0x1c] sm:$0xf]
      %v3374 = vunpack.c.l.b16 %v3358
      %v3375 = vunpack.c.l.b16 %v3359
      %v3376 = vunpack.c.l.b16 %v3360
      %v3377 = vunpack.c.l.b16 %v3361
      %v3378 = vunpack.c.l.b16 %v3362
      %v3379 = vunpack.c.l.b16 %v3363
      %v3380 = vunpack.c.l.b16 %v3364
      %v3381 = vunpack.c.l.b16 %v3365
      %v3382 = vpack.c.b16 %v3375, %v3374
      %v3383 = vpack.c.b16 %v3377, %v3376
      %v3384 = vpack.c.b16 %v3379, %v3378
      %v3385 = vpack.c.b16 %v3381, %v3380
      %v3391 = vsel %vm638, %v3355, 0
      %v3394 = vsel %vm638, %v3356, 0
      %3396 = vmatprep.subr.bf16.mxu0 0
      %3397 = vmatpush1.bf16.msra.mxu0 %v3382
      %3398 = vmatprep.subr.bf16.mxu0 0
      %3399 = vmatpush1.bf16.msra.mxu0 %v3383
      %3400 = vmatprep.subr.bf16.mxu0 0
      %3401 = vmatpush1.bf16.msra.mxu0 %v3384
      %3402 = vmatprep.subr.bf16.mxu0 0
      %3403 = vmatpush1.bf16.msra.mxu0 %v3385
      %3404 = vmatprep.subr.bf16.mxu0 0
      %3405 = vmatpush1.bf16.msra.mxu0 0
      %3406 = vmatprep.subr.bf16.mxu0 0
      %3407 = vmatpush1.bf16.msra.mxu0 0
      %3408 = vmatprep.subr.bf16.mxu0 0
      %3409 = vmatpush1.bf16.msra.mxu0 0
      %3410 = vmatprep.subr.bf16.mxu0 0
      %3411 = vmatpush1.bf16.msra.mxu0 0
      %3412 = vmatprep.subr.bf16.mxu0 0
      %3413 = vmatpush1.bf16.msra.mxu0 0
      %3414 = vmatprep.subr.bf16.mxu0 0
      %3415 = vmatpush1.bf16.msra.mxu0 0
      %3416 = vmatprep.subr.bf16.mxu0 0
      %3417 = vmatpush1.bf16.msra.mxu0 0
      %3418 = vmatprep.subr.bf16.mxu0 0
      %3419 = vmatpush1.bf16.msra.mxu0 0
      %3420 = vmatprep.subr.bf16.mxu0 0
      %3421 = vmatpush1.bf16.msra.mxu0 0
      %3422 = vmatprep.subr.bf16.mxu0 0
      %3423 = vmatpush1.bf16.msra.mxu0 0
      %3424 = vmatprep.subr.bf16.mxu0 0
      %3425 = vmatpush1.bf16.msra.mxu0 0
      %3426 = vmatprep.subr.bf16.mxu0 0
      %3427 = vmatpush1.bf16.msra.mxu0 0
      %3428 = vmatprep.mubr.bf16.mxu0 0
      %3429 = vmatmul.mubr.bf16.gmra.mrb[0].mxu0 %v3391
      %v3430 = vpop.f32.mrb[0].mxu0
      %v3431 = vadd.f32 0.0, %v3430
      %v3432 = vpop.f32.mrb[0].mxu0
      %v3433 = vpop.f32.mrb[0].mxu0
      %v3434 = vadd.f32 0.0, %v3433
      %v3435 = vpop.f32.mrb[0].mxu0
      %3436 = vmatprep.mubr.bf16.mxu0 0
      %3437 = vmatmul.mubr.bf16.gmra.mrb[0].mxu0 %v3394
      %v3438 = vpop.f32.mrb[0].mxu0
      %v3439 = vadd.f32 0.0, %v3438
      %v3440 = vpop.f32.mrb[0].mxu0
      %v3441 = vpop.f32.mrb[0].mxu0
      %v3442 = vadd.f32 0.0, %v3441
      %v3443 = vpop.f32.mrb[0].mxu0
      %3444 = vdwg.mxu0
      %v3445 = vadd.f32 %v3332, %v3431
      %v3446 = vadd.f32 %v3333, %v3434
      %v3447 = vadd.f32 %v3334, %v3439
      %v3448 = vadd.f32 %v3335, %v3442
      %v3450 = vcombine.low %v2731, %v2732
      %v3452 = vunpack.c.l.s4 1983009808
      %v3453 = vunpack.c.0.s8 %v3452
      %v3454 = vlaneseq
      %v3455 = vshrl.u32 %v3454, 7
      %v3456 = vsub.s32 %v3453, %v3455
      %v3457 = vrot.slane %v3450, %v3456
      %v3458 = vcombine.low %v3239, %v3457
      %v3460 = vpack.c.bf16 %v3112, %v3103
      %v3461 = vpack.c.bf16 %v3458, %v3121
      %s3462 = scalar_lea.vmem %s5, 160
      %v3463 = vld [vmem:[%s3462] sm:$0xf]
      %v3464 = vld [vmem:[%s3462 + $0x4] sm:$0xf]
      %v3465 = vld [vmem:[%s3462 + $0x8] sm:$0xf]
      %v3466 = vld [vmem:[%s3462 + $0xc] sm:$0xf]
      %v3467 = vld [vmem:[%s3462 + $0x10] sm:$0xf]
      %v3468 = vld [vmem:[%s3462 + $0x14] sm:$0xf]
      %v3469 = vld [vmem:[%s3462 + $0x18] sm:$0xf]
      %v3470 = vld [vmem:[%s3462 + $0x1c] sm:$0xf]
      %v3479 = vunpack.c.l.b16 %v3463
      %v3480 = vunpack.c.l.b16 %v3464
      %v3481 = vunpack.c.l.b16 %v3465
      %v3482 = vunpack.c.l.b16 %v3466
      %v3483 = vunpack.c.l.b16 %v3467
      %v3484 = vunpack.c.l.b16 %v3468
      %v3485 = vunpack.c.l.b16 %v3469
      %v3486 = vunpack.c.l.b16 %v3470
      %v3487 = vpack.c.b16 %v3480, %v3479
      %v3488 = vpack.c.b16 %v3482, %v3481
      %v3489 = vpack.c.b16 %v3484, %v3483
      %v3490 = vpack.c.b16 %v3486, %v3485
      %v3496 = vsel %vm638, %v3460, 0
      %v3499 = vsel %vm638, %v3461, 0
      %3501 = vmatprep.subr.bf16.mxu0 0
      %3502 = vmatpush1.bf16.msra.mxu0 %v3487
      %3503 = vmatprep.subr.bf16.mxu0 0
      %3504 = vmatpush1.bf16.msra.mxu0 %v3488
      %3505 = vmatprep.subr.bf16.mxu0 0
      %3506 = vmatpush1.bf16.msra.mxu0 %v3489
      %3507 = vmatprep.subr.bf16.mxu0 0
      %3508 = vmatpush1.bf16.msra.mxu0 %v3490
      %3509 = vmatprep.subr.bf16.mxu0 0
      %3510 = vmatpush1.bf16.msra.mxu0 0
      %3511 = vmatprep.subr.bf16.mxu0 0
      %3512 = vmatpush1.bf16.msra.mxu0 0
      %3513 = vmatprep.subr.bf16.mxu0 0
      %3514 = vmatpush1.bf16.msra.mxu0 0
      %3515 = vmatprep.subr.bf16.mxu0 0
      %3516 = vmatpush1.bf16.msra.mxu0 0
      %3517 = vmatprep.subr.bf16.mxu0 0
      %3518 = vmatpush1.bf16.msra.mxu0 0
      %3519 = vmatprep.subr.bf16.mxu0 0
      %3520 = vmatpush1.bf16.msra.mxu0 0
      %3521 = vmatprep.subr.bf16.mxu0 0
      %3522 = vmatpush1.bf16.msra.mxu0 0
      %3523 = vmatprep.subr.bf16.mxu0 0
      %3524 = vmatpush1.bf16.msra.mxu0 0
      %3525 = vmatprep.subr.bf16.mxu0 0
      %3526 = vmatpush1.bf16.msra.mxu0 0
      %3527 = vmatprep.subr.bf16.mxu0 0
      %3528 = vmatpush1.bf16.msra.mxu0 0
      %3529 = vmatprep.subr.bf16.mxu0 0
      %3530 = vmatpush1.bf16.msra.mxu0 0
      %3531 = vmatprep.subr.bf16.mxu0 0
      %3532 = vmatpush1.bf16.msra.mxu0 0
      %3533 = vmatprep.mubr.bf16.mxu0 0
      %3534 = vmatmul.mubr.bf16.gmra.mrb[0].mxu0 %v3496
      %v3535 = vpop.f32.mrb[0].mxu0
      %v3536 = vadd.f32 0.0, %v3535
      %v3537 = vpop.f32.mrb[0].mxu0
      %v3538 = vpop.f32.mrb[0].mxu0
      %v3539 = vadd.f32 0.0, %v3538
      %v3540 = vpop.f32.mrb[0].mxu0
      %3541 = vmatprep.mubr.bf16.mxu0 0
      %3542 = vmatmul.mubr.bf16.gmra.mrb[0].mxu0 %v3499
      %v3543 = vpop.f32.mrb[0].mxu0
      %v3544 = vadd.f32 0.0, %v3543
      %v3545 = vpop.f32.mrb[0].mxu0
      %v3546 = vpop.f32.mrb[0].mxu0
      %v3547 = vadd.f32 0.0, %v3546
      %v3548 = vpop.f32.mrb[0].mxu0
      %3549 = vdwg.mxu0
      %v3550 = vadd.f32 %v3445, %v3536
      %v3551 = vadd.f32 %v3446, %v3539
      %v3552 = vadd.f32 %v3447, %v3544
      %v3553 = vadd.f32 %v3448, %v3547
      %v3558 = vcombine.low %v2733, %v2734
      %v3559 = vcombine.low %v2735, %v2736
      %v3561 = vunpack.c.l.s4 1983009808
      %v3562 = vunpack.c.0.s8 %v3561
      %v3563 = vlaneseq
      %v3564 = vshrl.u32 %v3563, 7
      %v3565 = vsub.s32 %v3562, %v3564
      %v3566 = vrot.slane %v3558, %v3565
      %v3568 = vunpack.c.l.s4 1983009808
      %v3569 = vunpack.c.0.s8 %v3568
      %v3570 = vlaneseq
      %v3571 = vshrl.u32 %v3570, 7
      %v3572 = vsub.s32 %v3569, %v3571
      %v3573 = vrot.slane %v3559, %v3572
      %v3574 = vcombine.low %v3566, %v3573
      %v3576 = vpack.c.bf16 %v3574, %v3240
      %s3577 = scalar_lea.vmem %s5, 192
      %v3578 = vld [vmem:[%s3577] sm:$0xf]
      %v3579 = vld [vmem:[%s3577 + $0x4] sm:$0xf]
      %v3580 = vld [vmem:[%s3577 + $0x8] sm:$0xf]
      %v3581 = vld [vmem:[%s3577 + $0xc] sm:$0xf]
      %v3582 = vld [vmem:[%s3577 + $0x10] sm:$0xf]
      %v3583 = vld [vmem:[%s3577 + $0x14] sm:$0xf]
      %v3584 = vld [vmem:[%s3577 + $0x18] sm:$0xf]
      %v3585 = vld [vmem:[%s3577 + $0x1c] sm:$0xf]
      %v3594 = vunpack.c.l.b16 %v3578
      %v3595 = vunpack.c.l.b16 %v3579
      %v3596 = vunpack.c.l.b16 %v3580
      %v3597 = vunpack.c.l.b16 %v3581
      %v3598 = vunpack.c.l.b16 %v3582
      %v3599 = vunpack.c.l.b16 %v3583
      %v3600 = vunpack.c.l.b16 %v3584
      %v3601 = vunpack.c.l.b16 %v3585
      %v3602 = vpack.c.b16 %v3595, %v3594
      %v3603 = vpack.c.b16 %v3597, %v3596
      %v3604 = vpack.c.b16 %v3599, %v3598
      %v3605 = vpack.c.b16 %v3601, %v3600
      %v3611 = vsel %vm638, %v3576, 0
      %3613 = vmatprep.subr.bf16.mxu0 0
      %3614 = vmatpush1.bf16.msra.mxu0 %v3602
      %3615 = vmatprep.subr.bf16.mxu0 0
      %3616 = vmatpush1.bf16.msra.mxu0 %v3603
      %3617 = vmatprep.subr.bf16.mxu0 0
      %3618 = vmatpush1.bf16.msra.mxu0 %v3604
      %3619 = vmatprep.subr.bf16.mxu0 0
      %3620 = vmatpush1.bf16.msra.mxu0 %v3605
      %3621 = vmatprep.subr.bf16.mxu0 0
      %3622 = vmatpush1.bf16.msra.mxu0 0
      %3623 = vmatprep.subr.bf16.mxu0 0
      %3624 = vmatpush1.bf16.msra.mxu0 0
      %3625 = vmatprep.subr.bf16.mxu0 0
      %3626 = vmatpush1.bf16.msra.mxu0 0
      %3627 = vmatprep.subr.bf16.mxu0 0
      %3628 = vmatpush1.bf16.msra.mxu0 0
      %3629 = vmatprep.subr.bf16.mxu0 0
      %3630 = vmatpush1.bf16.msra.mxu0 0
      %3631 = vmatprep.subr.bf16.mxu0 0
      %3632 = vmatpush1.bf16.msra.mxu0 0
      %3633 = vmatprep.subr.bf16.mxu0 0
      %3634 = vmatpush1.bf16.msra.mxu0 0
      %3635 = vmatprep.subr.bf16.mxu0 0
      %3636 = vmatpush1.bf16.msra.mxu0 0
      %3637 = vmatprep.subr.bf16.mxu0 0
      %3638 = vmatpush1.bf16.msra.mxu0 0
      %3639 = vmatprep.subr.bf16.mxu0 0
      %3640 = vmatpush1.bf16.msra.mxu0 0
      %3641 = vmatprep.subr.bf16.mxu0 0
      %3642 = vmatpush1.bf16.msra.mxu0 0
      %3643 = vmatprep.subr.bf16.mxu0 0
      %3644 = vmatpush1.bf16.msra.mxu0 0
      %3645 = vmatprep.mubr.bf16.mxu0 0
      %3646 = vmatmul.mubr.bf16.gmra.mrb[0].mxu0 %v3031
      %v3647 = vpop.f32.mrb[0].mxu0
      %v3648 = vadd.f32 0.0, %v3647
      %v3649 = vpop.f32.mrb[0].mxu0
      %v3650 = vpop.f32.mrb[0].mxu0
      %v3651 = vadd.f32 0.0, %v3650
      %v3652 = vpop.f32.mrb[0].mxu0
      %3653 = vmatprep.mubr.bf16.mxu0 0
      %3654 = vmatmul.mubr.bf16.gmra.mrb[0].mxu0 %v3611
      %v3655 = vpop.f32.mrb[0].mxu0
      %v3656 = vadd.f32 0.0, %v3655
      %v3657 = vpop.f32.mrb[0].mxu0
      %v3658 = vpop.f32.mrb[0].mxu0
      %v3659 = vadd.f32 0.0, %v3658
      %v3660 = vpop.f32.mrb[0].mxu0
      %3661 = vdwg.mxu0
      %v3662 = vadd.f32 %v3550, %v3648
      %v3663 = vadd.f32 %v3551, %v3651
      %v3664 = vadd.f32 %v3552, %v3656
      %v3665 = vadd.f32 %v3553, %v3659
      %v3667 = vcombine.low %v2734, %v2735
      %v3668 = vcombine.low %v2736, %v2737
      %v3670 = vunpack.c.l.s4 1983009808
      %v3671 = vunpack.c.0.s8 %v3670
      %v3672 = vlaneseq
      %v3673 = vshrl.u32 %v3672, 7
      %v3674 = vsub.s32 %v3671, %v3673
      %v3675 = vrot.slane %v3667, %v3674
      %v3677 = vunpack.c.l.s4 1983009808
      %v3678 = vunpack.c.0.s8 %v3677
      %v3679 = vlaneseq
      %v3680 = vshrl.u32 %v3679, 7
      %v3681 = vsub.s32 %v3678, %v3680
      %v3682 = vrot.slane %v3668, %v3681
      %v3683 = vcombine.low %v3675, %v3682
      %v3685 = vpack.c.bf16 %v3683, %v3353
      %s3686 = scalar_lea.vmem %s5, 224
      %v3687 = vld [vmem:[%s3686] sm:$0xf]
      %v3688 = vld [vmem:[%s3686 + $0x4] sm:$0xf]
      %v3689 = vld [vmem:[%s3686 + $0x8] sm:$0xf]
      %v3690 = vld [vmem:[%s3686 + $0xc] sm:$0xf]
      %v3691 = vld [vmem:[%s3686 + $0x10] sm:$0xf]
      %v3692 = vld [vmem:[%s3686 + $0x14] sm:$0xf]
      %v3693 = vld [vmem:[%s3686 + $0x18] sm:$0xf]
      %v3694 = vld [vmem:[%s3686 + $0x1c] sm:$0xf]
      %v3703 = vunpack.c.l.b16 %v3687
      %v3704 = vunpack.c.l.b16 %v3688
      %v3705 = vunpack.c.l.b16 %v3689
      %v3706 = vunpack.c.l.b16 %v3690
      %v3707 = vunpack.c.l.b16 %v3691
      %v3708 = vunpack.c.l.b16 %v3692
      %v3709 = vunpack.c.l.b16 %v3693
      %v3710 = vunpack.c.l.b16 %v3694
      %v3711 = vpack.c.b16 %v3704, %v3703
      %v3712 = vpack.c.b16 %v3706, %v3705
      %v3713 = vpack.c.b16 %v3708, %v3707
      %v3714 = vpack.c.b16 %v3710, %v3709
      %v3720 = vsel %vm638, %v3685, 0
      %3722 = vmatprep.subr.bf16.mxu0 0
      %3723 = vmatpush1.bf16.msra.mxu0 %v3711
      %3724 = vmatprep.subr.bf16.mxu0 0
      %3725 = vmatpush1.bf16.msra.mxu0 %v3712
      %3726 = vmatprep.subr.bf16.mxu0 0
      %3727 = vmatpush1.bf16.msra.mxu0 %v3713
      %3728 = vmatprep.subr.bf16.mxu0 0
      %3729 = vmatpush1.bf16.msra.mxu0 %v3714
      %3730 = vmatprep.subr.bf16.mxu0 0
      %3731 = vmatpush1.bf16.msra.mxu0 0
      %3732 = vmatprep.subr.bf16.mxu0 0
      %3733 = vmatpush1.bf16.msra.mxu0 0
      %3734 = vmatprep.subr.bf16.mxu0 0
      %3735 = vmatpush1.bf16.msra.mxu0 0
      %3736 = vmatprep.subr.bf16.mxu0 0
      %3737 = vmatpush1.bf16.msra.mxu0 0
      %3738 = vmatprep.subr.bf16.mxu0 0
      %3739 = vmatpush1.bf16.msra.mxu0 0
      %3740 = vmatprep.subr.bf16.mxu0 0
      %3741 = vmatpush1.bf16.msra.mxu0 0
      %3742 = vmatprep.subr.bf16.mxu0 0
      %3743 = vmatpush1.bf16.msra.mxu0 0
      %3744 = vmatprep.subr.bf16.mxu0 0
      %3745 = vmatpush1.bf16.msra.mxu0 0
      %3746 = vmatprep.subr.bf16.mxu0 0
      %3747 = vmatpush1.bf16.msra.mxu0 0
      %3748 = vmatprep.subr.bf16.mxu0 0
      %3749 = vmatpush1.bf16.msra.mxu0 0
      %3750 = vmatprep.subr.bf16.mxu0 0
      %3751 = vmatpush1.bf16.msra.mxu0 0
      %3752 = vmatprep.subr.bf16.mxu0 0
      %3753 = vmatpush1.bf16.msra.mxu0 0
      %3754 = vmatprep.mubr.bf16.mxu0 0
      %3755 = vmatmul.mubr.bf16.gmra.mrb[0].mxu0 %v2952
      %v3756 = vpop.f32.mrb[0].mxu0
      %v3757 = vadd.f32 0.0, %v3756
      %v3758 = vpop.f32.mrb[0].mxu0
      %v3759 = vpop.f32.mrb[0].mxu0
      %v3760 = vadd.f32 0.0, %v3759
      %v3761 = vpop.f32.mrb[0].mxu0
      %3762 = vmatprep.mubr.bf16.mxu0 0
      %3763 = vmatmul.mubr.bf16.gmra.mrb[0].mxu0 %v3720
      %v3764 = vpop.f32.mrb[0].mxu0
      %v3765 = vadd.f32 0.0, %v3764
      %v3766 = vpop.f32.mrb[0].mxu0
      %v3767 = vpop.f32.mrb[0].mxu0
      %v3768 = vadd.f32 0.0, %v3767
      %v3769 = vpop.f32.mrb[0].mxu0
      %3770 = vdwg.mxu0
      %v3771 = vadd.f32 %v3662, %v3757
      %v3772 = vadd.f32 %v3663, %v3760
      %v3773 = vadd.f32 %v3664, %v3765
      %v3774 = vadd.f32 %v3665, %v3768
      %v3776 = vcombine.low %v2737, %v2738
      %v3778 = vunpack.c.l.s4 1983009808
      %v3779 = vunpack.c.0.s8 %v3778
      %v3780 = vlaneseq
      %v3781 = vshrl.u32 %v3780, 7
      %v3782 = vsub.s32 %v3779, %v3781
      %v3783 = vrot.slane %v3776, %v3782
      %v3784 = vcombine.low %v3573, %v3783
      %v3786 = vpack.c.bf16 %v3784, %v3458
      %s3787 = scalar_lea.vmem %s5, 256
      %v3788 = vld [vmem:[%s3787] sm:$0xf]
      %v3789 = vld [vmem:[%s3787 + $0x4] sm:$0xf]
      %v3790 = vld [vmem:[%s3787 + $0x8] sm:$0xf]
      %v3791 = vld [vmem:[%s3787 + $0xc] sm:$0xf]
      %v3792 = vld [vmem:[%s3787 + $0x10] sm:$0xf]
      %v3793 = vld [vmem:[%s3787 + $0x14] sm:$0xf]
      %v3794 = vld [vmem:[%s3787 + $0x18] sm:$0xf]
      %v3795 = vld [vmem:[%s3787 + $0x1c] sm:$0xf]
      %v3804 = vunpack.c.l.b16 %v3788
      %v3805 = vunpack.c.l.b16 %v3789
      %v3806 = vunpack.c.l.b16 %v3790
      %v3807 = vunpack.c.l.b16 %v3791
      %v3808 = vunpack.c.l.b16 %v3792
      %v3809 = vunpack.c.l.b16 %v3793
      %v3810 = vunpack.c.l.b16 %v3794
      %v3811 = vunpack.c.l.b16 %v3795
      %v3812 = vpack.c.b16 %v3805, %v3804
      %v3813 = vpack.c.b16 %v3807, %v3806
      %v3814 = vpack.c.b16 %v3809, %v3808
      %v3815 = vpack.c.b16 %v3811, %v3810
      %v3821 = vsel %vm638, %v3786, 0
      %3823 = vmatprep.subr.bf16.mxu0 0
      %3824 = vmatpush1.bf16.msra.mxu0 %v3812
      %3825 = vmatprep.subr.bf16.mxu0 0
      %3826 = vmatpush1.bf16.msra.mxu0 %v3813
      %3827 = vmatprep.subr.bf16.mxu0 0
      %3828 = vmatpush1.bf16.msra.mxu0 %v3814
      %3829 = vmatprep.subr.bf16.mxu0 0
      %3830 = vmatpush1.bf16.msra.mxu0 %v3815
      %3831 = vmatprep.subr.bf16.mxu0 0
      %3832 = vmatpush1.bf16.msra.mxu0 0
      %3833 = vmatprep.subr.bf16.mxu0 0
      %3834 = vmatpush1.bf16.msra.mxu0 0
      %3835 = vmatprep.subr.bf16.mxu0 0
      %3836 = vmatpush1.bf16.msra.mxu0 0
      %3837 = vmatprep.subr.bf16.mxu0 0
      %3838 = vmatpush1.bf16.msra.mxu0 0
      %3839 = vmatprep.subr.bf16.mxu0 0
      %3840 = vmatpush1.bf16.msra.mxu0 0
      %3841 = vmatprep.subr.bf16.mxu0 0
      %3842 = vmatpush1.bf16.msra.mxu0 0
      %3843 = vmatprep.subr.bf16.mxu0 0
      %3844 = vmatpush1.bf16.msra.mxu0 0
      %3845 = vmatprep.subr.bf16.mxu0 0
      %3846 = vmatpush1.bf16.msra.mxu0 0
      %3847 = vmatprep.subr.bf16.mxu0 0
      %3848 = vmatpush1.bf16.msra.mxu0 0
      %3849 = vmatprep.subr.bf16.mxu0 0
      %3850 = vmatpush1.bf16.msra.mxu0 0
      %3851 = vmatprep.subr.bf16.mxu0 0
      %3852 = vmatpush1.bf16.msra.mxu0 0
      %3853 = vmatprep.subr.bf16.mxu0 0
      %3854 = vmatpush1.bf16.msra.mxu0 0
      %3855 = vmatprep.mubr.bf16.mxu0 0
      %3856 = vmatmul.mubr.bf16.gmra.mrb[0].mxu0 %v3165
      %v3857 = vpop.f32.mrb[0].mxu0
      %v3858 = vadd.f32 0.0, %v3857
      %v3859 = vpop.f32.mrb[0].mxu0
      %v3860 = vpop.f32.mrb[0].mxu0
      %v3861 = vadd.f32 0.0, %v3860
      %v3862 = vpop.f32.mrb[0].mxu0
      %3863 = vmatprep.mubr.bf16.mxu0 0
      %3864 = vmatmul.mubr.bf16.gmra.mrb[0].mxu0 %v3821
      %v3865 = vpop.f32.mrb[0].mxu0
      %v3866 = vadd.f32 0.0, %v3865
      %v3867 = vpop.f32.mrb[0].mxu0
      %v3868 = vpop.f32.mrb[0].mxu0
      %v3869 = vadd.f32 0.0, %v3868
      %v3870 = vpop.f32.mrb[0].mxu0
      %3871 = vdwg.mxu0
      %v3872 = vadd.f32 %v3771, %v3858
      %v3873 = vadd.f32 %v3772, %v3861
      %v3874 = vadd.f32 %v3773, %v3866
      %v3875 = vadd.f32 %v3774, %v3869
      %v3876 = vld [vmem:[%s6] sm:$0x1]
      %v3878 = vlaneseq
      %v3879 = vshrl.u32 %v3878, 7
      %v3880 = vsub.s32 0, %v3879
      %v3881 = vrot.slane %v3876, %v3880
      %v3883 = vadd.f32 %v3872, %v3881
      %v3884 = vadd.f32 %v3873, %v3881
      %v3885 = vadd.f32 %v3874, %v3881
      %v3886 = vadd.f32 %v3875, %v3881
      %v3887 = vadd.f32 %v3883, %v1581
      %v3888 = vadd.f32 %v3884, %v1598
      %v3889 = vadd.f32 %v3885, %v1615
      %v3890 = vadd.f32 %v3886, %v2060
      %v3891 = vmax.f32 %v3887, 0.0
      %v3892 = vmax.f32 %v3888, 0.0
      %v3893 = vmax.f32 %v3889, 0.0
      %v3894 = vmax.f32 %v3890, 0.0
      %v3899 = vcombine.high %v3891, %v3891
      %v3901 = vunpack.c.l.s4 1983009808
      %v3902 = vunpack.c.0.s8 %v3901
      %v3903 = vlaneseq
      %v3904 = vshrl.u32 %v3903, 7
      %v3905 = vsub.s32 %v3902, %v3904
      %v3906 = vrot.slane %v3891, %v3905
      %v3908 = vunpack.c.l.s4 1983009808
      %v3909 = vunpack.c.0.s8 %v3908
      %v3910 = vlaneseq
      %v3911 = vshrl.u32 %v3910, 7
      %v3912 = vsub.s32 %v3909, %v3911
      %v3913 = vrot.slane %v3899, %v3912
      %v3914 = vcombine.high %v3906, %v3906
      %v3915 = vcombine.high %v3913, %v3913
      %v3916 = vcombine.high %v3892, %v3892
      %v3918 = vunpack.c.l.s4 1983009808
      %v3919 = vunpack.c.0.s8 %v3918
      %v3920 = vlaneseq
      %v3921 = vshrl.u32 %v3920, 7
      %v3922 = vsub.s32 %v3919, %v3921
      %v3923 = vrot.slane %v3892, %v3922
      %v3925 = vunpack.c.l.s4 1983009808
      %v3926 = vunpack.c.0.s8 %v3925
      %v3927 = vlaneseq
      %v3928 = vshrl.u32 %v3927, 7
      %v3929 = vsub.s32 %v3926, %v3928
      %v3930 = vrot.slane %v3916, %v3929
      %v3931 = vcombine.high %v3923, %v3923
      %v3932 = vcombine.high %v3930, %v3930
      %v3933 = vcombine.high %v3893, %v3893
      %v3935 = vunpack.c.l.s4 1983009808
      %v3936 = vunpack.c.0.s8 %v3935
      %v3937 = vlaneseq
      %v3938 = vshrl.u32 %v3937, 7
      %v3939 = vsub.s32 %v3936, %v3938
      %v3940 = vrot.slane %v3893, %v3939
      %v3942 = vunpack.c.l.s4 1983009808
      %v3943 = vunpack.c.0.s8 %v3942
      %v3944 = vlaneseq
      %v3945 = vshrl.u32 %v3944, 7
      %v3946 = vsub.s32 %v3943, %v3945
      %v3947 = vrot.slane %v3933, %v3946
      %v3948 = vcombine.high %v3940, %v3940
      %v3949 = vcombine.high %v3947, %v3947
      %v3950 = vcombine.high %v3894, %v3894
      %v3952 = vunpack.c.l.s4 1983009808
      %v3953 = vunpack.c.0.s8 %v3952
      %v3954 = vlaneseq
      %v3955 = vshrl.u32 %v3954, 7
      %v3956 = vsub.s32 %v3953, %v3955
      %v3957 = vrot.slane %v3894, %v3956
      %v3959 = vunpack.c.l.s4 1983009808
      %v3960 = vunpack.c.0.s8 %v3959
      %v3961 = vlaneseq
      %v3962 = vshrl.u32 %v3961, 7
      %v3963 = vsub.s32 %v3960, %v3962
      %v3964 = vrot.slane %v3950, %v3963
      %v3965 = vcombine.high %v3957, %v3957
      %v3966 = vcombine.high %v3964, %v3964
      %v3983 = vsel %vm370, %v3906, 0.0
      %v3984 = vsel %vm370, %v3914, 0.0
      %v3985 = vadd.f32 %v3983, %v3984
      %v3986 = vsel %vm370, %v3913, 0.0
      %v3987 = vadd.f32 %v3985, %v3986
      %v3988 = vsel %vm370, %v3915, 0.0
      %v3989 = vadd.f32 %v3987, %v3988
      %v3990 = vsel %vm370, %v3923, 0.0
      %v3991 = vadd.f32 %v3989, %v3990
      %v3992 = vsel %vm370, %v3931, 0.0
      %v3993 = vadd.f32 %v3991, %v3992
      %v3994 = vsel %vm370, %v3930, 0.0
      %v3995 = vadd.f32 %v3993, %v3994
      %v3996 = vsel %vm370, %v3932, 0.0
      %v3997 = vadd.f32 %v3995, %v3996
      %v3998 = vsel %vm370, %v3940, 0.0
      %v3999 = vadd.f32 %v3997, %v3998
      %v4000 = vsel %vm370, %v3948, 0.0
      %v4001 = vadd.f32 %v3999, %v4000
      %v4002 = vsel %vm370, %v3947, 0.0
      %v4003 = vadd.f32 %v4001, %v4002
      %v4004 = vsel %vm370, %v3949, 0.0
      %v4005 = vadd.f32 %v4003, %v4004
      %v4006 = vsel %vm370, %v3957, 0.0
      %v4007 = vadd.f32 %v4005, %v4006
      %v4008 = vsel %vm370, %v3965, 0.0
      %v4009 = vadd.f32 %v4007, %v4008
      %v4010 = vsel %vm370, %v3964, 0.0
      %v4011 = vadd.f32 %v4009, %v4010
      %v4012 = vsel %vm370, %v3966, 0.0
      %v4013 = vadd.f32 %v4011, %v4012
      %v4014 = vmul.f32 %v4013, 0.0625
      %4015 = vst.msk [vmem:[%s364] sm:$0x3] %vm370, %v4014
      %v4016 = vpack.c.bf16 %v4014, %v4014
      %v4017 = vld [vmem:[%s7] sm:$0xf]
      %v4018 = vld [vmem:[%s7 + $0x4] sm:$0xf]
      %v4019 = vld [vmem:[%s7 + $0x8] sm:$0xf]
      %v4020 = vld [vmem:[%s7 + $0xc] sm:$0xf]
      %v4021 = vld [vmem:[%s7 + $0x10] sm:$0xf]
      %v4022 = vld [vmem:[%s7 + $0x14] sm:$0xf]
      %v4023 = vld [vmem:[%s7 + $0x18] sm:$0xf]
      %v4024 = vld [vmem:[%s7 + $0x1c] sm:$0xf]
      %v4033 = vunpack.c.l.b16 %v4017
      %v4034 = vunpack.c.l.b16 %v4018
      %v4035 = vunpack.c.l.b16 %v4019
      %v4036 = vunpack.c.l.b16 %v4020
      %v4037 = vunpack.c.l.b16 %v4021
      %v4038 = vunpack.c.l.b16 %v4022
      %v4039 = vunpack.c.l.b16 %v4023
      %v4040 = vunpack.c.l.b16 %v4024
      %v4041 = vpack.c.b16 %v4034, %v4033
      %v4042 = vpack.c.b16 %v4036, %v4035
      %v4043 = vpack.c.b16 %v4038, %v4037
      %v4044 = vpack.c.b16 %v4040, %v4039
      %v4050 = vsel %vm638, %v4016, 0
      %4052 = vmatprep.subr.bf16.mxu0 0
      %4053 = vmatpush1.bf16.msra.mxu0 %v4041
      %4054 = vmatprep.subr.bf16.mxu0 0
      %4055 = vmatpush1.bf16.msra.mxu0 %v4042
      %4056 = vmatprep.subr.bf16.mxu0 0
      %4057 = vmatpush1.bf16.msra.mxu0 %v4043
      %4058 = vmatprep.subr.bf16.mxu0 0
      %4059 = vmatpush1.bf16.msra.mxu0 %v4044
      %4060 = vmatprep.subr.bf16.mxu0 0
      %4061 = vmatpush1.bf16.msra.mxu0 0
      %4062 = vmatprep.subr.bf16.mxu0 0
      %4063 = vmatpush1.bf16.msra.mxu0 0
      %4064 = vmatprep.subr.bf16.mxu0 0
      %4065 = vmatpush1.bf16.msra.mxu0 0
      %4066 = vmatprep.subr.bf16.mxu0 0
      %4067 = vmatpush1.bf16.msra.mxu0 0
      %4068 = vmatprep.subr.bf16.mxu0 0
      %4069 = vmatpush1.bf16.msra.mxu0 0
      %4070 = vmatprep.subr.bf16.mxu0 0
      %4071 = vmatpush1.bf16.msra.mxu0 0
      %4072 = vmatprep.subr.bf16.mxu0 0
      %4073 = vmatpush1.bf16.msra.mxu0 0
      %4074 = vmatprep.subr.bf16.mxu0 0
      %4075 = vmatpush1.bf16.msra.mxu0 0
      %4076 = vmatprep.subr.bf16.mxu0 0
      %4077 = vmatpush1.bf16.msra.mxu0 0
      %4078 = vmatprep.subr.bf16.mxu0 0
      %4079 = vmatpush1.bf16.msra.mxu0 0
      %4080 = vmatprep.subr.bf16.mxu0 0
      %4081 = vmatpush1.bf16.msra.mxu0 0
      %4082 = vmatprep.subr.bf16.mxu0 0
      %4083 = vmatpush1.bf16.msra.mxu0 0
      %4084 = vmatprep.mubr.bf16.mxu0 0
      %4085 = vmatmul.mubr.bf16.gmra.mrb[0].mxu0 %v4050
      %v4086 = vpop.f32.mrb[0].mxu0
      %v4087 = vadd.f32 0.0, %v4086
      %v4088 = vpop.f32.mrb[0].mxu0
      %v4089 = vpop.f32.mrb[0].mxu0
      %v4090 = vpop.f32.mrb[0].mxu0
      %4091 = vdwg.mxu0
      %v4092 = vmax.f32 %v4087, 0.0
      %v4093 = vpack.c.bf16 %v4092, %v4092
      %v4094 = vld [vmem:[%s8] sm:$0xf]
      %v4095 = vld [vmem:[%s8 + $0x4] sm:$0xf]
      %v4096 = vld [vmem:[%s8 + $0x8] sm:$0xf]
      %v4097 = vld [vmem:[%s8 + $0xc] sm:$0xf]
      %v4098 = vld [vmem:[%s8 + $0x10] sm:$0xf]
      %v4099 = vld [vmem:[%s8 + $0x14] sm:$0xf]
      %v4100 = vld [vmem:[%s8 + $0x18] sm:$0xf]
      %v4101 = vld [vmem:[%s8 + $0x1c] sm:$0xf]
      %v4110 = vunpack.c.l.b16 %v4094
      %v4111 = vunpack.c.l.b16 %v4095
      %v4112 = vunpack.c.l.b16 %v4096
      %v4113 = vunpack.c.l.b16 %v4097
      %v4114 = vunpack.c.l.b16 %v4098
      %v4115 = vunpack.c.l.b16 %v4099
      %v4116 = vunpack.c.l.b16 %v4100
      %v4117 = vunpack.c.l.b16 %v4101
      %v4118 = vpack.c.b16 %v4111, %v4110
      %v4119 = vpack.c.b16 %v4113, %v4112
      %v4120 = vpack.c.b16 %v4115, %v4114
      %v4121 = vpack.c.b16 %v4117, %v4116
      %v4127 = vsel %vm638, %v4093, 0
      %4129 = vmatprep.subr.bf16.mxu0 0
      %4130 = vmatpush1.bf16.msra.mxu0 %v4118
      %4131 = vmatprep.subr.bf16.mxu0 0
      %4132 = vmatpush1.bf16.msra.mxu0 %v4119
      %4133 = vmatprep.subr.bf16.mxu0 0
      %4134 = vmatpush1.bf16.msra.mxu0 %v4120
      %4135 = vmatprep.subr.bf16.mxu0 0
      %4136 = vmatpush1.bf16.msra.mxu0 %v4121
      %4137 = vmatprep.subr.bf16.mxu0 0
      %4138 = vmatpush1.bf16.msra.mxu0 0
      %4139 = vmatprep.subr.bf16.mxu0 0
      %4140 = vmatpush1.bf16.msra.mxu0 0
      %4141 = vmatprep.subr.bf16.mxu0 0
      %4142 = vmatpush1.bf16.msra.mxu0 0
      %4143 = vmatprep.subr.bf16.mxu0 0
      %4144 = vmatpush1.bf16.msra.mxu0 0
      %4145 = vmatprep.subr.bf16.mxu0 0
      %4146 = vmatpush1.bf16.msra.mxu0 0
      %4147 = vmatprep.subr.bf16.mxu0 0
      %4148 = vmatpush1.bf16.msra.mxu0 0
      %4149 = vmatprep.subr.bf16.mxu0 0
      %4150 = vmatpush1.bf16.msra.mxu0 0
      %4151 = vmatprep.subr.bf16.mxu0 0
      %4152 = vmatpush1.bf16.msra.mxu0 0
      %4153 = vmatprep.subr.bf16.mxu0 0
      %4154 = vmatpush1.bf16.msra.mxu0 0
      %4155 = vmatprep.subr.bf16.mxu0 0
      %4156 = vmatpush1.bf16.msra.mxu0 0
      %4157 = vmatprep.subr.bf16.mxu0 0
      %4158 = vmatpush1.bf16.msra.mxu0 0
      %4159 = vmatprep.subr.bf16.mxu0 0
      %4160 = vmatpush1.bf16.msra.mxu0 0
      %4161 = vmatprep.mubr.bf16.mxu0 0
      %4162 = vmatmul.mubr.bf16.gmra.mrb[0].mxu0 %v4127
      %v4163 = vpop.f32.mrb[0].mxu0
      %v4164 = vadd.f32 0.0, %v4163
      %v4165 = vpop.f32.mrb[0].mxu0
      %v4166 = vpop.f32.mrb[0].mxu0
      %v4167 = vpop.f32.mrb[0].mxu0
      %4168 = vdwg.mxu0
      %vm4169 = vcmask 254976
      %4170 = vst.msk [vmem:[%s368] sm:$0x3] %vm4169, %v4164
      %p4171 = scmp.lt.s32.totalorder %s22, 1
      %s4172 = scalar_select %p4171, %s22, 1
      %s4173 = smul.addr %s4172, 2
      %s4174 = scalar_lea.vmem %s9, %s4173
      %p4175 = scmp.lt.s32.totalorder %s22, 1
      %s4176 = scalar_select %p4175, %s22, 1
      %s4177 = smul.addr %s4176, 2
      %s4178 = scalar_lea.vmem %s10, %s4177
      // Predicated region
      $region57: #{simclr_forward.1} parent=55 // pred_check
        %p4179 = pneg %p234
      $region58: #{simclr_forward.1} parent=55 // pred_check_branch
        %4181 = sbr.rel (%p4179) target = $region60
      $region59: #{simclr_forward.1} parent=55 // pred_region
        _
      $region60: #{simclr_forward.1} parent=55 // pred_fallthru
        _
      // Predicated region
      $region61: #{simclr_forward.1} parent=55 // pred_check
        %p4182 = pneg %p260
      $region62: #{simclr_forward.1} parent=55 // pred_check_branch
        %4184 = sbr.rel (%p4182) target = $region64
      $region63: #{simclr_forward.1} parent=55 // pred_region
        _
      $region64: #{simclr_forward.1} parent=55 // pred_fallthru
        _
    $region56: #{simclr_forward.1} parent=5 // pred_fallthru
      _
    %p4185 = scmp.le.s32.totalorder 2, %s17
    // Predicated region
    $region65: #{simclr_forward.1} parent=5 // pred_check
      %p4186 = pneg %p4185
    $region66: #{simclr_forward.1} parent=5 // pred_check_branch
      %4188 = sbr.rel (%p4186) target = $region68
    $region67: #{simclr_forward.1} parent=5 // pred_region
      %s4189 = ssub.s32 %s17, 2
      // Predicated region
      $region69: #{simclr_forward.1} parent=67 // pred_check
        %p4190 = pneg %p240
      $region70: #{simclr_forward.1} parent=67 // pred_check_branch
        %4192 = sbr.rel (%p4190) target = $region72
      $region71: #{simclr_forward.1} parent=67 // pred_region
        %p4193 = scmp.lt.s32.totalorder %s23, 1
        %s4194 = scalar_select %p4193, %s23, 1
        %s4195 = smul.addr %s4194, 2
        %s4196 = scalar_lea.vmem %s9, %s4195
      $region72: #{simclr_forward.1} parent=67 // pred_fallthru
        _
      // Predicated region
      $region73: #{simclr_forward.1} parent=67 // pred_check
        %p4197 = pneg %p266
      $region74: #{simclr_forward.1} parent=67 // pred_check_branch
        %4199 = sbr.rel (%p4197) target = $region76
      $region75: #{simclr_forward.1} parent=67 // pred_region
        %p4200 = scmp.lt.s32.totalorder %s23, 1
        %s4201 = scalar_select %p4200, %s23, 1
        %s4202 = smul.addr %s4201, 2
        %s4203 = scalar_lea.vmem %s10, %s4202
      $region76: #{simclr_forward.1} parent=67 // pred_fallthru
        _
    $region68: #{simclr_forward.1} parent=5 // pred_fallthru
      _
  $region6: #{simclr_forward.1} parent=0 // loop_footer
    %s21 = sadd.s32 1, %s17
  $region7: #{simclr_forward.1} parent=0 // loop_footer_branch
    %16 = sbr.rel target = $region3
  $region8: #{simclr_forward.1} parent=0 // loop_exit
    _

</llo_original>
